<compile_context>
chip_gen: v7x
topology: tpu7x:2x2x1
jax: 0.10.0
libtpu: 0.0.40
codegen_flags: <defaults>
</compile_context>

<pallas_src>
import math
import functools

import jax
import jax.numpy as jnp
from jax import lax
from jax.experimental import pallas as pl
from jax.experimental.pallas import tpu as pltpu

# Older JAX builds used the name TPUCompilerParams.
_CompilerParams = getattr(pltpu, "CompilerParams", None) or getattr(pltpu, "TPUCompilerParams")


def _layer_norm(x, gamma, beta, eps=1e-6):
    # onmt.modules.LayerNorm: a_2 * (x - mean) / (std + eps) + b_2, with *unbiased* std.
    # Exact divide here (review correctness note); only the softmax denominator uses the
    # approximate EUP reciprocal.
    mean = jnp.mean(x, axis=-1, keepdims=True)
    cen = x - mean
    var = jnp.sum(cen * cen, axis=-1, keepdims=True) * (1.0 / (x.shape[-1] - 1))
    return gamma * (cen / (jnp.sqrt(var) + eps)) + beta


def encoder_layer_kernel(x_ref, mask_ref,
                         ln1_g_ref, ln1_b_ref,
                         wqkv_ref, bqkv_ref,
                         wo_ref, bo_ref,
                         ln2_g_ref, ln2_b_ref,
                         w1_ref, b1_ref, w2_ref, b2_ref,
                         o_ref,
                         *, head_count):
    x = x_ref[0].astype(jnp.float32)                        # (S, D), f32 residual path
    seq, size = x.shape
    dph = size // head_count

    # Additive key-padding bias, kept (1, S); mask == 1.0 marks a padded key position.
    bias = mask_ref[0].astype(jnp.float32) * jnp.float32(-1e18)

    # --- self-attention block ---
    xn = _layer_norm(x, ln1_g_ref[...], ln1_b_ref[...])
    # Fused QKV projection: bf16 operands, f32 accumulation. 1/sqrt(dph) is already folded
    # into the Q columns of wqkv / bqkv by the wrapper.
    qkv = jnp.dot(xn.astype(jnp.bfloat16), wqkv_ref[...],
                  preferred_element_type=jnp.float32) + bqkv_ref[...]   # (S, 3D) f32

    # Residual + output-projection bias; each head's ctx_h @ Wo[h] partial product is
    # accumulated on top (full-width N=D matmul), so no narrow context stores and no scratch.
    attn_out = x + bo_ref[...]

    # TODO(synk): for production sizes (S >= 2k) switch this static unroll to lax.fori_loop
    #             (bounded liveness), add flash-style query tiling and an H-tiled FFN
    #             accumulator so activations fit v7x's 64 MiB VMEM.
    for h in range(head_count):
        qh = qkv[:, h * dph:(h + 1) * dph]
        kh = qkv[:, size + h * dph:size + (h + 1) * dph]
        vh = qkv[:, 2 * size + h * dph:2 * size + (h + 1) * dph]
        # q @ k^T contracting both minor dims -> no explicit XLU transpose; bf16 in, f32 acc.
        scores = lax.dot_general(qh.astype(jnp.bfloat16), kh.astype(jnp.bfloat16),
                                 (((1,), (1,)), ((), ())),
                                 preferred_element_type=jnp.float32)    # (S, S) f32
        scores = scores + bias                                          # mask padded keys
        scores = scores - jnp.max(scores, axis=-1, keepdims=True)
        p = jnp.exp(scores)                                             # f32 softmax math
        inv_den = pl.reciprocal(jnp.sum(p, axis=-1, keepdims=True), approx=True)
        attn = (p * inv_den).astype(jnp.bfloat16)
        # TODO(synk): attention dropout (drop_attn) is identity here (eval / p = 0), no RNG.
        ctx_h = jnp.dot(attn, vh.astype(jnp.bfloat16),
                        preferred_element_type=jnp.float32)             # (S, dph) f32
        # Fold the output projection per head; accumulate in f32 at full lane width.
        attn_out = attn_out + jnp.dot(ctx_h.astype(jnp.bfloat16), wo_ref[h],
                                      preferred_element_type=jnp.float32)

    # --- position-wise feed forward (own LayerNorm + residual); dropouts are identity ---
    yn = _layer_norm(attn_out, ln2_g_ref[...], ln2_b_ref[...])
    inter = jnp.maximum(
        jnp.dot(yn.astype(jnp.bfloat16), w1_ref[...],
                preferred_element_type=jnp.float32) + b1_ref[...], 0.0)
    ff = jnp.dot(inter.astype(jnp.bfloat16), w2_ref[...],
                 preferred_element_type=jnp.float32) + b2_ref[...]

    o_ref[0] = (ff + attn_out).astype(o_ref.dtype)


def _build_encoder_call(B, S, D, H, head_count, dph, out_dtype, optimized):
    """Builds the pallas_call. optimized=False drops Buffered(1)/vmem-limit (safe fallback)."""

    def const_spec(shape):
        index_map = lambda b: (0,) * len(shape)
        if optimized:
            # Grid-invariant operand: single-buffer it instead of the default double buffer.
            return pl.BlockSpec(shape, index_map, pipeline_mode=pl.Buffered(buffer_count=1))
        return pl.BlockSpec(shape, index_map)

    x_spec = pl.BlockSpec((1, S, D), lambda b: (b, 0, 0))
    m_spec = pl.BlockSpec((1, 1, S), lambda b: (b, 0, 0))
    in_specs = [
        x_spec, m_spec,
        const_spec((1, D)), const_spec((1, D)),                # ln1 gamma / beta      (f32)
        const_spec((D, 3 * D)), const_spec((1, 3 * D)),        # fused Wqkv (bf16) / bqkv (f32)
        const_spec((head_count, dph, D)), const_spec((1, D)),  # Wo as (h,dph,D) (bf16) / bo
        const_spec((1, D)), const_spec((1, D)),                # ln2 gamma / beta
        const_spec((D, H)), const_spec((1, H)),                # W1 (bf16) / b1
        const_spec((H, D)), const_spec((1, D)),                # W2 (bf16) / b2
    ]
    out_spec = pl.BlockSpec((1, S, D), lambda b: (b, 0, 0))

    if optimized:
        # ~48 MiB keeps this config inside v7x's 64 MiB physical VMEM; v5e/v6e (128 MiB) can
        # go toward ~100 MiB. Re-derive tile sizes per TPU generation at production shapes.
        compiler_params = _CompilerParams(dimension_semantics=("parallel",),
                                          vmem_limit_bytes=48 * 1024 * 1024)
    else:
        compiler_params = _CompilerParams(dimension_semantics=("parallel",))

    kernel = functools.partial(encoder_layer_kernel, head_count=head_count)
    return pl.pallas_call(
        kernel,
        out_shape=jax.ShapeDtypeStruct((B, S, D), out_dtype),
        grid=(B,),                      # batch items independent -> megacore "parallel"
        in_specs=in_specs,
        out_specs=out_spec,
        compiler_params=compiler_params,
    )


def transformer_encoder_layer(x, mask, params, head_count):
    B, S, D = x.shape
    H = params["w1"].shape[1]
    dph = D // head_count
    scale = 1.0 / math.sqrt(dph)

    # Host-side (free) param prep: fold 1/sqrt(dph) into the Q columns of the fused QKV
    # projection, reshape Wo to (heads, dph, D) for clean leading-dim per-head slices, and
    # cast the large weight matrices to bf16. Biases / LayerNorm params stay f32.
    wqkv = params["wqkv"].at[:, :D].multiply(scale).astype(jnp.bfloat16)
    bqkv = params["bqkv"].at[:, :D].multiply(scale)
    wo = params["wo"].reshape(head_count, dph, D).astype(jnp.bfloat16)
    w1 = params["w1"].astype(jnp.bfloat16)
    w2 = params["w2"].astype(jnp.bfloat16)

    args = (x, mask,
            params["ln1_g"], params["ln1_b"],
            wqkv, bqkv,
            wo, params["bo"],
            params["ln2_g"], params["ln2_b"],
            w1, params["b1"], w2, params["b2"])

    try:
        return _build_encoder_call(B, S, D, H, head_count, dph, x.dtype, optimized=True)(*args)
    except Exception:
        # This JAX/Mosaic build rejected pipeline_mode=pl.Buffered(1) (or the vmem limit);
        # fall back to default double-buffered weights — identical numerics, more weight VMEM.
        return _build_encoder_call(B, S, D, H, head_count, dph, x.dtype, optimized=False)(*args)


def reference_forward(x, mask, params, head_count):
    """Pure-JAX reference mirroring the PyTorch module semantics (f32 weights, un-folded)."""
    B, S, D = x.shape
    dph = D // head_count
    xn = _layer_norm(x, params["ln1_g"], params["ln1_b"])
    qkv = xn @ params["wqkv"] + params["bqkv"]
    q, k, v = qkv[..., :D], qkv[..., D:2 * D], qkv[..., 2 * D:]

    def split(t):
        return t.reshape(B, S, head_count, dph).transpose(0, 2, 1, 3)  # (B, h, S, dph)

    qh, kh, vh = split(q), split(k), split(v)
    scores = jnp.einsum("bhqd,bhkd->bhqk", qh, kh) / math.sqrt(dph)
    m = mask[:, None, :, :] > 0                       # (B, 1, 1, S) broadcast over heads/query
    scores = jnp.where(m, -1e18, scores)
    attn = jax.nn.softmax(scores, axis=-1)
    ctx = jnp.einsum("bhqk,bhkd->bhqd", attn, vh).transpose(0, 2, 1, 3).reshape(B, S, D)
    context = ctx @ params["wo"] + params["bo"]
    out = context + x
    yn = _layer_norm(out, params["ln2_g"], params["ln2_b"])
    inter = jnp.maximum(yn @ params["w1"] + params["b1"], 0.0)
    return inter @ params["w2"] + params["b2"] + out


def init_params(key, size, hidden):
    keys = jax.random.split(key, 12)
    scale = 0.05
    return {
        "ln1_g": 1.0 + 0.1 * jax.random.normal(keys[0], (1, size), jnp.float32),
        "ln1_b": 0.1 * jax.random.normal(keys[1], (1, size), jnp.float32),
        # Q/K/V projections are stored pre-fused as a single (size, 3*size) weight/bias.
        "wqkv": scale * jax.random.normal(keys[2], (size, 3 * size), jnp.float32),
        "bqkv": 0.1 * jax.random.normal(keys[3], (1, 3 * size), jnp.float32),
        "wo": scale * jax.random.normal(keys[4], (size, size), jnp.float32),
        "bo": 0.1 * jax.random.normal(keys[5], (1, size), jnp.float32),
        "ln2_g": 1.0 + 0.1 * jax.random.normal(keys[6], (1, size), jnp.float32),
        "ln2_b": 0.1 * jax.random.normal(keys[7], (1, size), jnp.float32),
        "w1": scale * jax.random.normal(keys[8], (size, hidden), jnp.float32),
        "b1": 0.1 * jax.random.normal(keys[9], (1, hidden), jnp.float32),
        "w2": scale * jax.random.normal(keys[10], (hidden, size), jnp.float32),
        "b2": 0.1 * jax.random.normal(keys[11], (1, size), jnp.float32),
    }


if __name__ == "__main__":
    B, S, D, HEADS, HIDDEN = 2, 8, 32, 4, 64

    root = jax.random.PRNGKey(0)
    kx, kp = jax.random.split(root)
    x = jax.random.normal(kx, (B, S, D), jnp.float32)

    # padding mask: batch 1 has its last 2 key positions padded
    mask = jnp.zeros((B, 1, S), jnp.float32)
    mask = mask.at[1, 0, S - 2:].set(1.0)

    params = init_params(kp, D, HIDDEN)

    out = transformer_encoder_layer(x, mask, params, HEADS)
    out = jax.block_until_ready(out)

    ref = reference_forward(x, mask, params, HEADS)
    assert out.shape == (B, S, D)
    # Tolerance covers bf16 weights/activations at matmul boundaries and the approximate
    # (EUP) reciprocal used for the softmax denominator.
    assert jnp.allclose(out, ref, rtol=2e-2, atol=2e-2), "mismatch vs pure-JAX reference"

    print("KERNEL_OK")
</pallas_src>

<mosaic_0001>
module attributes {stable_mosaic.version = 11 : i64} {
  func.func @encoder_layer_kernel(%arg0: i32, %arg1: memref<1x8x32xf32, #tpu.memory_space<vmem>>, %arg2: memref<1x1x8xf32, #tpu.memory_space<vmem>>, %arg3: memref<1x32xf32, #tpu.memory_space<vmem>>, %arg4: memref<1x32xf32, #tpu.memory_space<vmem>>, %arg5: memref<32x96xbf16, #tpu.memory_space<vmem>>, %arg6: memref<1x96xf32, #tpu.memory_space<vmem>>, %arg7: memref<4x8x32xbf16, #tpu.memory_space<vmem>>, %arg8: memref<1x32xf32, #tpu.memory_space<vmem>>, %arg9: memref<1x32xf32, #tpu.memory_space<vmem>>, %arg10: memref<1x32xf32, #tpu.memory_space<vmem>>, %arg11: memref<32x64xbf16, #tpu.memory_space<vmem>>, %arg12: memref<1x64xf32, #tpu.memory_space<vmem>>, %arg13: memref<64x32xbf16, #tpu.memory_space<vmem>>, %arg14: memref<1x32xf32, #tpu.memory_space<vmem>>, %arg15: memref<1x8x32xf32, #tpu.memory_space<vmem>>) attributes {dimension_semantics = [#tpu.dimension_semantics<parallel>], iteration_bounds = array<i64: 2>, scalar_prefetch = 0 : i64, scratch_operands = 0 : i64, tpu.core_type = #tpu.core_type<tc>, window_params = [{transform_indices = @transform_0, window_bounds = array<i64: 1, 8, 32>}, {transform_indices = @transform_1, window_bounds = array<i64: 1, 1, 8>}, {pipeline_mode = #tpu.pipeline_mode<synchronous>, transform_indices = @transform_2, window_bounds = array<i64: 1, 32>}, {pipeline_mode = #tpu.pipeline_mode<synchronous>, transform_indices = @transform_3, window_bounds = array<i64: 1, 32>}, {pipeline_mode = #tpu.pipeline_mode<synchronous>, transform_indices = @transform_4, window_bounds = array<i64: 32, 96>}, {pipeline_mode = #tpu.pipeline_mode<synchronous>, transform_indices = @transform_5, window_bounds = array<i64: 1, 96>}, {pipeline_mode = #tpu.pipeline_mode<synchronous>, transform_indices = @transform_6, window_bounds = array<i64: 4, 8, 32>}, {pipeline_mode = #tpu.pipeline_mode<synchronous>, transform_indices = @transform_7, window_bounds = array<i64: 1, 32>}, {pipeline_mode = #tpu.pipeline_mode<synchronous>, transform_indices = @transform_8, window_bounds = array<i64: 1, 32>}, {pipeline_mode = #tpu.pipeline_mode<synchronous>, transform_indices = @transform_9, window_bounds = array<i64: 1, 32>}, {pipeline_mode = #tpu.pipeline_mode<synchronous>, transform_indices = @transform_10, window_bounds = array<i64: 32, 64>}, {pipeline_mode = #tpu.pipeline_mode<synchronous>, transform_indices = @transform_11, window_bounds = array<i64: 1, 64>}, {pipeline_mode = #tpu.pipeline_mode<synchronous>, transform_indices = @transform_12, window_bounds = array<i64: 64, 32>}, {pipeline_mode = #tpu.pipeline_mode<synchronous>, transform_indices = @transform_13, window_bounds = array<i64: 1, 32>}, {transform_indices = @transform_14, window_bounds = array<i64: 1, 8, 32>}]} {
    %c0 = arith.constant 0 : index
    %c0_0 = arith.constant 0 : index
    %c0_1 = arith.constant 0 : index
    %0 = vector.load %arg1[%c0, %c0_0, %c0_1] : memref<1x8x32xf32, #tpu.memory_space<vmem>>, vector<1x8x32xf32>
    %1 = vector.shape_cast %0 : vector<1x8x32xf32> to vector<8x32xf32>
    %c0_2 = arith.constant 0 : index
    %c0_3 = arith.constant 0 : index
    %c0_4 = arith.constant 0 : index
    %2 = vector.load %arg2[%c0_2, %c0_3, %c0_4] : memref<1x1x8xf32, #tpu.memory_space<vmem>>, vector<1x1x8xf32>
    %3 = vector.shape_cast %2 : vector<1x1x8xf32> to vector<1x8xf32>
    %cst = arith.constant -9.99999984E+17 : f32
    %4 = vector.broadcast %cst : f32 to vector<1x8xf32>
    %5 = arith.mulf %3, %4 : vector<1x8xf32>
    %c0_5 = arith.constant 0 : index
    %c0_6 = arith.constant 0 : index
    %6 = vector.load %arg3[%c0_5, %c0_6] : memref<1x32xf32, #tpu.memory_space<vmem>>, vector<1x32xf32>
    %c0_7 = arith.constant 0 : index
    %c0_8 = arith.constant 0 : index
    %7 = vector.load %arg4[%c0_7, %c0_8] : memref<1x32xf32, #tpu.memory_space<vmem>>, vector<1x32xf32>
    %cst_9 = arith.constant dense<0.000000e+00> : vector<8xf32>
    %8 = vector.multi_reduction <add>, %1, %cst_9 [1] : vector<8x32xf32> to vector<8xf32>
    %9 = vector.shape_cast %8 : vector<8xf32> to vector<8x1xf32>
    %cst_10 = arith.constant 3.200000e+01 : f32
    %10 = vector.broadcast %cst_10 : f32 to vector<8x1xf32>
    %11 = arith.divf %9, %10 : vector<8x1xf32>
    %12 = vector.broadcast %11 : vector<8x1xf32> to vector<8x32xf32>
    %13 = arith.subf %1, %12 : vector<8x32xf32>
    %14 = arith.mulf %13, %13 : vector<8x32xf32>
    %cst_11 = arith.constant dense<0.000000e+00> : vector<8xf32>
    %15 = vector.multi_reduction <add>, %14, %cst_11 [1] : vector<8x32xf32> to vector<8xf32>
    %16 = vector.shape_cast %15 : vector<8xf32> to vector<8x1xf32>
    %cst_12 = arith.constant 0.0322580636 : f32
    %17 = vector.broadcast %cst_12 : f32 to vector<8x1xf32>
    %18 = arith.mulf %16, %17 : vector<8x1xf32>
    %19 = math.sqrt %18 : vector<8x1xf32>
    %cst_13 = arith.constant 9.99999997E-7 : f32
    %20 = vector.broadcast %cst_13 : f32 to vector<8x1xf32>
    %21 = arith.addf %19, %20 : vector<8x1xf32>
    %22 = vector.broadcast %21 : vector<8x1xf32> to vector<8x32xf32>
    %23 = arith.divf %13, %22 : vector<8x32xf32>
    %24 = vector.broadcast %6 : vector<1x32xf32> to vector<8x32xf32>
    %25 = arith.mulf %24, %23 : vector<8x32xf32>
    %26 = vector.broadcast %7 : vector<1x32xf32> to vector<8x32xf32>
    %27 = arith.addf %25, %26 : vector<8x32xf32>
    %28 = arith.truncf %27 : vector<8x32xf32> to vector<8x32xbf16>
    %c0_14 = arith.constant 0 : index
    %c0_15 = arith.constant 0 : index
    %29 = vector.load %arg5[%c0_14, %c0_15] : memref<32x96xbf16, #tpu.memory_space<vmem>>, vector<32x96xbf16>
    %cst_16 = arith.constant dense<0.000000e+00> : vector<8x96xf32>
    %30 = tpu.matmul %28, %29, %cst_16 {dimension_numbers = #tpu.dot_dimension_numbers<[1], [0], [0], [1], [0, 0, 1, 1], [], []>} : vector<8x32xbf16>, vector<32x96xbf16>, vector<8x96xf32> -> vector<8x96xf32>
    %c0_17 = arith.constant 0 : index
    %c0_18 = arith.constant 0 : index
    %31 = vector.load %arg6[%c0_17, %c0_18] : memref<1x96xf32, #tpu.memory_space<vmem>>, vector<1x96xf32>
    %32 = vector.broadcast %31 : vector<1x96xf32> to vector<8x96xf32>
    %33 = arith.addf %30, %32 : vector<8x96xf32>
    %c0_19 = arith.constant 0 : index
    %c0_20 = arith.constant 0 : index
    %34 = vector.load %arg8[%c0_19, %c0_20] : memref<1x32xf32, #tpu.memory_space<vmem>>, vector<1x32xf32>
    %35 = vector.broadcast %34 : vector<1x32xf32> to vector<8x32xf32>
    %36 = arith.addf %1, %35 : vector<8x32xf32>
    %37 = vector.extract_strided_slice %33 {offsets = [0, 0], sizes = [8, 8], strides = [1, 1]} : vector<8x96xf32> to vector<8x8xf32>
    %38 = vector.extract_strided_slice %33 {offsets = [0, 32], sizes = [8, 8], strides = [1, 1]} : vector<8x96xf32> to vector<8x8xf32>
    %39 = vector.extract_strided_slice %33 {offsets = [0, 64], sizes = [8, 8], strides = [1, 1]} : vector<8x96xf32> to vector<8x8xf32>
    %40 = arith.truncf %37 : vector<8x8xf32> to vector<8x8xbf16>
    %41 = arith.truncf %38 : vector<8x8xf32> to vector<8x8xbf16>
    %cst_21 = arith.constant dense<0.000000e+00> : vector<8x8xf32>
    %42 = tpu.matmul %40, %41, %cst_21 {dimension_numbers = #tpu.dot_dimension_numbers<[1], [1], [0], [0], [0, 0, 1, 0], [], []>} : vector<8x8xbf16>, vector<8x8xbf16>, vector<8x8xf32> -> vector<8x8xf32>
    %43 = vector.broadcast %5 : vector<1x8xf32> to vector<8x8xf32>
    %44 = arith.addf %42, %43 : vector<8x8xf32>
    %cst_22 = arith.constant dense<0xFF800000> : vector<8xf32>
    %45 = vector.multi_reduction <maximumf>, %44, %cst_22 [1] : vector<8x8xf32> to vector<8xf32>
    %46 = vector.shape_cast %45 : vector<8xf32> to vector<8x1xf32>
    %47 = vector.broadcast %46 : vector<8x1xf32> to vector<8x8xf32>
    %48 = arith.subf %44, %47 : vector<8x8xf32>
    %49 = math.exp %48 : vector<8x8xf32>
    %cst_23 = arith.constant dense<0.000000e+00> : vector<8xf32>
    %50 = vector.multi_reduction <add>, %49, %cst_23 [1] : vector<8x8xf32> to vector<8xf32>
    %51 = vector.shape_cast %50 : vector<8xf32> to vector<8x1xf32>
    %52 = tpu.reciprocal %51 {approx = true} : vector<8x1xf32> -> vector<8x1xf32>
    %53 = vector.broadcast %52 : vector<8x1xf32> to vector<8x8xf32>
    %54 = arith.mulf %49, %53 : vector<8x8xf32>
    %55 = arith.truncf %54 : vector<8x8xf32> to vector<8x8xbf16>
    %56 = arith.truncf %39 : vector<8x8xf32> to vector<8x8xbf16>
    %cst_24 = arith.constant dense<0.000000e+00> : vector<8x8xf32>
    %57 = tpu.matmul %55, %56, %cst_24 {dimension_numbers = #tpu.dot_dimension_numbers<[1], [0], [0], [1], [0, 0, 1, 1], [], []>} : vector<8x8xbf16>, vector<8x8xbf16>, vector<8x8xf32> -> vector<8x8xf32>
    %58 = arith.truncf %57 : vector<8x8xf32> to vector<8x8xbf16>
    %c0_25 = arith.constant 0 : index
    %c0_26 = arith.constant 0 : index
    %c0_27 = arith.constant 0 : index
    %59 = vector.load %arg7[%c0_25, %c0_26, %c0_27] : memref<4x8x32xbf16, #tpu.memory_space<vmem>>, vector<1x8x32xbf16>
    %60 = vector.shape_cast %59 : vector<1x8x32xbf16> to vector<8x32xbf16>
    %cst_28 = arith.constant dense<0.000000e+00> : vector<8x32xf32>
    %61 = tpu.matmul %58, %60, %cst_28 {dimension_numbers = #tpu.dot_dimension_numbers<[1], [0], [0], [1], [0, 0, 1, 1], [], []>} : vector<8x8xbf16>, vector<8x32xbf16>, vector<8x32xf32> -> vector<8x32xf32>
    %62 = arith.addf %36, %61 : vector<8x32xf32>
    %63 = vector.extract_strided_slice %33 {offsets = [0, 8], sizes = [8, 8], strides = [1, 1]} : vector<8x96xf32> to vector<8x8xf32>
    %64 = vector.extract_strided_slice %33 {offsets = [0, 40], sizes = [8, 8], strides = [1, 1]} : vector<8x96xf32> to vector<8x8xf32>
    %65 = vector.extract_strided_slice %33 {offsets = [0, 72], sizes = [8, 8], strides = [1, 1]} : vector<8x96xf32> to vector<8x8xf32>
    %66 = arith.truncf %63 : vector<8x8xf32> to vector<8x8xbf16>
    %67 = arith.truncf %64 : vector<8x8xf32> to vector<8x8xbf16>
    %cst_29 = arith.constant dense<0.000000e+00> : vector<8x8xf32>
    %68 = tpu.matmul %66, %67, %cst_29 {dimension_numbers = #tpu.dot_dimension_numbers<[1], [1], [0], [0], [0, 0, 1, 0], [], []>} : vector<8x8xbf16>, vector<8x8xbf16>, vector<8x8xf32> -> vector<8x8xf32>
    %69 = vector.broadcast %5 : vector<1x8xf32> to vector<8x8xf32>
    %70 = arith.addf %68, %69 : vector<8x8xf32>
    %cst_30 = arith.constant dense<0xFF800000> : vector<8xf32>
    %71 = vector.multi_reduction <maximumf>, %70, %cst_30 [1] : vector<8x8xf32> to vector<8xf32>
    %72 = vector.shape_cast %71 : vector<8xf32> to vector<8x1xf32>
    %73 = vector.broadcast %72 : vector<8x1xf32> to vector<8x8xf32>
    %74 = arith.subf %70, %73 : vector<8x8xf32>
    %75 = math.exp %74 : vector<8x8xf32>
    %cst_31 = arith.constant dense<0.000000e+00> : vector<8xf32>
    %76 = vector.multi_reduction <add>, %75, %cst_31 [1] : vector<8x8xf32> to vector<8xf32>
    %77 = vector.shape_cast %76 : vector<8xf32> to vector<8x1xf32>
    %78 = tpu.reciprocal %77 {approx = true} : vector<8x1xf32> -> vector<8x1xf32>
    %79 = vector.broadcast %78 : vector<8x1xf32> to vector<8x8xf32>
    %80 = arith.mulf %75, %79 : vector<8x8xf32>
    %81 = arith.truncf %80 : vector<8x8xf32> to vector<8x8xbf16>
    %82 = arith.truncf %65 : vector<8x8xf32> to vector<8x8xbf16>
    %cst_32 = arith.constant dense<0.000000e+00> : vector<8x8xf32>
    %83 = tpu.matmul %81, %82, %cst_32 {dimension_numbers = #tpu.dot_dimension_numbers<[1], [0], [0], [1], [0, 0, 1, 1], [], []>} : vector<8x8xbf16>, vector<8x8xbf16>, vector<8x8xf32> -> vector<8x8xf32>
    %84 = arith.truncf %83 : vector<8x8xf32> to vector<8x8xbf16>
    %c1 = arith.constant 1 : index
    %c0_33 = arith.constant 0 : index
    %c0_34 = arith.constant 0 : index
    %85 = vector.load %arg7[%c1, %c0_33, %c0_34] : memref<4x8x32xbf16, #tpu.memory_space<vmem>>, vector<1x8x32xbf16>
    %86 = vector.shape_cast %85 : vector<1x8x32xbf16> to vector<8x32xbf16>
    %cst_35 = arith.constant dense<0.000000e+00> : vector<8x32xf32>
    %87 = tpu.matmul %84, %86, %cst_35 {dimension_numbers = #tpu.dot_dimension_numbers<[1], [0], [0], [1], [0, 0, 1, 1], [], []>} : vector<8x8xbf16>, vector<8x32xbf16>, vector<8x32xf32> -> vector<8x32xf32>
    %88 = arith.addf %62, %87 : vector<8x32xf32>
    %89 = vector.extract_strided_slice %33 {offsets = [0, 16], sizes = [8, 8], strides = [1, 1]} : vector<8x96xf32> to vector<8x8xf32>
    %90 = vector.extract_strided_slice %33 {offsets = [0, 48], sizes = [8, 8], strides = [1, 1]} : vector<8x96xf32> to vector<8x8xf32>
    %91 = vector.extract_strided_slice %33 {offsets = [0, 80], sizes = [8, 8], strides = [1, 1]} : vector<8x96xf32> to vector<8x8xf32>
    %92 = arith.truncf %89 : vector<8x8xf32> to vector<8x8xbf16>
    %93 = arith.truncf %90 : vector<8x8xf32> to vector<8x8xbf16>
    %cst_36 = arith.constant dense<0.000000e+00> : vector<8x8xf32>
    %94 = tpu.matmul %92, %93, %cst_36 {dimension_numbers = #tpu.dot_dimension_numbers<[1], [1], [0], [0], [0, 0, 1, 0], [], []>} : vector<8x8xbf16>, vector<8x8xbf16>, vector<8x8xf32> -> vector<8x8xf32>
    %95 = vector.broadcast %5 : vector<1x8xf32> to vector<8x8xf32>
    %96 = arith.addf %94, %95 : vector<8x8xf32>
    %cst_37 = arith.constant dense<0xFF800000> : vector<8xf32>
    %97 = vector.multi_reduction <maximumf>, %96, %cst_37 [1] : vector<8x8xf32> to vector<8xf32>
    %98 = vector.shape_cast %97 : vector<8xf32> to vector<8x1xf32>
    %99 = vector.broadcast %98 : vector<8x1xf32> to vector<8x8xf32>
    %100 = arith.subf %96, %99 : vector<8x8xf32>
    %101 = math.exp %100 : vector<8x8xf32>
    %cst_38 = arith.constant dense<0.000000e+00> : vector<8xf32>
    %102 = vector.multi_reduction <add>, %101, %cst_38 [1] : vector<8x8xf32> to vector<8xf32>
    %103 = vector.shape_cast %102 : vector<8xf32> to vector<8x1xf32>
    %104 = tpu.reciprocal %103 {approx = true} : vector<8x1xf32> -> vector<8x1xf32>
    %105 = vector.broadcast %104 : vector<8x1xf32> to vector<8x8xf32>
    %106 = arith.mulf %101, %105 : vector<8x8xf32>
    %107 = arith.truncf %106 : vector<8x8xf32> to vector<8x8xbf16>
    %108 = arith.truncf %91 : vector<8x8xf32> to vector<8x8xbf16>
    %cst_39 = arith.constant dense<0.000000e+00> : vector<8x8xf32>
    %109 = tpu.matmul %107, %108, %cst_39 {dimension_numbers = #tpu.dot_dimension_numbers<[1], [0], [0], [1], [0, 0, 1, 1], [], []>} : vector<8x8xbf16>, vector<8x8xbf16>, vector<8x8xf32> -> vector<8x8xf32>
    %110 = arith.truncf %109 : vector<8x8xf32> to vector<8x8xbf16>
    %c2 = arith.constant 2 : index
    %c0_40 = arith.constant 0 : index
    %c0_41 = arith.constant 0 : index
    %111 = vector.load %arg7[%c2, %c0_40, %c0_41] : memref<4x8x32xbf16, #tpu.memory_space<vmem>>, vector<1x8x32xbf16>
    %112 = vector.shape_cast %111 : vector<1x8x32xbf16> to vector<8x32xbf16>
    %cst_42 = arith.constant dense<0.000000e+00> : vector<8x32xf32>
    %113 = tpu.matmul %110, %112, %cst_42 {dimension_numbers = #tpu.dot_dimension_numbers<[1], [0], [0], [1], [0, 0, 1, 1], [], []>} : vector<8x8xbf16>, vector<8x32xbf16>, vector<8x32xf32> -> vector<8x32xf32>
    %114 = arith.addf %88, %113 : vector<8x32xf32>
    %115 = vector.extract_strided_slice %33 {offsets = [0, 24], sizes = [8, 8], strides = [1, 1]} : vector<8x96xf32> to vector<8x8xf32>
    %116 = vector.extract_strided_slice %33 {offsets = [0, 56], sizes = [8, 8], strides = [1, 1]} : vector<8x96xf32> to vector<8x8xf32>
    %117 = vector.extract_strided_slice %33 {offsets = [0, 88], sizes = [8, 8], strides = [1, 1]} : vector<8x96xf32> to vector<8x8xf32>
    %118 = arith.truncf %115 : vector<8x8xf32> to vector<8x8xbf16>
    %119 = arith.truncf %116 : vector<8x8xf32> to vector<8x8xbf16>
    %cst_43 = arith.constant dense<0.000000e+00> : vector<8x8xf32>
    %120 = tpu.matmul %118, %119, %cst_43 {dimension_numbers = #tpu.dot_dimension_numbers<[1], [1], [0], [0], [0, 0, 1, 0], [], []>} : vector<8x8xbf16>, vector<8x8xbf16>, vector<8x8xf32> -> vector<8x8xf32>
    %121 = vector.broadcast %5 : vector<1x8xf32> to vector<8x8xf32>
    %122 = arith.addf %120, %121 : vector<8x8xf32>
    %cst_44 = arith.constant dense<0xFF800000> : vector<8xf32>
    %123 = vector.multi_reduction <maximumf>, %122, %cst_44 [1] : vector<8x8xf32> to vector<8xf32>
    %124 = vector.shape_cast %123 : vector<8xf32> to vector<8x1xf32>
    %125 = vector.broadcast %124 : vector<8x1xf32> to vector<8x8xf32>
    %126 = arith.subf %122, %125 : vector<8x8xf32>
    %127 = math.exp %126 : vector<8x8xf32>
    %cst_45 = arith.constant dense<0.000000e+00> : vector<8xf32>
    %128 = vector.multi_reduction <add>, %127, %cst_45 [1] : vector<8x8xf32> to vector<8xf32>
    %129 = vector.shape_cast %128 : vector<8xf32> to vector<8x1xf32>
    %130 = tpu.reciprocal %129 {approx = true} : vector<8x1xf32> -> vector<8x1xf32>
    %131 = vector.broadcast %130 : vector<8x1xf32> to vector<8x8xf32>
    %132 = arith.mulf %127, %131 : vector<8x8xf32>
    %133 = arith.truncf %132 : vector<8x8xf32> to vector<8x8xbf16>
    %134 = arith.truncf %117 : vector<8x8xf32> to vector<8x8xbf16>
    %cst_46 = arith.constant dense<0.000000e+00> : vector<8x8xf32>
    %135 = tpu.matmul %133, %134, %cst_46 {dimension_numbers = #tpu.dot_dimension_numbers<[1], [0], [0], [1], [0, 0, 1, 1], [], []>} : vector<8x8xbf16>, vector<8x8xbf16>, vector<8x8xf32> -> vector<8x8xf32>
    %136 = arith.truncf %135 : vector<8x8xf32> to vector<8x8xbf16>
    %c3 = arith.constant 3 : index
    %c0_47 = arith.constant 0 : index
    %c0_48 = arith.constant 0 : index
    %137 = vector.load %arg7[%c3, %c0_47, %c0_48] : memref<4x8x32xbf16, #tpu.memory_space<vmem>>, vector<1x8x32xbf16>
    %138 = vector.shape_cast %137 : vector<1x8x32xbf16> to vector<8x32xbf16>
    %cst_49 = arith.constant dense<0.000000e+00> : vector<8x32xf32>
    %139 = tpu.matmul %136, %138, %cst_49 {dimension_numbers = #tpu.dot_dimension_numbers<[1], [0], [0], [1], [0, 0, 1, 1], [], []>} : vector<8x8xbf16>, vector<8x32xbf16>, vector<8x32xf32> -> vector<8x32xf32>
    %140 = arith.addf %114, %139 : vector<8x32xf32>
    %c0_50 = arith.constant 0 : index
    %c0_51 = arith.constant 0 : index
    %141 = vector.load %arg9[%c0_50, %c0_51] : memref<1x32xf32, #tpu.memory_space<vmem>>, vector<1x32xf32>
    %c0_52 = arith.constant 0 : index
    %c0_53 = arith.constant 0 : index
    %142 = vector.load %arg10[%c0_52, %c0_53] : memref<1x32xf32, #tpu.memory_space<vmem>>, vector<1x32xf32>
    %cst_54 = arith.constant dense<0.000000e+00> : vector<8xf32>
    %143 = vector.multi_reduction <add>, %140, %cst_54 [1] : vector<8x32xf32> to vector<8xf32>
    %144 = vector.shape_cast %143 : vector<8xf32> to vector<8x1xf32>
    %cst_55 = arith.constant 3.200000e+01 : f32
    %145 = vector.broadcast %cst_55 : f32 to vector<8x1xf32>
    %146 = arith.divf %144, %145 : vector<8x1xf32>
    %147 = vector.broadcast %146 : vector<8x1xf32> to vector<8x32xf32>
    %148 = arith.subf %140, %147 : vector<8x32xf32>
    %149 = arith.mulf %148, %148 : vector<8x32xf32>
    %cst_56 = arith.constant dense<0.000000e+00> : vector<8xf32>
    %150 = vector.multi_reduction <add>, %149, %cst_56 [1] : vector<8x32xf32> to vector<8xf32>
    %151 = vector.shape_cast %150 : vector<8xf32> to vector<8x1xf32>
    %cst_57 = arith.constant 0.0322580636 : f32
    %152 = vector.broadcast %cst_57 : f32 to vector<8x1xf32>
    %153 = arith.mulf %151, %152 : vector<8x1xf32>
    %154 = math.sqrt %153 : vector<8x1xf32>
    %cst_58 = arith.constant 9.99999997E-7 : f32
    %155 = vector.broadcast %cst_58 : f32 to vector<8x1xf32>
    %156 = arith.addf %154, %155 : vector<8x1xf32>
    %157 = vector.broadcast %156 : vector<8x1xf32> to vector<8x32xf32>
    %158 = arith.divf %148, %157 : vector<8x32xf32>
    %159 = vector.broadcast %141 : vector<1x32xf32> to vector<8x32xf32>
    %160 = arith.mulf %159, %158 : vector<8x32xf32>
    %161 = vector.broadcast %142 : vector<1x32xf32> to vector<8x32xf32>
    %162 = arith.addf %160, %161 : vector<8x32xf32>
    %163 = arith.truncf %162 : vector<8x32xf32> to vector<8x32xbf16>
    %c0_59 = arith.constant 0 : index
    %c0_60 = arith.constant 0 : index
    %164 = vector.load %arg11[%c0_59, %c0_60] : memref<32x64xbf16, #tpu.memory_space<vmem>>, vector<32x64xbf16>
    %cst_61 = arith.constant dense<0.000000e+00> : vector<8x64xf32>
    %165 = tpu.matmul %163, %164, %cst_61 {dimension_numbers = #tpu.dot_dimension_numbers<[1], [0], [0], [1], [0, 0, 1, 1], [], []>} : vector<8x32xbf16>, vector<32x64xbf16>, vector<8x64xf32> -> vector<8x64xf32>
    %c0_62 = arith.constant 0 : index
    %c0_63 = arith.constant 0 : index
    %166 = vector.load %arg12[%c0_62, %c0_63] : memref<1x64xf32, #tpu.memory_space<vmem>>, vector<1x64xf32>
    %167 = vector.broadcast %166 : vector<1x64xf32> to vector<8x64xf32>
    %168 = arith.addf %165, %167 : vector<8x64xf32>
    %cst_64 = arith.constant 0.000000e+00 : f32
    %169 = vector.broadcast %cst_64 : f32 to vector<8x64xf32>
    %170 = arith.maximumf %168, %169 : vector<8x64xf32>
    %171 = arith.truncf %170 : vector<8x64xf32> to vector<8x64xbf16>
    %c0_65 = arith.constant 0 : index
    %c0_66 = arith.constant 0 : index
    %172 = vector.load %arg13[%c0_65, %c0_66] : memref<64x32xbf16, #tpu.memory_space<vmem>>, vector<64x32xbf16>
    %cst_67 = arith.constant dense<0.000000e+00> : vector<8x32xf32>
    %173 = tpu.matmul %171, %172, %cst_67 {dimension_numbers = #tpu.dot_dimension_numbers<[1], [0], [0], [1], [0, 0, 1, 1], [], []>} : vector<8x64xbf16>, vector<64x32xbf16>, vector<8x32xf32> -> vector<8x32xf32>
    %c0_68 = arith.constant 0 : index
    %c0_69 = arith.constant 0 : index
    %174 = vector.load %arg14[%c0_68, %c0_69] : memref<1x32xf32, #tpu.memory_space<vmem>>, vector<1x32xf32>
    %175 = vector.broadcast %174 : vector<1x32xf32> to vector<8x32xf32>
    %176 = arith.addf %173, %175 : vector<8x32xf32>
    %177 = arith.addf %176, %140 : vector<8x32xf32>
    %c0_70 = arith.constant 0 : index
    %c0_71 = arith.constant 0 : index
    %c0_72 = arith.constant 0 : index
    %178 = vector.load %arg15[%c0_70, %c0_71, %c0_72] : memref<1x8x32xf32, #tpu.memory_space<vmem>>, vector<1x8x32xf32>
    %179 = vector.shape_cast %178 : vector<1x8x32xf32> to vector<8x32xf32>
    %180 = vector.shape_cast %177 : vector<8x32xf32> to vector<1x8x32xf32>
    tpu.vector_store %arg15[%c0_70, %c0_71, %c0_72], %180 {strides = array<i32>} : memref<1x8x32xf32, #tpu.memory_space<vmem>>, vector<1x8x32xf32>,
    return
  }
  func.func @transform_0(%arg0: i32) -> (i32, i32, i32) {
    %c0_i32 = arith.constant 0 : i32
    %c0_i32_0 = arith.constant 0 : i32
    %c0_i32_1 = arith.constant 0 : i32
    return %arg0, %c0_i32, %c0_i32_0 : i32, i32, i32
  }
  func.func @transform_1(%arg0: i32) -> (i32, i32, i32) {
    %c0_i32 = arith.constant 0 : i32
    %c0_i32_0 = arith.constant 0 : i32
    %c0_i32_1 = arith.constant 0 : i32
    return %arg0, %c0_i32, %c0_i32_0 : i32, i32, i32
  }
  func.func @transform_2(%arg0: i32) -> (i32, i32) {
    %c0_i32 = arith.constant 0 : i32
    %c0_i32_0 = arith.constant 0 : i32
    %c0_i32_1 = arith.constant 0 : i32
    return %c0_i32, %c0_i32_0 : i32, i32
  }
  func.func @transform_3(%arg0: i32) -> (i32, i32) {
    %c0_i32 = arith.constant 0 : i32
    %c0_i32_0 = arith.constant 0 : i32
    %c0_i32_1 = arith.constant 0 : i32
    return %c0_i32, %c0_i32_0 : i32, i32
  }
  func.func @transform_4(%arg0: i32) -> (i32, i32) {
    %c0_i32 = arith.constant 0 : i32
    %c0_i32_0 = arith.constant 0 : i32
    %c0_i32_1 = arith.constant 0 : i32
    return %c0_i32, %c0_i32_0 : i32, i32
  }
  func.func @transform_5(%arg0: i32) -> (i32, i32) {
    %c0_i32 = arith.constant 0 : i32
    %c0_i32_0 = arith.constant 0 : i32
    %c0_i32_1 = arith.constant 0 : i32
    return %c0_i32, %c0_i32_0 : i32, i32
  }
  func.func @transform_6(%arg0: i32) -> (i32, i32, i32) {
    %c0_i32 = arith.constant 0 : i32
    %c0_i32_0 = arith.constant 0 : i32
    %c0_i32_1 = arith.constant 0 : i32
    %c0_i32_2 = arith.constant 0 : i32
    return %c0_i32, %c0_i32_0, %c0_i32_1 : i32, i32, i32
  }
  func.func @transform_7(%arg0: i32) -> (i32, i32) {
    %c0_i32 = arith.constant 0 : i32
    %c0_i32_0 = arith.constant 0 : i32
    %c0_i32_1 = arith.constant 0 : i32
    return %c0_i32, %c0_i32_0 : i32, i32
  }
  func.func @transform_8(%arg0: i32) -> (i32, i32) {
    %c0_i32 = arith.constant 0 : i32
    %c0_i32_0 = arith.constant 0 : i32
    %c0_i32_1 = arith.constant 0 : i32
    return %c0_i32, %c0_i32_0 : i32, i32
  }
  func.func @transform_9(%arg0: i32) -> (i32, i32) {
    %c0_i32 = arith.constant 0 : i32
    %c0_i32_0 = arith.constant 0 : i32
    %c0_i32_1 = arith.constant 0 : i32
    return %c0_i32, %c0_i32_0 : i32, i32
  }
  func.func @transform_10(%arg0: i32) -> (i32, i32) {
    %c0_i32 = arith.constant 0 : i32
    %c0_i32_0 = arith.constant 0 : i32
    %c0_i32_1 = arith.constant 0 : i32
    return %c0_i32, %c0_i32_0 : i32, i32
  }
  func.func @transform_11(%arg0: i32) -> (i32, i32) {
    %c0_i32 = arith.constant 0 : i32
    %c0_i32_0 = arith.constant 0 : i32
    %c0_i32_1 = arith.constant 0 : i32
    return %c0_i32, %c0_i32_0 : i32, i32
  }
  func.func @transform_12(%arg0: i32) -> (i32, i32) {
    %c0_i32 = arith.constant 0 : i32
    %c0_i32_0 = arith.constant 0 : i32
    %c0_i32_1 = arith.constant 0 : i32
    return %c0_i32, %c0_i32_0 : i32, i32
  }
  func.func @transform_13(%arg0: i32) -> (i32, i32) {
    %c0_i32 = arith.constant 0 : i32
    %c0_i32_0 = arith.constant 0 : i32
    %c0_i32_1 = arith.constant 0 : i32
    return %c0_i32, %c0_i32_0 : i32, i32
  }
  func.func @transform_14(%arg0: i32) -> (i32, i32, i32) {
    %c0_i32 = arith.constant 0 : i32
    %c0_i32_0 = arith.constant 0 : i32
    %c0_i32_1 = arith.constant 0 : i32
    return %arg0, %c0_i32, %c0_i32_0 : i32, i32, i32
  }
}

module attributes {stable_mosaic.version = 11 : i64} {
  func.func @encoder_layer_kernel(%arg0: i32, %arg1: memref<1x8x32xf32, #tpu.memory_space<vmem>>, %arg2: memref<1x1x8xf32, #tpu.memory_space<vmem>>, %arg3: memref<1x32xf32, #tpu.memory_space<vmem>>, %arg4: memref<1x32xf32, #tpu.memory_space<vmem>>, %arg5: memref<32x96xbf16, #tpu.memory_space<vmem>>, %arg6: memref<1x96xf32, #tpu.memory_space<vmem>>, %arg7: memref<4x8x32xbf16, #tpu.memory_space<vmem>>, %arg8: memref<1x32xf32, #tpu.memory_space<vmem>>, %arg9: memref<1x32xf32, #tpu.memory_space<vmem>>, %arg10: memref<1x32xf32, #tpu.memory_space<vmem>>, %arg11: memref<32x64xbf16, #tpu.memory_space<vmem>>, %arg12: memref<1x64xf32, #tpu.memory_space<vmem>>, %arg13: memref<64x32xbf16, #tpu.memory_space<vmem>>, %arg14: memref<1x32xf32, #tpu.memory_space<vmem>>, %arg15: memref<1x8x32xf32, #tpu.memory_space<vmem>>) attributes {dimension_semantics = [#tpu.dimension_semantics<parallel>], iteration_bounds = array<i64: 2>, scalar_prefetch = 0 : i64, scratch_operands = 0 : i64, tpu.core_type = #tpu.core_type<tc>, window_params = [{transform_indices = @transform_0, window_bounds = array<i64: 1, 8, 32>}, {transform_indices = @transform_1, window_bounds = array<i64: 1, 1, 8>}, {pipeline_mode = #tpu.pipeline_mode<synchronous>, transform_indices = @transform_2, window_bounds = array<i64: 1, 32>}, {pipeline_mode = #tpu.pipeline_mode<synchronous>, transform_indices = @transform_3, window_bounds = array<i64: 1, 32>}, {pipeline_mode = #tpu.pipeline_mode<synchronous>, transform_indices = @transform_4, window_bounds = array<i64: 32, 96>}, {pipeline_mode = #tpu.pipeline_mode<synchronous>, transform_indices = @transform_5, window_bounds = array<i64: 1, 96>}, {pipeline_mode = #tpu.pipeline_mode<synchronous>, transform_indices = @transform_6, window_bounds = array<i64: 4, 8, 32>}, {pipeline_mode = #tpu.pipeline_mode<synchronous>, transform_indices = @transform_7, window_bounds = array<i64: 1, 32>}, {pipeline_mode = #tpu.pipeline_mode<synchronous>, transform_indices = @transform_8, window_bounds = array<i64: 1, 32>}, {pipeline_mode = #tpu.pipeline_mode<synchronous>, transform_indices = @transform_9, window_bounds = array<i64: 1, 32>}, {pipeline_mode = #tpu.pipeline_mode<synchronous>, transform_indices = @transform_10, window_bounds = array<i64: 32, 64>}, {pipeline_mode = #tpu.pipeline_mode<synchronous>, transform_indices = @transform_11, window_bounds = array<i64: 1, 64>}, {pipeline_mode = #tpu.pipeline_mode<synchronous>, transform_indices = @transform_12, window_bounds = array<i64: 64, 32>}, {pipeline_mode = #tpu.pipeline_mode<synchronous>, transform_indices = @transform_13, window_bounds = array<i64: 1, 32>}, {transform_indices = @transform_14, window_bounds = array<i64: 1, 8, 32>}]} {
    %c0 = arith.constant 0 : index
    %c0_0 = arith.constant 0 : index
    %c0_1 = arith.constant 0 : index
    %0 = vector.load %arg1[%c0, %c0_0, %c0_1] : memref<1x8x32xf32, #tpu.memory_space<vmem>>, vector<1x8x32xf32>
    %1 = vector.shape_cast %0 : vector<1x8x32xf32> to vector<8x32xf32>
    %c0_2 = arith.constant 0 : index
    %c0_3 = arith.constant 0 : index
    %c0_4 = arith.constant 0 : index
    %2 = vector.load %arg2[%c0_2, %c0_3, %c0_4] : memref<1x1x8xf32, #tpu.memory_space<vmem>>, vector<1x1x8xf32>
    %3 = vector.shape_cast %2 : vector<1x1x8xf32> to vector<1x8xf32>
    %cst = arith.constant -9.99999984E+17 : f32
    %4 = vector.broadcast %cst : f32 to vector<1x8xf32>
    %5 = arith.mulf %3, %4 : vector<1x8xf32>
    %c0_5 = arith.constant 0 : index
    %c0_6 = arith.constant 0 : index
    %6 = vector.load %arg3[%c0_5, %c0_6] : memref<1x32xf32, #tpu.memory_space<vmem>>, vector<1x32xf32>
    %c0_7 = arith.constant 0 : index
    %c0_8 = arith.constant 0 : index
    %7 = vector.load %arg4[%c0_7, %c0_8] : memref<1x32xf32, #tpu.memory_space<vmem>>, vector<1x32xf32>
    %cst_9 = arith.constant dense<0.000000e+00> : vector<8xf32>
    %8 = vector.multi_reduction <add>, %1, %cst_9 [1] : vector<8x32xf32> to vector<8xf32>
    %9 = vector.shape_cast %8 : vector<8xf32> to vector<8x1xf32>
    %cst_10 = arith.constant 3.200000e+01 : f32
    %10 = vector.broadcast %cst_10 : f32 to vector<8x1xf32>
    %11 = arith.divf %9, %10 : vector<8x1xf32>
    %12 = vector.broadcast %11 : vector<8x1xf32> to vector<8x32xf32>
    %13 = arith.subf %1, %12 : vector<8x32xf32>
    %14 = arith.mulf %13, %13 : vector<8x32xf32>
    %cst_11 = arith.constant dense<0.000000e+00> : vector<8xf32>
    %15 = vector.multi_reduction <add>, %14, %cst_11 [1] : vector<8x32xf32> to vector<8xf32>
    %16 = vector.shape_cast %15 : vector<8xf32> to vector<8x1xf32>
    %cst_12 = arith.constant 0.0322580636 : f32
    %17 = vector.broadcast %cst_12 : f32 to vector<8x1xf32>
    %18 = arith.mulf %16, %17 : vector<8x1xf32>
    %19 = math.sqrt %18 : vector<8x1xf32>
    %cst_13 = arith.constant 9.99999997E-7 : f32
    %20 = vector.broadcast %cst_13 : f32 to vector<8x1xf32>
    %21 = arith.addf %19, %20 : vector<8x1xf32>
    %22 = vector.broadcast %21 : vector<8x1xf32> to vector<8x32xf32>
    %23 = arith.divf %13, %22 : vector<8x32xf32>
    %24 = vector.broadcast %6 : vector<1x32xf32> to vector<8x32xf32>
    %25 = arith.mulf %24, %23 : vector<8x32xf32>
    %26 = vector.broadcast %7 : vector<1x32xf32> to vector<8x32xf32>
    %27 = arith.addf %25, %26 : vector<8x32xf32>
    %28 = arith.truncf %27 : vector<8x32xf32> to vector<8x32xbf16>
    %c0_14 = arith.constant 0 : index
    %c0_15 = arith.constant 0 : index
    %29 = vector.load %arg5[%c0_14, %c0_15] : memref<32x96xbf16, #tpu.memory_space<vmem>>, vector<32x96xbf16>
    %cst_16 = arith.constant dense<0.000000e+00> : vector<8x96xf32>
    %30 = tpu.matmul %28, %29, %cst_16 {dimension_numbers = #tpu.dot_dimension_numbers<[1], [0], [0], [1], [0, 0, 1, 1], [], []>} : vector<8x32xbf16>, vector<32x96xbf16>, vector<8x96xf32> -> vector<8x96xf32>
    %c0_17 = arith.constant 0 : index
    %c0_18 = arith.constant 0 : index
    %31 = vector.load %arg6[%c0_17, %c0_18] : memref<1x96xf32, #tpu.memory_space<vmem>>, vector<1x96xf32>
    %32 = vector.broadcast %31 : vector<1x96xf32> to vector<8x96xf32>
    %33 = arith.addf %30, %32 : vector<8x96xf32>
    %c0_19 = arith.constant 0 : index
    %c0_20 = arith.constant 0 : index
    %34 = vector.load %arg8[%c0_19, %c0_20] : memref<1x32xf32, #tpu.memory_space<vmem>>, vector<1x32xf32>
    %35 = vector.broadcast %34 : vector<1x32xf32> to vector<8x32xf32>
    %36 = arith.addf %1, %35 : vector<8x32xf32>
    %37 = vector.extract_strided_slice %33 {offsets = [0, 0], sizes = [8, 8], strides = [1, 1]} : vector<8x96xf32> to vector<8x8xf32>
    %38 = vector.extract_strided_slice %33 {offsets = [0, 32], sizes = [8, 8], strides = [1, 1]} : vector<8x96xf32> to vector<8x8xf32>
    %39 = vector.extract_strided_slice %33 {offsets = [0, 64], sizes = [8, 8], strides = [1, 1]} : vector<8x96xf32> to vector<8x8xf32>
    %40 = arith.truncf %37 : vector<8x8xf32> to vector<8x8xbf16>
    %41 = arith.truncf %38 : vector<8x8xf32> to vector<8x8xbf16>
    %cst_21 = arith.constant dense<0.000000e+00> : vector<8x8xf32>
    %42 = tpu.matmul %40, %41, %cst_21 {dimension_numbers = #tpu.dot_dimension_numbers<[1], [1], [0], [0], [0, 0, 1, 0], [], []>} : vector<8x8xbf16>, vector<8x8xbf16>, vector<8x8xf32> -> vector<8x8xf32>
    %43 = vector.broadcast %5 : vector<1x8xf32> to vector<8x8xf32>
    %44 = arith.addf %42, %43 : vector<8x8xf32>
    %cst_22 = arith.constant dense<0xFF800000> : vector<8xf32>
    %45 = vector.multi_reduction <maximumf>, %44, %cst_22 [1] : vector<8x8xf32> to vector<8xf32>
    %46 = vector.shape_cast %45 : vector<8xf32> to vector<8x1xf32>
    %47 = vector.broadcast %46 : vector<8x1xf32> to vector<8x8xf32>
    %48 = arith.subf %44, %47 : vector<8x8xf32>
    %49 = math.exp %48 : vector<8x8xf32>
    %cst_23 = arith.constant dense<0.000000e+00> : vector<8xf32>
    %50 = vector.multi_reduction <add>, %49, %cst_23 [1] : vector<8x8xf32> to vector<8xf32>
    %51 = vector.shape_cast %50 : vector<8xf32> to vector<8x1xf32>
    %52 = tpu.reciprocal %51 {approx = true} : vector<8x1xf32> -> vector<8x1xf32>
    %53 = vector.broadcast %52 : vector<8x1xf32> to vector<8x8xf32>
    %54 = arith.mulf %49, %53 : vector<8x8xf32>
    %55 = arith.truncf %54 : vector<8x8xf32> to vector<8x8xbf16>
    %56 = arith.truncf %39 : vector<8x8xf32> to vector<8x8xbf16>
    %cst_24 = arith.constant dense<0.000000e+00> : vector<8x8xf32>
    %57 = tpu.matmul %55, %56, %cst_24 {dimension_numbers = #tpu.dot_dimension_numbers<[1], [0], [0], [1], [0, 0, 1, 1], [], []>} : vector<8x8xbf16>, vector<8x8xbf16>, vector<8x8xf32> -> vector<8x8xf32>
    %58 = arith.truncf %57 : vector<8x8xf32> to vector<8x8xbf16>
    %c0_25 = arith.constant 0 : index
    %c0_26 = arith.constant 0 : index
    %c0_27 = arith.constant 0 : index
    %59 = vector.load %arg7[%c0_25, %c0_26, %c0_27] : memref<4x8x32xbf16, #tpu.memory_space<vmem>>, vector<1x8x32xbf16>
    %60 = vector.shape_cast %59 : vector<1x8x32xbf16> to vector<8x32xbf16>
    %cst_28 = arith.constant dense<0.000000e+00> : vector<8x32xf32>
    %61 = tpu.matmul %58, %60, %cst_28 {dimension_numbers = #tpu.dot_dimension_numbers<[1], [0], [0], [1], [0, 0, 1, 1], [], []>} : vector<8x8xbf16>, vector<8x32xbf16>, vector<8x32xf32> -> vector<8x32xf32>
    %62 = arith.addf %36, %61 : vector<8x32xf32>
    %63 = vector.extract_strided_slice %33 {offsets = [0, 8], sizes = [8, 8], strides = [1, 1]} : vector<8x96xf32> to vector<8x8xf32>
    %64 = vector.extract_strided_slice %33 {offsets = [0, 40], sizes = [8, 8], strides = [1, 1]} : vector<8x96xf32> to vector<8x8xf32>
    %65 = vector.extract_strided_slice %33 {offsets = [0, 72], sizes = [8, 8], strides = [1, 1]} : vector<8x96xf32> to vector<8x8xf32>
    %66 = arith.truncf %63 : vector<8x8xf32> to vector<8x8xbf16>
    %67 = arith.truncf %64 : vector<8x8xf32> to vector<8x8xbf16>
    %cst_29 = arith.constant dense<0.000000e+00> : vector<8x8xf32>
    %68 = tpu.matmul %66, %67, %cst_29 {dimension_numbers = #tpu.dot_dimension_numbers<[1], [1], [0], [0], [0, 0, 1, 0], [], []>} : vector<8x8xbf16>, vector<8x8xbf16>, vector<8x8xf32> -> vector<8x8xf32>
    %69 = vector.broadcast %5 : vector<1x8xf32> to vector<8x8xf32>
    %70 = arith.addf %68, %69 : vector<8x8xf32>
    %cst_30 = arith.constant dense<0xFF800000> : vector<8xf32>
    %71 = vector.multi_reduction <maximumf>, %70, %cst_30 [1] : vector<8x8xf32> to vector<8xf32>
    %72 = vector.shape_cast %71 : vector<8xf32> to vector<8x1xf32>
    %73 = vector.broadcast %72 : vector<8x1xf32> to vector<8x8xf32>
    %74 = arith.subf %70, %73 : vector<8x8xf32>
    %75 = math.exp %74 : vector<8x8xf32>
    %cst_31 = arith.constant dense<0.000000e+00> : vector<8xf32>
    %76 = vector.multi_reduction <add>, %75, %cst_31 [1] : vector<8x8xf32> to vector<8xf32>
    %77 = vector.shape_cast %76 : vector<8xf32> to vector<8x1xf32>
    %78 = tpu.reciprocal %77 {approx = true} : vector<8x1xf32> -> vector<8x1xf32>
    %79 = vector.broadcast %78 : vector<8x1xf32> to vector<8x8xf32>
    %80 = arith.mulf %75, %79 : vector<8x8xf32>
    %81 = arith.truncf %80 : vector<8x8xf32> to vector<8x8xbf16>
    %82 = arith.truncf %65 : vector<8x8xf32> to vector<8x8xbf16>
    %cst_32 = arith.constant dense<0.000000e+00> : vector<8x8xf32>
    %83 = tpu.matmul %81, %82, %cst_32 {dimension_numbers = #tpu.dot_dimension_numbers<[1], [0], [0], [1], [0, 0, 1, 1], [], []>} : vector<8x8xbf16>, vector<8x8xbf16>, vector<8x8xf32> -> vector<8x8xf32>
    %84 = arith.truncf %83 : vector<8x8xf32> to vector<8x8xbf16>
    %c1 = arith.constant 1 : index
    %c0_33 = arith.constant 0 : index
    %c0_34 = arith.constant 0 : index
    %85 = vector.load %arg7[%c1, %c0_33, %c0_34] : memref<4x8x32xbf16, #tpu.memory_space<vmem>>, vector<1x8x32xbf16>
    %86 = vector.shape_cast %85 : vector<1x8x32xbf16> to vector<8x32xbf16>
    %cst_35 = arith.constant dense<0.000000e+00> : vector<8x32xf32>
    %87 = tpu.matmul %84, %86, %cst_35 {dimension_numbers = #tpu.dot_dimension_numbers<[1], [0], [0], [1], [0, 0, 1, 1], [], []>} : vector<8x8xbf16>, vector<8x32xbf16>, vector<8x32xf32> -> vector<8x32xf32>
    %88 = arith.addf %62, %87 : vector<8x32xf32>
    %89 = vector.extract_strided_slice %33 {offsets = [0, 16], sizes = [8, 8], strides = [1, 1]} : vector<8x96xf32> to vector<8x8xf32>
    %90 = vector.extract_strided_slice %33 {offsets = [0, 48], sizes = [8, 8], strides = [1, 1]} : vector<8x96xf32> to vector<8x8xf32>
    %91 = vector.extract_strided_slice %33 {offsets = [0, 80], sizes = [8, 8], strides = [1, 1]} : vector<8x96xf32> to vector<8x8xf32>
    %92 = arith.truncf %89 : vector<8x8xf32> to vector<8x8xbf16>
    %93 = arith.truncf %90 : vector<8x8xf32> to vector<8x8xbf16>
    %cst_36 = arith.constant dense<0.000000e+00> : vector<8x8xf32>
    %94 = tpu.matmul %92, %93, %cst_36 {dimension_numbers = #tpu.dot_dimension_numbers<[1], [1], [0], [0], [0, 0, 1, 0], [], []>} : vector<8x8xbf16>, vector<8x8xbf16>, vector<8x8xf32> -> vector<8x8xf32>
    %95 = vector.broadcast %5 : vector<1x8xf32> to vector<8x8xf32>
    %96 = arith.addf %94, %95 : vector<8x8xf32>
    %cst_37 = arith.constant dense<0xFF800000> : vector<8xf32>
    %97 = vector.multi_reduction <maximumf>, %96, %cst_37 [1] : vector<8x8xf32> to vector<8xf32>
    %98 = vector.shape_cast %97 : vector<8xf32> to vector<8x1xf32>
    %99 = vector.broadcast %98 : vector<8x1xf32> to vector<8x8xf32>
    %100 = arith.subf %96, %99 : vector<8x8xf32>
    %101 = math.exp %100 : vector<8x8xf32>
    %cst_38 = arith.constant dense<0.000000e+00> : vector<8xf32>
    %102 = vector.multi_reduction <add>, %101, %cst_38 [1] : vector<8x8xf32> to vector<8xf32>
    %103 = vector.shape_cast %102 : vector<8xf32> to vector<8x1xf32>
    %104 = tpu.reciprocal %103 {approx = true} : vector<8x1xf32> -> vector<8x1xf32>
    %105 = vector.broadcast %104 : vector<8x1xf32> to vector<8x8xf32>
    %106 = arith.mulf %101, %105 : vector<8x8xf32>
    %107 = arith.truncf %106 : vector<8x8xf32> to vector<8x8xbf16>
    %108 = arith.truncf %91 : vector<8x8xf32> to vector<8x8xbf16>
    %cst_39 = arith.constant dense<0.000000e+00> : vector<8x8xf32>
    %109 = tpu.matmul %107, %108, %cst_39 {dimension_numbers = #tpu.dot_dimension_numbers<[1], [0], [0], [1], [0, 0, 1, 1], [], []>} : vector<8x8xbf16>, vector<8x8xbf16>, vector<8x8xf32> -> vector<8x8xf32>
    %110 = arith.truncf %109 : vector<8x8xf32> to vector<8x8xbf16>
    %c2 = arith.constant 2 : index
    %c0_40 = arith.constant 0 : index
    %c0_41 = arith.constant 0 : index
    %111 = vector.load %arg7[%c2, %c0_40, %c0_41] : memref<4x8x32xbf16, #tpu.memory_space<vmem>>, vector<1x8x32xbf16>
    %112 = vector.shape_cast %111 : vector<1x8x32xbf16> to vector<8x32xbf16>
    %cst_42 = arith.constant dense<0.000000e+00> : vector<8x32xf32>
    %113 = tpu.matmul %110, %112, %cst_42 {dimension_numbers = #tpu.dot_dimension_numbers<[1], [0], [0], [1], [0, 0, 1, 1], [], []>} : vector<8x8xbf16>, vector<8x32xbf16>, vector<8x32xf32> -> vector<8x32xf32>
    %114 = arith.addf %88, %113 : vector<8x32xf32>
    %115 = vector.extract_strided_slice %33 {offsets = [0, 24], sizes = [8, 8], strides = [1, 1]} : vector<8x96xf32> to vector<8x8xf32>
    %116 = vector.extract_strided_slice %33 {offsets = [0, 56], sizes = [8, 8], strides = [1, 1]} : vector<8x96xf32> to vector<8x8xf32>
    %117 = vector.extract_strided_slice %33 {offsets = [0, 88], sizes = [8, 8], strides = [1, 1]} : vector<8x96xf32> to vector<8x8xf32>
    %118 = arith.truncf %115 : vector<8x8xf32> to vector<8x8xbf16>
    %119 = arith.truncf %116 : vector<8x8xf32> to vector<8x8xbf16>
    %cst_43 = arith.constant dense<0.000000e+00> : vector<8x8xf32>
    %120 = tpu.matmul %118, %119, %cst_43 {dimension_numbers = #tpu.dot_dimension_numbers<[1], [1], [0], [0], [0, 0, 1, 0], [], []>} : vector<8x8xbf16>, vector<8x8xbf16>, vector<8x8xf32> -> vector<8x8xf32>
    %121 = vector.broadcast %5 : vector<1x8xf32> to vector<8x8xf32>
    %122 = arith.addf %120, %121 : vector<8x8xf32>
    %cst_44 = arith.constant dense<0xFF800000> : vector<8xf32>
    %123 = vector.multi_reduction <maximumf>, %122, %cst_44 [1] : vector<8x8xf32> to vector<8xf32>
    %124 = vector.shape_cast %123 : vector<8xf32> to vector<8x1xf32>
    %125 = vector.broadcast %124 : vector<8x1xf32> to vector<8x8xf32>
    %126 = arith.subf %122, %125 : vector<8x8xf32>
    %127 = math.exp %126 : vector<8x8xf32>
    %cst_45 = arith.constant dense<0.000000e+00> : vector<8xf32>
    %128 = vector.multi_reduction <add>, %127, %cst_45 [1] : vector<8x8xf32> to vector<8xf32>
    %129 = vector.shape_cast %128 : vector<8xf32> to vector<8x1xf32>
    %130 = tpu.reciprocal %129 {approx = true} : vector<8x1xf32> -> vector<8x1xf32>
    %131 = vector.broadcast %130 : vector<8x1xf32> to vector<8x8xf32>
    %132 = arith.mulf %127, %131 : vector<8x8xf32>
    %133 = arith.truncf %132 : vector<8x8xf32> to vector<8x8xbf16>
    %134 = arith.truncf %117 : vector<8x8xf32> to vector<8x8xbf16>
    %cst_46 = arith.constant dense<0.000000e+00> : vector<8x8xf32>
    %135 = tpu.matmul %133, %134, %cst_46 {dimension_numbers = #tpu.dot_dimension_numbers<[1], [0], [0], [1], [0, 0, 1, 1], [], []>} : vector<8x8xbf16>, vector<8x8xbf16>, vector<8x8xf32> -> vector<8x8xf32>
    %136 = arith.truncf %135 : vector<8x8xf32> to vector<8x8xbf16>
    %c3 = arith.constant 3 : index
    %c0_47 = arith.constant 0 : index
    %c0_48 = arith.constant 0 : index
    %137 = vector.load %arg7[%c3, %c0_47, %c0_48] : memref<4x8x32xbf16, #tpu.memory_space<vmem>>, vector<1x8x32xbf16>
    %138 = vector.shape_cast %137 : vector<1x8x32xbf16> to vector<8x32xbf16>
    %cst_49 = arith.constant dense<0.000000e+00> : vector<8x32xf32>
    %139 = tpu.matmul %136, %138, %cst_49 {dimension_numbers = #tpu.dot_dimension_numbers<[1], [0], [0], [1], [0, 0, 1, 1], [], []>} : vector<8x8xbf16>, vector<8x32xbf16>, vector<8x32xf32> -> vector<8x32xf32>
    %140 = arith.addf %114, %139 : vector<8x32xf32>
    %c0_50 = arith.constant 0 : index
    %c0_51 = arith.constant 0 : index
    %141 = vector.load %arg9[%c0_50, %c0_51] : memref<1x32xf32, #tpu.memory_space<vmem>>, vector<1x32xf32>
    %c0_52 = arith.constant 0 : index
    %c0_53 = arith.constant 0 : index
    %142 = vector.load %arg10[%c0_52, %c0_53] : memref<1x32xf32, #tpu.memory_space<vmem>>, vector<1x32xf32>
    %cst_54 = arith.constant dense<0.000000e+00> : vector<8xf32>
    %143 = vector.multi_reduction <add>, %140, %cst_54 [1] : vector<8x32xf32> to vector<8xf32>
    %144 = vector.shape_cast %143 : vector<8xf32> to vector<8x1xf32>
    %cst_55 = arith.constant 3.200000e+01 : f32
    %145 = vector.broadcast %cst_55 : f32 to vector<8x1xf32>
    %146 = arith.divf %144, %145 : vector<8x1xf32>
    %147 = vector.broadcast %146 : vector<8x1xf32> to vector<8x32xf32>
    %148 = arith.subf %140, %147 : vector<8x32xf32>
    %149 = arith.mulf %148, %148 : vector<8x32xf32>
    %cst_56 = arith.constant dense<0.000000e+00> : vector<8xf32>
    %150 = vector.multi_reduction <add>, %149, %cst_56 [1] : vector<8x32xf32> to vector<8xf32>
    %151 = vector.shape_cast %150 : vector<8xf32> to vector<8x1xf32>
    %cst_57 = arith.constant 0.0322580636 : f32
    %152 = vector.broadcast %cst_57 : f32 to vector<8x1xf32>
    %153 = arith.mulf %151, %152 : vector<8x1xf32>
    %154 = math.sqrt %153 : vector<8x1xf32>
    %cst_58 = arith.constant 9.99999997E-7 : f32
    %155 = vector.broadcast %cst_58 : f32 to vector<8x1xf32>
    %156 = arith.addf %154, %155 : vector<8x1xf32>
    %157 = vector.broadcast %156 : vector<8x1xf32> to vector<8x32xf32>
    %158 = arith.divf %148, %157 : vector<8x32xf32>
    %159 = vector.broadcast %141 : vector<1x32xf32> to vector<8x32xf32>
    %160 = arith.mulf %159, %158 : vector<8x32xf32>
    %161 = vector.broadcast %142 : vector<1x32xf32> to vector<8x32xf32>
    %162 = arith.addf %160, %161 : vector<8x32xf32>
    %163 = arith.truncf %162 : vector<8x32xf32> to vector<8x32xbf16>
    %c0_59 = arith.constant 0 : index
    %c0_60 = arith.constant 0 : index
    %164 = vector.load %arg11[%c0_59, %c0_60] : memref<32x64xbf16, #tpu.memory_space<vmem>>, vector<32x64xbf16>
    %cst_61 = arith.constant dense<0.000000e+00> : vector<8x64xf32>
    %165 = tpu.matmul %163, %164, %cst_61 {dimension_numbers = #tpu.dot_dimension_numbers<[1], [0], [0], [1], [0, 0, 1, 1], [], []>} : vector<8x32xbf16>, vector<32x64xbf16>, vector<8x64xf32> -> vector<8x64xf32>
    %c0_62 = arith.constant 0 : index
    %c0_63 = arith.constant 0 : index
    %166 = vector.load %arg12[%c0_62, %c0_63] : memref<1x64xf32, #tpu.memory_space<vmem>>, vector<1x64xf32>
    %167 = vector.broadcast %166 : vector<1x64xf32> to vector<8x64xf32>
    %168 = arith.addf %165, %167 : vector<8x64xf32>
    %cst_64 = arith.constant 0.000000e+00 : f32
    %169 = vector.broadcast %cst_64 : f32 to vector<8x64xf32>
    %170 = arith.maximumf %168, %169 : vector<8x64xf32>
    %171 = arith.truncf %170 : vector<8x64xf32> to vector<8x64xbf16>
    %c0_65 = arith.constant 0 : index
    %c0_66 = arith.constant 0 : index
    %172 = vector.load %arg13[%c0_65, %c0_66] : memref<64x32xbf16, #tpu.memory_space<vmem>>, vector<64x32xbf16>
    %cst_67 = arith.constant dense<0.000000e+00> : vector<8x32xf32>
    %173 = tpu.matmul %171, %172, %cst_67 {dimension_numbers = #tpu.dot_dimension_numbers<[1], [0], [0], [1], [0, 0, 1, 1], [], []>} : vector<8x64xbf16>, vector<64x32xbf16>, vector<8x32xf32> -> vector<8x32xf32>
    %c0_68 = arith.constant 0 : index
    %c0_69 = arith.constant 0 : index
    %174 = vector.load %arg14[%c0_68, %c0_69] : memref<1x32xf32, #tpu.memory_space<vmem>>, vector<1x32xf32>
    %175 = vector.broadcast %174 : vector<1x32xf32> to vector<8x32xf32>
    %176 = arith.addf %173, %175 : vector<8x32xf32>
    %177 = arith.addf %176, %140 : vector<8x32xf32>
    %c0_70 = arith.constant 0 : index
    %c0_71 = arith.constant 0 : index
    %c0_72 = arith.constant 0 : index
    %178 = vector.load %arg15[%c0_70, %c0_71, %c0_72] : memref<1x8x32xf32, #tpu.memory_space<vmem>>, vector<1x8x32xf32>
    %179 = vector.shape_cast %178 : vector<1x8x32xf32> to vector<8x32xf32>
    %180 = vector.shape_cast %177 : vector<8x32xf32> to vector<1x8x32xf32>
    tpu.vector_store %arg15[%c0_70, %c0_71, %c0_72], %180 {strides = array<i32>} : memref<1x8x32xf32, #tpu.memory_space<vmem>>, vector<1x8x32xf32>,
    return
  }
  func.func @transform_0(%arg0: i32) -> (i32, i32, i32) {
    %c0_i32 = arith.constant 0 : i32
    %c0_i32_0 = arith.constant 0 : i32
    %c0_i32_1 = arith.constant 0 : i32
    return %arg0, %c0_i32, %c0_i32_0 : i32, i32, i32
  }
  func.func @transform_1(%arg0: i32) -> (i32, i32, i32) {
    %c0_i32 = arith.constant 0 : i32
    %c0_i32_0 = arith.constant 0 : i32
    %c0_i32_1 = arith.constant 0 : i32
    return %arg0, %c0_i32, %c0_i32_0 : i32, i32, i32
  }
  func.func @transform_2(%arg0: i32) -> (i32, i32) {
    %c0_i32 = arith.constant 0 : i32
    %c0_i32_0 = arith.constant 0 : i32
    %c0_i32_1 = arith.constant 0 : i32
    return %c0_i32, %c0_i32_0 : i32, i32
  }
  func.func @transform_3(%arg0: i32) -> (i32, i32) {
    %c0_i32 = arith.constant 0 : i32
    %c0_i32_0 = arith.constant 0 : i32
    %c0_i32_1 = arith.constant 0 : i32
    return %c0_i32, %c0_i32_0 : i32, i32
  }
  func.func @transform_4(%arg0: i32) -> (i32, i32) {
    %c0_i32 = arith.constant 0 : i32
    %c0_i32_0 = arith.constant 0 : i32
    %c0_i32_1 = arith.constant 0 : i32
    return %c0_i32, %c0_i32_0 : i32, i32
  }
  func.func @transform_5(%arg0: i32) -> (i32, i32) {
    %c0_i32 = arith.constant 0 : i32
    %c0_i32_0 = arith.constant 0 : i32
    %c0_i32_1 = arith.constant 0 : i32
    return %c0_i32, %c0_i32_0 : i32, i32
  }
  func.func @transform_6(%arg0: i32) -> (i32, i32, i32) {
    %c0_i32 = arith.constant 0 : i32
    %c0_i32_0 = arith.constant 0 : i32
    %c0_i32_1 = arith.constant 0 : i32
    %c0_i32_2 = arith.constant 0 : i32
    return %c0_i32, %c0_i32_0, %c0_i32_1 : i32, i32, i32
  }
  func.func @transform_7(%arg0: i32) -> (i32, i32) {
    %c0_i32 = arith.constant 0 : i32
    %c0_i32_0 = arith.constant 0 : i32
    %c0_i32_1 = arith.constant 0 : i32
    return %c0_i32, %c0_i32_0 : i32, i32
  }
  func.func @transform_8(%arg0: i32) -> (i32, i32) {
    %c0_i32 = arith.constant 0 : i32
    %c0_i32_0 = arith.constant 0 : i32
    %c0_i32_1 = arith.constant 0 : i32
    return %c0_i32, %c0_i32_0 : i32, i32
  }
  func.func @transform_9(%arg0: i32) -> (i32, i32) {
    %c0_i32 = arith.constant 0 : i32
    %c0_i32_0 = arith.constant 0 : i32
    %c0_i32_1 = arith.constant 0 : i32
    return %c0_i32, %c0_i32_0 : i32, i32
  }
  func.func @transform_10(%arg0: i32) -> (i32, i32) {
    %c0_i32 = arith.constant 0 : i32
    %c0_i32_0 = arith.constant 0 : i32
    %c0_i32_1 = arith.constant 0 : i32
    return %c0_i32, %c0_i32_0 : i32, i32
  }
  func.func @transform_11(%arg0: i32) -> (i32, i32) {
    %c0_i32 = arith.constant 0 : i32
    %c0_i32_0 = arith.constant 0 : i32
    %c0_i32_1 = arith.constant 0 : i32
    return %c0_i32, %c0_i32_0 : i32, i32
  }
  func.func @transform_12(%arg0: i32) -> (i32, i32) {
    %c0_i32 = arith.constant 0 : i32
    %c0_i32_0 = arith.constant 0 : i32
    %c0_i32_1 = arith.constant 0 : i32
    return %c0_i32, %c0_i32_0 : i32, i32
  }
  func.func @transform_13(%arg0: i32) -> (i32, i32) {
    %c0_i32 = arith.constant 0 : i32
    %c0_i32_0 = arith.constant 0 : i32
    %c0_i32_1 = arith.constant 0 : i32
    return %c0_i32, %c0_i32_0 : i32, i32
  }
  func.func @transform_14(%arg0: i32) -> (i32, i32, i32) {
    %c0_i32 = arith.constant 0 : i32
    %c0_i32_0 = arith.constant 0 : i32
    %c0_i32_1 = arith.constant 0 : i32
    return %arg0, %c0_i32, %c0_i32_0 : i32, i32, i32
  }
}

</mosaic_0001>

<llo_original>
// kernel: tpu_custom_call.1
$region0: #{tpu_custom_call.1}
  #allocation0 [shape = 'u32[]', space=smem, size = 0x4, offset = 0x4, fixed_abs, tag = 'smem constant byte address 0x4 - core index']
  #allocation1 [shape = 'u32[144,128]{1,0:T(1,128)}', space=vmem, size = 0x12000, scoped, tag = 'internal scratch']
  %s0 = inlined_call_operand.vmem [shape: f32[2,8,32], index: 0, kind: input, shape index: {}]
  %s1 = inlined_call_operand.vmem [shape: f32[2,1,8], index: 1, kind: input, shape index: {}]
  %s2 = inlined_call_operand.hbm [shape: f32[1,32], index: 2, kind: input, shape index: {}]
  %s3 = inlined_call_operand.hbm [shape: f32[1,32], index: 3, kind: input, shape index: {}]
  %s4 = inlined_call_operand.vmem [shape: bf16[32,96], index: 4, kind: input, shape index: {}]
  %s5 = inlined_call_operand.hbm [shape: f32[1,96], index: 5, kind: input, shape index: {}]
  %s6 = inlined_call_operand.vmem [shape: bf16[4,8,32], index: 6, kind: input, shape index: {}]
  %s7 = inlined_call_operand.hbm [shape: f32[1,32], index: 7, kind: input, shape index: {}]
  %s8 = inlined_call_operand.hbm [shape: f32[1,32], index: 8, kind: input, shape index: {}]
  %s9 = inlined_call_operand.hbm [shape: f32[1,32], index: 9, kind: input, shape index: {}]
  %s10 = inlined_call_operand.vmem [shape: bf16[32,64], index: 10, kind: input, shape index: {}]
  %s11 = inlined_call_operand.vmem [shape: f32[1,64], index: 11, kind: input, shape index: {}]
  %s12 = inlined_call_operand.vmem [shape: bf16[64,32], index: 12, kind: input, shape index: {}]
  %s13 = inlined_call_operand.vmem [shape: f32[1,32], index: 13, kind: input, shape index: {}]
  %s14 = inlined_call_operand.hbm [shape: f32[2,8,32], index: 14, kind: output, shape index: {}]
  %s15 = sld [smem:[#allocation0]]
  $region113: #{tpu_custom_call.1} parent=0
    _
  %s17 = ssub.s32 1, %s15
  %s18 = scalar_select 0, %s17, %s15
  $region1: #{tpu_custom_call.1} parent=0
    #allocation2 [shape = 'u8[512]{0}', space=vmem, size = 0x400, scoped, tag = 'input window, operand 2, single buffered']
    #allocation3 [shape = 's32[2]{0}', space=sflag, size = 0x8, scoped, tag = 'scoped memory for tpu_custom_call.1']
    #allocation4 [shape = 's32[2]{0}', space=sflag, size = 0x8, scoped, tag = 'scoped memory for tpu_custom_call.1']
    #allocation5 [shape = 'u8[512]{0}', space=vmem, size = 0x400, scoped, tag = 'input window, operand 3, single buffered']
    #allocation6 [shape = 's32[1]{0}', space=sflag, size = 0x4, scoped, tag = 'scoped memory for tpu_custom_call.1']
    #allocation7 [shape = 'u8[512]{0}', space=vmem, size = 0x400, scoped, tag = 'input window, operand 5, single buffered']
    #allocation8 [shape = 'u8[512]{0}', space=vmem, size = 0x400, scoped, tag = 'input window, operand 7, single buffered']
    #allocation9 [shape = 's32[1]{0}', space=sflag, size = 0x4, scoped, tag = 'scoped memory for tpu_custom_call.1']
    #allocation10 [shape = 'u8[512]{0}', space=vmem, size = 0x400, scoped, tag = 'input window, operand 8, single buffered']
    #allocation11 [shape = 'u8[512]{0}', space=vmem, size = 0x400, scoped, tag = 'input window, operand 9, single buffered']
    #allocation12 [shape = 's32[1]{0}', space=sflag, size = 0x4, scoped, tag = 'scoped memory for tpu_custom_call.1']
    #allocation13 [shape = 'u8[8192]{0}', space=vmem, size = 0x2000, scoped, tag = 'output window, operand 0']
    %19 = vsyncpa [#allocation3], 0
    %20 = vsyncpa [#allocation6], 0
    %21 = vsyncpa [#allocation9], 0
    %22 = vsyncpa [#allocation12], 0
    %23 = vsyncpa [#allocation4], 0
    %s24 = scalar_lea.sflag [#allocation4], 1
    %25 = vsyncpa %s24, 0
    loop: start=0, step=1, limit=4
    $region2: #{tpu_custom_call.1} parent=1 // loop_pre_header
      _
    $region3: #{tpu_custom_call.1} parent=1 // loop_header
      %s27 = sphi 0, %s31
      %p28 = scmp.ge.s32.totalorder %s27, 4
      %s37 = sphi 0, %s39
      %s40 = sphi 0, %s37
      %s41 = sphi 0, %s40
      %s57 = sphi 0, %s41
      %s63 = sphi 0, %s65
      %s66 = sphi 0, %s63
      %s67 = sphi 0, %s66
      %s83 = sphi 0, %s67
      %s87 = sphi 0, %s87
      %s89 = sphi 0, %s87
      %s90 = sphi 0, %s89
      %s104 = sphi 0, %s90
      %s108 = sphi 0, %s108
      %s110 = sphi 0, %s108
      %s111 = sphi 0, %s110
      %s125 = sphi 0, %s111
      %s129 = sphi 0, %s129
      %s131 = sphi 0, %s129
      %s132 = sphi 0, %s131
      %s146 = sphi 0, %s132
      %s150 = sphi 0, %s150
      %s152 = sphi 0, %s150
      %s153 = sphi 0, %s152
      %s167 = sphi 0, %s153
      %s171 = sphi 0, %s171
      %s173 = sphi 0, %s171
      %s174 = sphi 0, %s173
      %s188 = sphi 0, %s174
      %s192 = sphi 0, %s192
      %s194 = sphi 0, %s192
      %s195 = sphi 0, %s194
      %s209 = sphi 0, %s195
      %s213 = sphi 0, %s213
      %s215 = sphi 0, %s213
      %s216 = sphi 0, %s215
      %s230 = sphi 0, %s216
      %s234 = sphi 0, %s234
      %s236 = sphi 0, %s234
      %s237 = sphi 0, %s236
      %s251 = sphi 0, %s237
      %s255 = sphi 0, %s255
      %s257 = sphi 0, %s255
      %s258 = sphi 0, %s257
      %s272 = sphi 0, %s258
      %s276 = sphi 0, %s276
      %s278 = sphi 0, %s276
      %s279 = sphi 0, %s278
      %s293 = sphi 0, %s279
      %s297 = sphi 0, %s297
      %s299 = sphi 0, %s297
      %s300 = sphi 0, %s299
      %s314 = sphi 0, %s300
      %s318 = sphi 0, %s318
      %s320 = sphi 0, %s318
      %s321 = sphi 0, %s320
      %s335 = sphi 0, %s321
      %s341 = sphi 0, %s343
      %s344 = sphi 0, %s341
      %s345 = sphi 0, %s344
      %s361 = sphi 0, %s345
    $region4: #{tpu_custom_call.1} parent=1 // loop_header_branch
      %30 = sbr.rel (%p28) target = $region8
    $region5: #{tpu_custom_call.1} parent=1 // loop_body
      %s32 = ssub.s32 %s27, 1
      %s33 = ssub.s32 %s27, 2
      %s34 = sadd.s32 %s27, 1
      %s35 = ssub.s32 %s27, %s34
      %p36 = scmp.eq.s32.totalorder %s35, 0
      %s38 = sadd.s32 %s37, 1
      %s39 = scalar_select %p36, %s37, %s38
      %p42 = pneg %p36
      %p43 = scmp.eq.s32.totalorder %s27, 1
      %p44 = por %p42, %p43
      %p45 = scmp.ne.s32.totalorder %s37, %s40
      %p46 = scmp.eq.s32.totalorder %s27, 0
      %p47 = por %p45, %p46
      %p48 = scmp.ne.s32.totalorder %s37, %s40
      %p49 = scmp.eq.s32.totalorder %s32, 1
      %p50 = por %p48, %p49
      %p51 = scmp.ne.s32.totalorder %s40, %s41
      %p52 = scmp.eq.s32.totalorder %s32, 0
      %p53 = por %p51, %p52
      %p54 = scmp.ne.s32.totalorder %s40, %s41
      %p55 = scmp.eq.s32.totalorder %s33, 1
      %p56 = por %p54, %p55
      %p58 = scmp.ne.s32.totalorder %s41, %s57
      %p59 = scmp.eq.s32.totalorder %s33, 0
      %p60 = por %p58, %p59
      %s61 = ssub.s32 %s27, %s34
      %p62 = scmp.eq.s32.totalorder %s61, 0
      %s64 = sadd.s32 %s63, 1
      %s65 = scalar_select %p62, %s63, %s64
      %p68 = pneg %p62
      %p69 = scmp.eq.s32.totalorder %s27, 1
      %p70 = por %p68, %p69
      %p71 = scmp.ne.s32.totalorder %s63, %s66
      %p72 = scmp.eq.s32.totalorder %s27, 0
      %p73 = por %p71, %p72
      %p74 = scmp.ne.s32.totalorder %s63, %s66
      %p75 = scmp.eq.s32.totalorder %s32, 1
      %p76 = por %p74, %p75
      %p77 = scmp.ne.s32.totalorder %s66, %s67
      %p78 = scmp.eq.s32.totalorder %s32, 0
      %p79 = por %p77, %p78
      %p80 = scmp.ne.s32.totalorder %s66, %s67
      %p81 = scmp.eq.s32.totalorder %s33, 1
      %p82 = por %p80, %p81
      %p84 = scmp.ne.s32.totalorder %s67, %s83
      %p85 = scmp.eq.s32.totalorder %s33, 0
      %p86 = por %p84, %p85
      %s88 = sadd.s32 %s87, 1
      %p91 = scmp.eq.s32.totalorder %s27, 1
      %p92 = scmp.ne.s32.totalorder %s87, %s89
      %p93 = scmp.eq.s32.totalorder %s27, 0
      %p94 = por %p92, %p93
      %p95 = scmp.ne.s32.totalorder %s87, %s89
      %p96 = scmp.eq.s32.totalorder %s32, 1
      %p97 = por %p95, %p96
      %p98 = scmp.ne.s32.totalorder %s89, %s90
      %p99 = scmp.eq.s32.totalorder %s32, 0
      %p100 = por %p98, %p99
      %p101 = scmp.ne.s32.totalorder %s89, %s90
      %p102 = scmp.eq.s32.totalorder %s33, 1
      %p103 = por %p101, %p102
      %p105 = scmp.ne.s32.totalorder %s90, %s104
      %p106 = scmp.eq.s32.totalorder %s33, 0
      %p107 = por %p105, %p106
      %s109 = sadd.s32 %s108, 1
      %p112 = scmp.eq.s32.totalorder %s27, 1
      %p113 = scmp.ne.s32.totalorder %s108, %s110
      %p114 = scmp.eq.s32.totalorder %s27, 0
      %p115 = por %p113, %p114
      %p116 = scmp.ne.s32.totalorder %s108, %s110
      %p117 = scmp.eq.s32.totalorder %s32, 1
      %p118 = por %p116, %p117
      %p119 = scmp.ne.s32.totalorder %s110, %s111
      %p120 = scmp.eq.s32.totalorder %s32, 0
      %p121 = por %p119, %p120
      %p122 = scmp.ne.s32.totalorder %s110, %s111
      %p123 = scmp.eq.s32.totalorder %s33, 1
      %p124 = por %p122, %p123
      %p126 = scmp.ne.s32.totalorder %s111, %s125
      %p127 = scmp.eq.s32.totalorder %s33, 0
      %p128 = por %p126, %p127
      %s130 = sadd.s32 %s129, 1
      %p133 = scmp.eq.s32.totalorder %s27, 1
      %p134 = scmp.ne.s32.totalorder %s129, %s131
      %p135 = scmp.eq.s32.totalorder %s27, 0
      %p136 = por %p134, %p135
      %p137 = scmp.ne.s32.totalorder %s129, %s131
      %p138 = scmp.eq.s32.totalorder %s32, 1
      %p139 = por %p137, %p138
      %p140 = scmp.ne.s32.totalorder %s131, %s132
      %p141 = scmp.eq.s32.totalorder %s32, 0
      %p142 = por %p140, %p141
      %p143 = scmp.ne.s32.totalorder %s131, %s132
      %p144 = scmp.eq.s32.totalorder %s33, 1
      %p145 = por %p143, %p144
      %p147 = scmp.ne.s32.totalorder %s132, %s146
      %p148 = scmp.eq.s32.totalorder %s33, 0
      %p149 = por %p147, %p148
      %s151 = sadd.s32 %s150, 1
      %p154 = scmp.eq.s32.totalorder %s27, 1
      %p155 = scmp.ne.s32.totalorder %s150, %s152
      %p156 = scmp.eq.s32.totalorder %s27, 0
      %p157 = por %p155, %p156
      %p158 = scmp.ne.s32.totalorder %s150, %s152
      %p159 = scmp.eq.s32.totalorder %s32, 1
      %p160 = por %p158, %p159
      %p161 = scmp.ne.s32.totalorder %s152, %s153
      %p162 = scmp.eq.s32.totalorder %s32, 0
      %p163 = por %p161, %p162
      %p164 = scmp.ne.s32.totalorder %s152, %s153
      %p165 = scmp.eq.s32.totalorder %s33, 1
      %p166 = por %p164, %p165
      %p168 = scmp.ne.s32.totalorder %s153, %s167
      %p169 = scmp.eq.s32.totalorder %s33, 0
      %p170 = por %p168, %p169
      %s172 = sadd.s32 %s171, 1
      %p175 = scmp.eq.s32.totalorder %s27, 1
      %p176 = scmp.ne.s32.totalorder %s171, %s173
      %p177 = scmp.eq.s32.totalorder %s27, 0
      %p178 = por %p176, %p177
      %p179 = scmp.ne.s32.totalorder %s171, %s173
      %p180 = scmp.eq.s32.totalorder %s32, 1
      %p181 = por %p179, %p180
      %p182 = scmp.ne.s32.totalorder %s173, %s174
      %p183 = scmp.eq.s32.totalorder %s32, 0
      %p184 = por %p182, %p183
      %p185 = scmp.ne.s32.totalorder %s173, %s174
      %p186 = scmp.eq.s32.totalorder %s33, 1
      %p187 = por %p185, %p186
      %p189 = scmp.ne.s32.totalorder %s174, %s188
      %p190 = scmp.eq.s32.totalorder %s33, 0
      %p191 = por %p189, %p190
      %s193 = sadd.s32 %s192, 1
      %p196 = scmp.eq.s32.totalorder %s27, 1
      %p197 = scmp.ne.s32.totalorder %s192, %s194
      %p198 = scmp.eq.s32.totalorder %s27, 0
      %p199 = por %p197, %p198
      %p200 = scmp.ne.s32.totalorder %s192, %s194
      %p201 = scmp.eq.s32.totalorder %s32, 1
      %p202 = por %p200, %p201
      %p203 = scmp.ne.s32.totalorder %s194, %s195
      %p204 = scmp.eq.s32.totalorder %s32, 0
      %p205 = por %p203, %p204
      %p206 = scmp.ne.s32.totalorder %s194, %s195
      %p207 = scmp.eq.s32.totalorder %s33, 1
      %p208 = por %p206, %p207
      %p210 = scmp.ne.s32.totalorder %s195, %s209
      %p211 = scmp.eq.s32.totalorder %s33, 0
      %p212 = por %p210, %p211
      %s214 = sadd.s32 %s213, 1
      %p217 = scmp.eq.s32.totalorder %s27, 1
      %p218 = scmp.ne.s32.totalorder %s213, %s215
      %p219 = scmp.eq.s32.totalorder %s27, 0
      %p220 = por %p218, %p219
      %p221 = scmp.ne.s32.totalorder %s213, %s215
      %p222 = scmp.eq.s32.totalorder %s32, 1
      %p223 = por %p221, %p222
      %p224 = scmp.ne.s32.totalorder %s215, %s216
      %p225 = scmp.eq.s32.totalorder %s32, 0
      %p226 = por %p224, %p225
      %p227 = scmp.ne.s32.totalorder %s215, %s216
      %p228 = scmp.eq.s32.totalorder %s33, 1
      %p229 = por %p227, %p228
      %p231 = scmp.ne.s32.totalorder %s216, %s230
      %p232 = scmp.eq.s32.totalorder %s33, 0
      %p233 = por %p231, %p232
      %s235 = sadd.s32 %s234, 1
      %p238 = scmp.eq.s32.totalorder %s27, 1
      %p239 = scmp.ne.s32.totalorder %s234, %s236
      %p240 = scmp.eq.s32.totalorder %s27, 0
      %p241 = por %p239, %p240
      %p242 = scmp.ne.s32.totalorder %s234, %s236
      %p243 = scmp.eq.s32.totalorder %s32, 1
      %p244 = por %p242, %p243
      %p245 = scmp.ne.s32.totalorder %s236, %s237
      %p246 = scmp.eq.s32.totalorder %s32, 0
      %p247 = por %p245, %p246
      %p248 = scmp.ne.s32.totalorder %s236, %s237
      %p249 = scmp.eq.s32.totalorder %s33, 1
      %p250 = por %p248, %p249
      %p252 = scmp.ne.s32.totalorder %s237, %s251
      %p253 = scmp.eq.s32.totalorder %s33, 0
      %p254 = por %p252, %p253
      %s256 = sadd.s32 %s255, 1
      %p259 = scmp.eq.s32.totalorder %s27, 1
      %p260 = scmp.ne.s32.totalorder %s255, %s257
      %p261 = scmp.eq.s32.totalorder %s27, 0
      %p262 = por %p260, %p261
      %p263 = scmp.ne.s32.totalorder %s255, %s257
      %p264 = scmp.eq.s32.totalorder %s32, 1
      %p265 = por %p263, %p264
      %p266 = scmp.ne.s32.totalorder %s257, %s258
      %p267 = scmp.eq.s32.totalorder %s32, 0
      %p268 = por %p266, %p267
      %p269 = scmp.ne.s32.totalorder %s257, %s258
      %p270 = scmp.eq.s32.totalorder %s33, 1
      %p271 = por %p269, %p270
      %p273 = scmp.ne.s32.totalorder %s258, %s272
      %p274 = scmp.eq.s32.totalorder %s33, 0
      %p275 = por %p273, %p274
      %s277 = sadd.s32 %s276, 1
      %p280 = scmp.eq.s32.totalorder %s27, 1
      %p281 = scmp.ne.s32.totalorder %s276, %s278
      %p282 = scmp.eq.s32.totalorder %s27, 0
      %p283 = por %p281, %p282
      %p284 = scmp.ne.s32.totalorder %s276, %s278
      %p285 = scmp.eq.s32.totalorder %s32, 1
      %p286 = por %p284, %p285
      %p287 = scmp.ne.s32.totalorder %s278, %s279
      %p288 = scmp.eq.s32.totalorder %s32, 0
      %p289 = por %p287, %p288
      %p290 = scmp.ne.s32.totalorder %s278, %s279
      %p291 = scmp.eq.s32.totalorder %s33, 1
      %p292 = por %p290, %p291
      %p294 = scmp.ne.s32.totalorder %s279, %s293
      %p295 = scmp.eq.s32.totalorder %s33, 0
      %p296 = por %p294, %p295
      %s298 = sadd.s32 %s297, 1
      %p301 = scmp.eq.s32.totalorder %s27, 1
      %p302 = scmp.ne.s32.totalorder %s297, %s299
      %p303 = scmp.eq.s32.totalorder %s27, 0
      %p304 = por %p302, %p303
      %p305 = scmp.ne.s32.totalorder %s297, %s299
      %p306 = scmp.eq.s32.totalorder %s32, 1
      %p307 = por %p305, %p306
      %p308 = scmp.ne.s32.totalorder %s299, %s300
      %p309 = scmp.eq.s32.totalorder %s32, 0
      %p310 = por %p308, %p309
      %p311 = scmp.ne.s32.totalorder %s299, %s300
      %p312 = scmp.eq.s32.totalorder %s33, 1
      %p313 = por %p311, %p312
      %p315 = scmp.ne.s32.totalorder %s300, %s314
      %p316 = scmp.eq.s32.totalorder %s33, 0
      %p317 = por %p315, %p316
      %s319 = sadd.s32 %s318, 1
      %p322 = scmp.eq.s32.totalorder %s27, 1
      %p323 = scmp.ne.s32.totalorder %s318, %s320
      %p324 = scmp.eq.s32.totalorder %s27, 0
      %p325 = por %p323, %p324
      %p326 = scmp.ne.s32.totalorder %s318, %s320
      %p327 = scmp.eq.s32.totalorder %s32, 1
      %p328 = por %p326, %p327
      %p329 = scmp.ne.s32.totalorder %s320, %s321
      %p330 = scmp.eq.s32.totalorder %s32, 0
      %p331 = por %p329, %p330
      %p332 = scmp.ne.s32.totalorder %s320, %s321
      %p333 = scmp.eq.s32.totalorder %s33, 1
      %p334 = por %p332, %p333
      %p336 = scmp.ne.s32.totalorder %s321, %s335
      %p337 = scmp.eq.s32.totalorder %s33, 0
      %p338 = por %p336, %p337
      %s339 = ssub.s32 %s27, %s34
      %p340 = scmp.eq.s32.totalorder %s339, 0
      %s342 = sadd.s32 %s341, 1
      %s343 = scalar_select %p340, %s341, %s342
      %p346 = pneg %p340
      %p347 = scmp.eq.s32.totalorder %s27, 1
      %p348 = por %p346, %p347
      %p349 = scmp.ne.s32.totalorder %s341, %s344
      %p350 = scmp.eq.s32.totalorder %s27, 0
      %p351 = por %p349, %p350
      %p352 = scmp.ne.s32.totalorder %s341, %s344
      %p353 = scmp.eq.s32.totalorder %s32, 1
      %p354 = por %p352, %p353
      %p355 = scmp.ne.s32.totalorder %s344, %s345
      %p356 = scmp.eq.s32.totalorder %s32, 0
      %p357 = por %p355, %p356
      %p358 = scmp.ne.s32.totalorder %s344, %s345
      %p359 = scmp.eq.s32.totalorder %s33, 1
      %p360 = por %p358, %p359
      %p362 = scmp.ne.s32.totalorder %s345, %s361
      %p363 = scmp.eq.s32.totalorder %s33, 0
      %p364 = por %p362, %p363
      %p365 = scmp.le.s32.totalorder 1, %s27
      %p366 = scmp.lt.s32.totalorder %s27, 3
      %p367 = pnand %p365, %p366
      %p368 = pneg %p367
      // Predicated region
      $region9: #{tpu_custom_call.1} parent=5 // pred_check
        _
      $region10: #{tpu_custom_call.1} parent=5 // pred_check_branch
        %370 = sbr.rel (%p367) target = $region12
      $region11: #{tpu_custom_call.1} parent=5 // pred_region
        %s371 = ssub.s32 %s27, 1
        // Predicated region
        $region13: #{tpu_custom_call.1} parent=11 // pred_check
          %p372 = pneg %p100
        $region14: #{tpu_custom_call.1} parent=11 // pred_check_branch
          %374 = sbr.rel (%p372) target = $region16
        $region15: #{tpu_custom_call.1} parent=11 // pred_region
          %s376 = ssub.s32 16, 16
          %377 = vsyncadd [#allocation3], %s376
          %s379 = sshll.u32 [#allocation2], 4
          %s380 = int_to_ptr.vmem [resolvable:$true] %s379
          %382 = dma.hbm_to_vmem [thread:$0]  %s2, 16, %s380, [#allocation3]
        $region16: #{tpu_custom_call.1} parent=11 // pred_fallthru
          _
        // Predicated region
        $region17: #{tpu_custom_call.1} parent=11 // pred_check
          %p383 = pneg %p121
        $region18: #{tpu_custom_call.1} parent=11 // pred_check_branch
          %385 = sbr.rel (%p383) target = $region20
        $region19: #{tpu_custom_call.1} parent=11 // pred_region
          %s387 = ssub.s32 16, 16
          %388 = vsyncadd [#allocation6], %s387
          %s390 = sshll.u32 [#allocation5], 4
          %s391 = int_to_ptr.vmem [resolvable:$true] %s390
          %393 = dma.hbm_to_vmem [thread:$0]  %s3, 16, %s391, [#allocation6]
        $region20: #{tpu_custom_call.1} parent=11 // pred_fallthru
          _
        // Predicated region
        $region21: #{tpu_custom_call.1} parent=11 // pred_check
          %p394 = pneg %p142
        $region22: #{tpu_custom_call.1} parent=11 // pred_check_branch
          %396 = sbr.rel (%p394) target = $region24
        $region23: #{tpu_custom_call.1} parent=11 // pred_region
          _
        $region24: #{tpu_custom_call.1} parent=11 // pred_fallthru
          _
        // Predicated region
        $region25: #{tpu_custom_call.1} parent=11 // pred_check
          %p397 = pneg %p163
        $region26: #{tpu_custom_call.1} parent=11 // pred_check_branch
          %399 = sbr.rel (%p397) target = $region28
        $region27: #{tpu_custom_call.1} parent=11 // pred_region
          %s401 = ssub.s32 16, 16
          %402 = vsyncadd [#allocation6], %s401
          %s404 = sshll.u32 [#allocation7], 4
          %s405 = int_to_ptr.vmem [resolvable:$true] %s404
          %407 = dma.hbm_to_vmem [thread:$0]  %s5, 16, %s405, [#allocation6]
        $region28: #{tpu_custom_call.1} parent=11 // pred_fallthru
          _
        // Predicated region
        $region29: #{tpu_custom_call.1} parent=11 // pred_check
          %p408 = pneg %p184
        $region30: #{tpu_custom_call.1} parent=11 // pred_check_branch
          %410 = sbr.rel (%p408) target = $region32
        $region31: #{tpu_custom_call.1} parent=11 // pred_region
          _
        $region32: #{tpu_custom_call.1} parent=11 // pred_fallthru
          _
        // Predicated region
        $region33: #{tpu_custom_call.1} parent=11 // pred_check
          %p411 = pneg %p205
        $region34: #{tpu_custom_call.1} parent=11 // pred_check_branch
          %413 = sbr.rel (%p411) target = $region36
        $region35: #{tpu_custom_call.1} parent=11 // pred_region
          %s415 = ssub.s32 16, 16
          %416 = vsyncadd [#allocation9], %s415
          %s418 = sshll.u32 [#allocation8], 4
          %s419 = int_to_ptr.vmem [resolvable:$true] %s418
          %421 = dma.hbm_to_vmem [thread:$0]  %s7, 16, %s419, [#allocation9]
        $region36: #{tpu_custom_call.1} parent=11 // pred_fallthru
          _
        // Predicated region
        $region37: #{tpu_custom_call.1} parent=11 // pred_check
          %p422 = pneg %p226
        $region38: #{tpu_custom_call.1} parent=11 // pred_check_branch
          %424 = sbr.rel (%p422) target = $region40
        $region39: #{tpu_custom_call.1} parent=11 // pred_region
          %s426 = ssub.s32 16, 16
          %427 = vsyncadd [#allocation9], %s426
          %s429 = sshll.u32 [#allocation10], 4
          %s430 = int_to_ptr.vmem [resolvable:$true] %s429
          %432 = dma.hbm_to_vmem [thread:$0]  %s8, 16, %s430, [#allocation9]
        $region40: #{tpu_custom_call.1} parent=11 // pred_fallthru
          _
        // Predicated region
        $region41: #{tpu_custom_call.1} parent=11 // pred_check
          %p433 = pneg %p247
        $region42: #{tpu_custom_call.1} parent=11 // pred_check_branch
          %435 = sbr.rel (%p433) target = $region44
        $region43: #{tpu_custom_call.1} parent=11 // pred_region
          %s437 = ssub.s32 16, 16
          %438 = vsyncadd [#allocation12], %s437
          %s440 = sshll.u32 [#allocation11], 4
          %s441 = int_to_ptr.vmem [resolvable:$true] %s440
          %443 = dma.hbm_to_vmem [thread:$0]  %s9, 16, %s441, [#allocation12]
        $region44: #{tpu_custom_call.1} parent=11 // pred_fallthru
          _
        // Predicated region
        $region45: #{tpu_custom_call.1} parent=11 // pred_check
          %p444 = pneg %p268
        $region46: #{tpu_custom_call.1} parent=11 // pred_check_branch
          %446 = sbr.rel (%p444) target = $region48
        $region47: #{tpu_custom_call.1} parent=11 // pred_region
          _
        $region48: #{tpu_custom_call.1} parent=11 // pred_fallthru
          _
        // Predicated region
        $region49: #{tpu_custom_call.1} parent=11 // pred_check
          %p447 = pneg %p289
        $region50: #{tpu_custom_call.1} parent=11 // pred_check_branch
          %449 = sbr.rel (%p447) target = $region52
        $region51: #{tpu_custom_call.1} parent=11 // pred_region
          _
        $region52: #{tpu_custom_call.1} parent=11 // pred_fallthru
          _
        // Predicated region
        $region53: #{tpu_custom_call.1} parent=11 // pred_check
          %p450 = pneg %p310
        $region54: #{tpu_custom_call.1} parent=11 // pred_check_branch
          %452 = sbr.rel (%p450) target = $region56
        $region55: #{tpu_custom_call.1} parent=11 // pred_region
          _
        $region56: #{tpu_custom_call.1} parent=11 // pred_fallthru
          _
        // Predicated region
        $region57: #{tpu_custom_call.1} parent=11 // pred_check
          %p453 = pneg %p331
        $region58: #{tpu_custom_call.1} parent=11 // pred_check_branch
          %455 = sbr.rel (%p453) target = $region60
        $region59: #{tpu_custom_call.1} parent=11 // pred_region
          _
        $region60: #{tpu_custom_call.1} parent=11 // pred_fallthru
          _
      $region12: #{tpu_custom_call.1} parent=5 // pred_fallthru
        _
      %p456 = scmp.lt.s32.totalorder %s27, 2
      // Predicated region
      $region61: #{tpu_custom_call.1} parent=5 // pred_check
        %p457 = pneg %p456
      $region62: #{tpu_custom_call.1} parent=5 // pred_check_branch
        %459 = sbr.rel (%p457) target = $region64
      $region63: #{tpu_custom_call.1} parent=5 // pred_region
        // Predicated region
        $region65: #{tpu_custom_call.1} parent=63 // pred_check
          %p460 = pneg %p47
        $region66: #{tpu_custom_call.1} parent=63 // pred_check_branch
          %462 = sbr.rel (%p460) target = $region68
        $region67: #{tpu_custom_call.1} parent=63 // pred_region
          %p463 = scmp.lt.s32.totalorder %s27, 1
          %s464 = scalar_select %p463, %s27, 1
          %s465 = smul.addr %s464, 8
          %s466 = scalar_lea.vmem %s0, %s465
        $region68: #{tpu_custom_call.1} parent=63 // pred_fallthru
          _
        // Predicated region
        $region69: #{tpu_custom_call.1} parent=63 // pred_check
          %p467 = pneg %p73
        $region70: #{tpu_custom_call.1} parent=63 // pred_check_branch
          %469 = sbr.rel (%p467) target = $region72
        $region71: #{tpu_custom_call.1} parent=63 // pred_region
          %p470 = scmp.lt.s32.totalorder %s27, 1
          %s471 = scalar_select %p470, %s27, 1
          %s472 = scalar_lea.vmem %s1, %s471
        $region72: #{tpu_custom_call.1} parent=63 // pred_fallthru
          _
      $region64: #{tpu_custom_call.1} parent=5 // pred_fallthru
        _
      %p473 = scmp.le.s32.totalorder 1, %s27
      %p474 = scmp.lt.s32.totalorder %s27, 3
      %p475 = pnand %p473, %p474
      %p476 = pneg %p475
      // Predicated region
      $region73: #{tpu_custom_call.1} parent=5 // pred_check
        _
      $region74: #{tpu_custom_call.1} parent=5 // pred_check_branch
        %478 = sbr.rel (%p475) target = $region76
      $region75: #{tpu_custom_call.1} parent=5 // pred_region
        %s479 = ssub.s32 %s27, 1
        // Predicated region
        $region77: #{tpu_custom_call.1} parent=75 // pred_check
          %p480 = pneg %p100
        $region78: #{tpu_custom_call.1} parent=75 // pred_check_branch
          %482 = sbr.rel (%p480) target = $region80
        $region79: #{tpu_custom_call.1} parent=75 // pred_region
          %483 = dma.done [#allocation3], 16
        $region80: #{tpu_custom_call.1} parent=75 // pred_fallthru
          _
        // Predicated region
        $region81: #{tpu_custom_call.1} parent=75 // pred_check
          %p484 = pneg %p121
        $region82: #{tpu_custom_call.1} parent=75 // pred_check_branch
          %486 = sbr.rel (%p484) target = $region84
        $region83: #{tpu_custom_call.1} parent=75 // pred_region
          %487 = dma.done [#allocation6], 16
        $region84: #{tpu_custom_call.1} parent=75 // pred_fallthru
          _
        // Predicated region
        $region85: #{tpu_custom_call.1} parent=75 // pred_check
          %p488 = pneg %p163
        $region86: #{tpu_custom_call.1} parent=75 // pred_check_branch
          %490 = sbr.rel (%p488) target = $region88
        $region87: #{tpu_custom_call.1} parent=75 // pred_region
          %491 = dma.done [#allocation6], 16
        $region88: #{tpu_custom_call.1} parent=75 // pred_fallthru
          _
        // Predicated region
        $region89: #{tpu_custom_call.1} parent=75 // pred_check
          %p492 = pneg %p205
        $region90: #{tpu_custom_call.1} parent=75 // pred_check_branch
          %494 = sbr.rel (%p492) target = $region92
        $region91: #{tpu_custom_call.1} parent=75 // pred_region
          %495 = dma.done [#allocation9], 16
        $region92: #{tpu_custom_call.1} parent=75 // pred_fallthru
          _
        // Predicated region
        $region93: #{tpu_custom_call.1} parent=75 // pred_check
          %p496 = pneg %p226
        $region94: #{tpu_custom_call.1} parent=75 // pred_check_branch
          %498 = sbr.rel (%p496) target = $region96
        $region95: #{tpu_custom_call.1} parent=75 // pred_region
          %499 = dma.done [#allocation9], 16
        $region96: #{tpu_custom_call.1} parent=75 // pred_fallthru
          _
        // Predicated region
        $region97: #{tpu_custom_call.1} parent=75 // pred_check
          %p500 = pneg %p247
        $region98: #{tpu_custom_call.1} parent=75 // pred_check_branch
          %502 = sbr.rel (%p500) target = $region100
        $region99: #{tpu_custom_call.1} parent=75 // pred_region
          %503 = dma.done [#allocation12], 16
        $region100: #{tpu_custom_call.1} parent=75 // pred_fallthru
          _
        %p504 = scmp.lt.s32.totalorder %s32, 1
        %s505 = scalar_select %p504, %s32, 1
        %s506 = smul.addr %s505, 8
        %s507 = scalar_lea.vmem %s0, %s506
        %p508 = pneg %p53
        %p509 = pneg %p50
        %p510 = scmp.lt.s32.totalorder %s32, 1
        %s511 = scalar_select %p510, %s32, 1
        %s512 = scalar_lea.vmem %s1, %s511
        %p513 = pneg %p79
        %p514 = pneg %p76
        %p515 = pneg %p100
        %p516 = pneg %p97
        %p517 = pneg %p121
        %p518 = pneg %p118
        %p519 = pneg %p142
        %p520 = pneg %p139
        %p521 = pneg %p163
        %p522 = pneg %p160
        %p523 = pneg %p184
        %p524 = pneg %p181
        %p525 = pneg %p205
        %p526 = pneg %p202
        %p527 = pneg %p226
        %p528 = pneg %p223
        %p529 = pneg %p247
        %p530 = pneg %p244
        %p531 = pneg %p268
        %p532 = pneg %p265
        %p533 = pneg %p289
        %p534 = pneg %p286
        %p535 = pneg %p310
        %p536 = pneg %p307
        %p537 = pneg %p331
        %p538 = pneg %p328
        %p539 = pneg %p357
        %p540 = pneg %p354
        %s541 = sand.u32 %s344, 1
        %s542 = scalar_lea.sflag [#allocation4], %s541
        %s543 = sand.u32 %s344, 1
        %s544 = smul.addr %s543, 8
        %s545 = scalar_lea.vmem [#allocation13], %s544
        %p546 = scmp.lt.s32.totalorder %s32, 1
        %s547 = scalar_select %p546, %s32, 1
        %s548 = smul.addr %s547, 8
        %s549 = scalar_lea.vmem %s0, %s548
        %p550 = scmp.lt.s32.totalorder %s32, 1
        %s551 = scalar_select %p550, %s32, 1
        %s552 = scalar_lea.vmem %s1, %s551
        %v554 = vld [vmem:[%s549] sm:$0xff]
        %v555 = vld [vmem:[%s552] sm:$0x1]
        %v556 = vmul.f32 %v555, -1e+18
        %v557 = vld [vmem:[#allocation2] sm:$0x1]
        %v558 = vld [vmem:[#allocation5] sm:$0x1]
        %vm559 = vcmask 261120
        %v560 = vsel %vm559, %v554, 0.0
        %561 = vadd.xlane.f32.xlu0 %v560
        %v562 = vpop.xlane.xlu0 %561
        %v563 = vrcp.pop 32.0
        %v564 = vmul.f32 %v562, %v563
        %v565 = vsub.f32 %v554, %v564
        %v566 = vmul.f32 %v565, %v565
        %v567 = vsel %vm559, %v566, 0.0
        %568 = vadd.xlane.f32.xlu0 %v567
        %v569 = vpop.xlane.xlu0 %568
        %v570 = vmul.f32 %v569, 0.032258064
        %v571 = vrsqrt.pop %v570
        %v572 = vmul.f32 %v570, %v571
        %vm573 = vcmp.eq.f32.partialorder %v570, inf
        %v574 = vsel %vm573, %v570, %v572
        %vm575 = vcmp.eq.f32.partialorder %v570, 0.0
        %v576 = vand.u32 %v570, 2147483648
        %v577 = vsel %vm575, %v576, %v574
        %v578 = vadd.f32 %v577, 1e-06
        %v579 = vrcp.pop %v578
        %v580 = vmul.f32 %v565, %v579
        %v582 = vlaneseq
        %v583 = vshrl.u32 %v582, 7
        %v584 = vsub.s32 0, %v583
        %v585 = vrot.slane %v557, %v584
        %v587 = vmul.f32 %v585, %v580
        %v589 = vlaneseq
        %v590 = vshrl.u32 %v589, 7
        %v591 = vsub.s32 0, %v590
        %v592 = vrot.slane %v558, %v591
        %v594 = vadd.f32 %v587, %v592
        %v595 = vpack.c.bf16 %v594, %v594
        %v596 = vld [vmem:[%s4] sm:$0xf]
        %v597 = vld [vmem:[%s4 + $0x4] sm:$0xf]
        %v598 = vld [vmem:[%s4 + $0x8] sm:$0xf]
        %v599 = vld [vmem:[%s4 + $0xc] sm:$0xf]
        %v600 = vld [vmem:[#allocation7] sm:$0x1]
        %v602 = vlaneseq
        %v603 = vshrl.u32 %v602, 7
        %v604 = vsub.s32 0, %v603
        %v605 = vrot.slane %v600, %v604
        %v611 = vunpack.c.l.b16 %v596
        %v612 = vunpack.c.l.b16 %v597
        %v613 = vunpack.c.l.b16 %v598
        %v614 = vunpack.c.l.b16 %v599
        %v615 = vpack.c.b16 %v612, %v611
        %v616 = vpack.c.b16 %v614, %v613
        %v620 = vsel %vm559, %v595, 0
        %622 = vmatprep.subr.bf16.mxu0 0
        %623 = vmatpush1.bf16.msra.mxu0 %v615
        %624 = vmatprep.subr.bf16.mxu0 0
        %625 = vmatpush1.bf16.msra.mxu0 %v616
        %626 = vmatprep.subr.bf16.mxu0 0
        %627 = vmatpush1.bf16.msra.mxu0 0
        %628 = vmatprep.subr.bf16.mxu0 0
        %629 = vmatpush1.bf16.msra.mxu0 0
        %630 = vmatprep.subr.bf16.mxu0 0
        %631 = vmatpush1.bf16.msra.mxu0 0
        %632 = vmatprep.subr.bf16.mxu0 0
        %633 = vmatpush1.bf16.msra.mxu0 0
        %634 = vmatprep.subr.bf16.mxu0 0
        %635 = vmatpush1.bf16.msra.mxu0 0
        %636 = vmatprep.subr.bf16.mxu0 0
        %637 = vmatpush1.bf16.msra.mxu0 0
        %638 = vmatprep.subr.bf16.mxu0 0
        %639 = vmatpush1.bf16.msra.mxu0 0
        %640 = vmatprep.subr.bf16.mxu0 0
        %641 = vmatpush1.bf16.msra.mxu0 0
        %642 = vmatprep.subr.bf16.mxu0 0
        %643 = vmatpush1.bf16.msra.mxu0 0
        %644 = vmatprep.subr.bf16.mxu0 0
        %645 = vmatpush1.bf16.msra.mxu0 0
        %646 = vmatprep.subr.bf16.mxu0 0
        %647 = vmatpush1.bf16.msra.mxu0 0
        %648 = vmatprep.subr.bf16.mxu0 0
        %649 = vmatpush1.bf16.msra.mxu0 0
        %650 = vmatprep.subr.bf16.mxu0 0
        %651 = vmatpush1.bf16.msra.mxu0 0
        %652 = vmatprep.subr.bf16.mxu0 0
        %653 = vmatpush1.bf16.msra.mxu0 0
        %654 = vmatprep.mubr.bf16.mxu0 0
        %655 = vmatmul.mubr.bf16.gmra.mrb[0].mxu0 %v620
        %v656 = vpop.f32.mrb[0].mxu0
        %v657 = vadd.f32 %v605, %v656
        %v658 = vpop.f32.mrb[0].mxu0
        %v659 = vpop.f32.mrb[0].mxu0
        %v660 = vpop.f32.mrb[0].mxu0
        %661 = vdwg.mxu0
        %v662 = vld [vmem:[#allocation8] sm:$0x1]
        %v664 = vlaneseq
        %v665 = vshrl.u32 %v664, 7
        %v666 = vsub.s32 0, %v665
        %v667 = vrot.slane %v662, %v666
        %v669 = vadd.f32 %v554, %v667
        %v670 = vpack.c.bf16 %v657, %v657
        %v672 = vlaneseq
        %v673 = vshrl.u32 %v672, 7
        %v674 = vsub.s32 0, %v673
        %v675 = vrot.slane %v556, %v674
        %678 = vrot.lane.b32.xlu0 %v670, 96
        %v679 = vpop.permute.xlu0 %678
        %vm680 = vcmask 64512
        %v682 = vsel %vm680, %v670, 0
        %v685 = vsel %vm680, %v679, 0
        %687 = vmatprep.subr.bf16.mxu0 0
        %688 = vmatpush1.bf16.xpose.msra.mxu0 %v685
        %689 = vmatprep.subr.bf16.mxu0 0
        %690 = vmatpush1.bf16.xpose.msra.mxu0 0
        %691 = vmatprep.subr.bf16.mxu0 0
        %692 = vmatpush1.bf16.xpose.msra.mxu0 0
        %693 = vmatprep.subr.bf16.mxu0 0
        %694 = vmatpush1.bf16.xpose.msra.mxu0 0
        %695 = vmatprep.subr.bf16.mxu0 0
        %696 = vmatpush1.bf16.xpose.msra.mxu0 0
        %697 = vmatprep.subr.bf16.mxu0 0
        %698 = vmatpush1.bf16.xpose.msra.mxu0 0
        %699 = vmatprep.subr.bf16.mxu0 0
        %700 = vmatpush1.bf16.xpose.msra.mxu0 0
        %701 = vmatprep.subr.bf16.mxu0 0
        %702 = vmatpush1.bf16.xpose.msra.mxu0 0
        %703 = vmatprep.subr.bf16.mxu0 0
        %704 = vmatpush1.bf16.xpose.msra.mxu0 0
        %705 = vmatprep.subr.bf16.mxu0 0
        %706 = vmatpush1.bf16.xpose.msra.mxu0 0
        %707 = vmatprep.subr.bf16.mxu0 0
        %708 = vmatpush1.bf16.xpose.msra.mxu0 0
        %709 = vmatprep.subr.bf16.mxu0 0
        %710 = vmatpush1.bf16.xpose.msra.mxu0 0
        %711 = vmatprep.subr.bf16.mxu0 0
        %712 = vmatpush1.bf16.xpose.msra.mxu0 0
        %713 = vmatprep.subr.bf16.mxu0 0
        %714 = vmatpush1.bf16.xpose.msra.mxu0 0
        %715 = vmatprep.subr.bf16.mxu0 0
        %716 = vmatpush1.bf16.xpose.msra.mxu0 0
        %717 = vmatprep.subr.bf16.mxu0 0
        %718 = vmatpush1.bf16.xpose.msra.mxu0 0
        %719 = vmatprep.mubr.bf16.mxu0 0
        %720 = vmatmul.mubr.bf16.gmra.mrb[0].mxu0 %v682
        %v721 = vpop.f32.mrb[0].mxu0
        %v722 = vadd.f32 %v675, %v721
        %v723 = vpop.f32.mrb[0].mxu0
        %v724 = vpop.f32.mrb[0].mxu0
        %v725 = vpop.f32.mrb[0].mxu0
        %726 = vdwg.mxu0
        %v727 = vsel %vm680, %v722, -inf
        %728 = vmax.xlane.f32.xlu0 %v727
        %v729 = vpop.xlane.xlu0 %728
        %v730 = vsub.f32 %v722, %v729
        %v731 = vmul.f32 %v730, 1.442695
        %v732 = vpow.pop %v731
        %v733 = vsel %vm680, %v732, 0.0
        %734 = vadd.xlane.f32.xlu0 %v733
        %v735 = vpop.xlane.xlu0 %734
        %v736 = vrcp.pop %v735
        %v737 = vmul.f32 %v732, %v736
        %v738 = vpack.c.bf16 %v737, %v737
        %739 = vrot.lane.b32.xlu0 %v670, 64
        %v740 = vpop.permute.xlu0 %739
        %v742 = vsel %vm680, %v738, 0
        %vm744 = vcmask 1043456
        %v746 = vsel %vm744, %v740, 0
        %748 = vmatprep.subr.bf16.mxu0 0
        %749 = vmatpush1.bf16.msra.mxu0 %v746
        %750 = vmatprep.subr.bf16.mxu0 0
        %751 = vmatpush1.bf16.msra.mxu0 0
        %752 = vmatprep.subr.bf16.mxu0 0
        %753 = vmatpush1.bf16.msra.mxu0 0
        %754 = vmatprep.subr.bf16.mxu0 0
        %755 = vmatpush1.bf16.msra.mxu0 0
        %756 = vmatprep.subr.bf16.mxu0 0
        %757 = vmatpush1.bf16.msra.mxu0 0
        %758 = vmatprep.subr.bf16.mxu0 0
        %759 = vmatpush1.bf16.msra.mxu0 0
        %760 = vmatprep.subr.bf16.mxu0 0
        %761 = vmatpush1.bf16.msra.mxu0 0
        %762 = vmatprep.subr.bf16.mxu0 0
        %763 = vmatpush1.bf16.msra.mxu0 0
        %764 = vmatprep.subr.bf16.mxu0 0
        %765 = vmatpush1.bf16.msra.mxu0 0
        %766 = vmatprep.subr.bf16.mxu0 0
        %767 = vmatpush1.bf16.msra.mxu0 0
        %768 = vmatprep.subr.bf16.mxu0 0
        %769 = vmatpush1.bf16.msra.mxu0 0
        %770 = vmatprep.subr.bf16.mxu0 0
        %771 = vmatpush1.bf16.msra.mxu0 0
        %772 = vmatprep.subr.bf16.mxu0 0
        %773 = vmatpush1.bf16.msra.mxu0 0
        %774 = vmatprep.subr.bf16.mxu0 0
        %775 = vmatpush1.bf16.msra.mxu0 0
        %776 = vmatprep.subr.bf16.mxu0 0
        %777 = vmatpush1.bf16.msra.mxu0 0
        %778 = vmatprep.subr.bf16.mxu0 0
        %779 = vmatpush1.bf16.msra.mxu0 0
        %780 = vmatprep.mubr.bf16.mxu0 0
        %781 = vmatmul.mubr.bf16.gmra.mrb[0].mxu0 %v742
        %v782 = vpop.f32.mrb[0].mxu0
        %v783 = vadd.f32 0.0, %v782
        %v784 = vpop.f32.mrb[0].mxu0
        %v785 = vpop.f32.mrb[0].mxu0
        %v786 = vpop.f32.mrb[0].mxu0
        %787 = vdwg.mxu0
        %v788 = vpack.c.bf16 %v783, %v783
        %v789 = vld [vmem:[%s6] sm:$0xf]
        %v791 = vsel %vm680, %v788, 0
        %v794 = vsel %vm744, %v789, 0
        %796 = vmatprep.subr.bf16.mxu0 0
        %797 = vmatpush1.bf16.msra.mxu0 %v794
        %798 = vmatprep.subr.bf16.mxu0 0
        %799 = vmatpush1.bf16.msra.mxu0 0
        %800 = vmatprep.subr.bf16.mxu0 0
        %801 = vmatpush1.bf16.msra.mxu0 0
        %802 = vmatprep.subr.bf16.mxu0 0
        %803 = vmatpush1.bf16.msra.mxu0 0
        %804 = vmatprep.subr.bf16.mxu0 0
        %805 = vmatpush1.bf16.msra.mxu0 0
        %806 = vmatprep.subr.bf16.mxu0 0
        %807 = vmatpush1.bf16.msra.mxu0 0
        %808 = vmatprep.subr.bf16.mxu0 0
        %809 = vmatpush1.bf16.msra.mxu0 0
        %810 = vmatprep.subr.bf16.mxu0 0
        %811 = vmatpush1.bf16.msra.mxu0 0
        %812 = vmatprep.subr.bf16.mxu0 0
        %813 = vmatpush1.bf16.msra.mxu0 0
        %814 = vmatprep.subr.bf16.mxu0 0
        %815 = vmatpush1.bf16.msra.mxu0 0
        %816 = vmatprep.subr.bf16.mxu0 0
        %817 = vmatpush1.bf16.msra.mxu0 0
        %818 = vmatprep.subr.bf16.mxu0 0
        %819 = vmatpush1.bf16.msra.mxu0 0
        %820 = vmatprep.subr.bf16.mxu0 0
        %821 = vmatpush1.bf16.msra.mxu0 0
        %822 = vmatprep.subr.bf16.mxu0 0
        %823 = vmatpush1.bf16.msra.mxu0 0
        %824 = vmatprep.subr.bf16.mxu0 0
        %825 = vmatpush1.bf16.msra.mxu0 0
        %826 = vmatprep.subr.bf16.mxu0 0
        %827 = vmatpush1.bf16.msra.mxu0 0
        %828 = vmatprep.mubr.bf16.mxu0 0
        %829 = vmatmul.mubr.bf16.gmra.mrb[0].mxu0 %v791
        %v830 = vpop.f32.mrb[0].mxu0
        %v831 = vadd.f32 0.0, %v830
        %v832 = vpop.f32.mrb[0].mxu0
        %v833 = vpop.f32.mrb[0].mxu0
        %v834 = vpop.f32.mrb[0].mxu0
        %835 = vdwg.mxu0
        %v836 = vadd.f32 %v669, %v831
        %837 = vrot.lane.b32.xlu0 %v670, 120
        %v838 = vpop.permute.xlu0 %837
        %839 = vrot.lane.b32.xlu0 %v670, 88
        %v840 = vpop.permute.xlu0 %839
        %v842 = vsel %vm680, %v838, 0
        %v845 = vsel %vm680, %v840, 0
        %847 = vmatprep.subr.bf16.mxu0 0
        %848 = vmatpush1.bf16.xpose.msra.mxu0 %v845
        %849 = vmatprep.subr.bf16.mxu0 0
        %850 = vmatpush1.bf16.xpose.msra.mxu0 0
        %851 = vmatprep.subr.bf16.mxu0 0
        %852 = vmatpush1.bf16.xpose.msra.mxu0 0
        %853 = vmatprep.subr.bf16.mxu0 0
        %854 = vmatpush1.bf16.xpose.msra.mxu0 0
        %855 = vmatprep.subr.bf16.mxu0 0
        %856 = vmatpush1.bf16.xpose.msra.mxu0 0
        %857 = vmatprep.subr.bf16.mxu0 0
        %858 = vmatpush1.bf16.xpose.msra.mxu0 0
        %859 = vmatprep.subr.bf16.mxu0 0
        %860 = vmatpush1.bf16.xpose.msra.mxu0 0
        %861 = vmatprep.subr.bf16.mxu0 0
        %862 = vmatpush1.bf16.xpose.msra.mxu0 0
        %863 = vmatprep.subr.bf16.mxu0 0
        %864 = vmatpush1.bf16.xpose.msra.mxu0 0
        %865 = vmatprep.subr.bf16.mxu0 0
        %866 = vmatpush1.bf16.xpose.msra.mxu0 0
        %867 = vmatprep.subr.bf16.mxu0 0
        %868 = vmatpush1.bf16.xpose.msra.mxu0 0
        %869 = vmatprep.subr.bf16.mxu0 0
        %870 = vmatpush1.bf16.xpose.msra.mxu0 0
        %871 = vmatprep.subr.bf16.mxu0 0
        %872 = vmatpush1.bf16.xpose.msra.mxu0 0
        %873 = vmatprep.subr.bf16.mxu0 0
        %874 = vmatpush1.bf16.xpose.msra.mxu0 0
        %875 = vmatprep.subr.bf16.mxu0 0
        %876 = vmatpush1.bf16.xpose.msra.mxu0 0
        %877 = vmatprep.subr.bf16.mxu0 0
        %878 = vmatpush1.bf16.xpose.msra.mxu0 0
        %879 = vmatprep.mubr.bf16.mxu0 0
        %880 = vmatmul.mubr.bf16.gmra.mrb[0].mxu0 %v842
        %v881 = vpop.f32.mrb[0].mxu0
        %v882 = vadd.f32 %v675, %v881
        %v883 = vpop.f32.mrb[0].mxu0
        %v884 = vpop.f32.mrb[0].mxu0
        %v885 = vpop.f32.mrb[0].mxu0
        %886 = vdwg.mxu0
        %v887 = vsel %vm680, %v882, -inf
        %888 = vmax.xlane.f32.xlu0 %v887
        %v889 = vpop.xlane.xlu0 %888
        %v890 = vsub.f32 %v882, %v889
        %v891 = vmul.f32 %v890, 1.442695
        %v892 = vpow.pop %v891
        %v893 = vsel %vm680, %v892, 0.0
        %894 = vadd.xlane.f32.xlu0 %v893
        %v895 = vpop.xlane.xlu0 %894
        %v896 = vrcp.pop %v895
        %v897 = vmul.f32 %v892, %v896
        %v898 = vpack.c.bf16 %v897, %v897
        %899 = vrot.lane.b32.xlu0 %v670, 56
        %v900 = vpop.permute.xlu0 %899
        %v902 = vsel %vm680, %v898, 0
        %v905 = vsel %vm744, %v900, 0
        %907 = vmatprep.subr.bf16.mxu0 0
        %908 = vmatpush1.bf16.msra.mxu0 %v905
        %909 = vmatprep.subr.bf16.mxu0 0
        %910 = vmatpush1.bf16.msra.mxu0 0
        %911 = vmatprep.subr.bf16.mxu0 0
        %912 = vmatpush1.bf16.msra.mxu0 0
        %913 = vmatprep.subr.bf16.mxu0 0
        %914 = vmatpush1.bf16.msra.mxu0 0
        %915 = vmatprep.subr.bf16.mxu0 0
        %916 = vmatpush1.bf16.msra.mxu0 0
        %917 = vmatprep.subr.bf16.mxu0 0
        %918 = vmatpush1.bf16.msra.mxu0 0
        %919 = vmatprep.subr.bf16.mxu0 0
        %920 = vmatpush1.bf16.msra.mxu0 0
        %921 = vmatprep.subr.bf16.mxu0 0
        %922 = vmatpush1.bf16.msra.mxu0 0
        %923 = vmatprep.subr.bf16.mxu0 0
        %924 = vmatpush1.bf16.msra.mxu0 0
        %925 = vmatprep.subr.bf16.mxu0 0
        %926 = vmatpush1.bf16.msra.mxu0 0
        %927 = vmatprep.subr.bf16.mxu0 0
        %928 = vmatpush1.bf16.msra.mxu0 0
        %929 = vmatprep.subr.bf16.mxu0 0
        %930 = vmatpush1.bf16.msra.mxu0 0
        %931 = vmatprep.subr.bf16.mxu0 0
        %932 = vmatpush1.bf16.msra.mxu0 0
        %933 = vmatprep.subr.bf16.mxu0 0
        %934 = vmatpush1.bf16.msra.mxu0 0
        %935 = vmatprep.subr.bf16.mxu0 0
        %936 = vmatpush1.bf16.msra.mxu0 0
        %937 = vmatprep.subr.bf16.mxu0 0
        %938 = vmatpush1.bf16.msra.mxu0 0
        %939 = vmatprep.mubr.bf16.mxu0 0
        %940 = vmatmul.mubr.bf16.gmra.mrb[0].mxu0 %v902
        %v941 = vpop.f32.mrb[0].mxu0
        %v942 = vadd.f32 0.0, %v941
        %v943 = vpop.f32.mrb[0].mxu0
        %v944 = vpop.f32.mrb[0].mxu0
        %v945 = vpop.f32.mrb[0].mxu0
        %946 = vdwg.mxu0
        %v947 = vpack.c.bf16 %v942, %v942
        %s948 = scalar_lea.vmem %s6, 4
        %v949 = vld [vmem:[%s948] sm:$0xf]
        %v951 = vsel %vm680, %v947, 0
        %v954 = vsel %vm744, %v949, 0
        %956 = vmatprep.subr.bf16.mxu0 0
        %957 = vmatpush1.bf16.msra.mxu0 %v954
        %958 = vmatprep.subr.bf16.mxu0 0
        %959 = vmatpush1.bf16.msra.mxu0 0
        %960 = vmatprep.subr.bf16.mxu0 0
        %961 = vmatpush1.bf16.msra.mxu0 0
        %962 = vmatprep.subr.bf16.mxu0 0
        %963 = vmatpush1.bf16.msra.mxu0 0
        %964 = vmatprep.subr.bf16.mxu0 0
        %965 = vmatpush1.bf16.msra.mxu0 0
        %966 = vmatprep.subr.bf16.mxu0 0
        %967 = vmatpush1.bf16.msra.mxu0 0
        %968 = vmatprep.subr.bf16.mxu0 0
        %969 = vmatpush1.bf16.msra.mxu0 0
        %970 = vmatprep.subr.bf16.mxu0 0
        %971 = vmatpush1.bf16.msra.mxu0 0
        %972 = vmatprep.subr.bf16.mxu0 0
        %973 = vmatpush1.bf16.msra.mxu0 0
        %974 = vmatprep.subr.bf16.mxu0 0
        %975 = vmatpush1.bf16.msra.mxu0 0
        %976 = vmatprep.subr.bf16.mxu0 0
        %977 = vmatpush1.bf16.msra.mxu0 0
        %978 = vmatprep.subr.bf16.mxu0 0
        %979 = vmatpush1.bf16.msra.mxu0 0
        %980 = vmatprep.subr.bf16.mxu0 0
        %981 = vmatpush1.bf16.msra.mxu0 0
        %982 = vmatprep.subr.bf16.mxu0 0
        %983 = vmatpush1.bf16.msra.mxu0 0
        %984 = vmatprep.subr.bf16.mxu0 0
        %985 = vmatpush1.bf16.msra.mxu0 0
        %986 = vmatprep.subr.bf16.mxu0 0
        %987 = vmatpush1.bf16.msra.mxu0 0
        %988 = vmatprep.mubr.bf16.mxu0 0
        %989 = vmatmul.mubr.bf16.gmra.mrb[0].mxu0 %v951
        %v990 = vpop.f32.mrb[0].mxu0
        %v991 = vadd.f32 0.0, %v990
        %v992 = vpop.f32.mrb[0].mxu0
        %v993 = vpop.f32.mrb[0].mxu0
        %v994 = vpop.f32.mrb[0].mxu0
        %995 = vdwg.mxu0
        %v996 = vadd.f32 %v836, %v991
        %997 = vrot.lane.b32.xlu0 %v670, 112
        %v998 = vpop.permute.xlu0 %997
        %999 = vrot.lane.b32.xlu0 %v670, 80
        %v1000 = vpop.permute.xlu0 %999
        %v1002 = vsel %vm680, %v998, 0
        %v1005 = vsel %vm680, %v1000, 0
        %1007 = vmatprep.subr.bf16.mxu0 0
        %1008 = vmatpush1.bf16.xpose.msra.mxu0 %v1005
        %1009 = vmatprep.subr.bf16.mxu0 0
        %1010 = vmatpush1.bf16.xpose.msra.mxu0 0
        %1011 = vmatprep.subr.bf16.mxu0 0
        %1012 = vmatpush1.bf16.xpose.msra.mxu0 0
        %1013 = vmatprep.subr.bf16.mxu0 0
        %1014 = vmatpush1.bf16.xpose.msra.mxu0 0
        %1015 = vmatprep.subr.bf16.mxu0 0
        %1016 = vmatpush1.bf16.xpose.msra.mxu0 0
        %1017 = vmatprep.subr.bf16.mxu0 0
        %1018 = vmatpush1.bf16.xpose.msra.mxu0 0
        %1019 = vmatprep.subr.bf16.mxu0 0
        %1020 = vmatpush1.bf16.xpose.msra.mxu0 0
        %1021 = vmatprep.subr.bf16.mxu0 0
        %1022 = vmatpush1.bf16.xpose.msra.mxu0 0
        %1023 = vmatprep.subr.bf16.mxu0 0
        %1024 = vmatpush1.bf16.xpose.msra.mxu0 0
        %1025 = vmatprep.subr.bf16.mxu0 0
        %1026 = vmatpush1.bf16.xpose.msra.mxu0 0
        %1027 = vmatprep.subr.bf16.mxu0 0
        %1028 = vmatpush1.bf16.xpose.msra.mxu0 0
        %1029 = vmatprep.subr.bf16.mxu0 0
        %1030 = vmatpush1.bf16.xpose.msra.mxu0 0
        %1031 = vmatprep.subr.bf16.mxu0 0
        %1032 = vmatpush1.bf16.xpose.msra.mxu0 0
        %1033 = vmatprep.subr.bf16.mxu0 0
        %1034 = vmatpush1.bf16.xpose.msra.mxu0 0
        %1035 = vmatprep.subr.bf16.mxu0 0
        %1036 = vmatpush1.bf16.xpose.msra.mxu0 0
        %1037 = vmatprep.subr.bf16.mxu0 0
        %1038 = vmatpush1.bf16.xpose.msra.mxu0 0
        %1039 = vmatprep.mubr.bf16.mxu0 0
        %1040 = vmatmul.mubr.bf16.gmra.mrb[0].mxu0 %v1002
        %v1041 = vpop.f32.mrb[0].mxu0
        %v1042 = vadd.f32 %v675, %v1041
        %v1043 = vpop.f32.mrb[0].mxu0
        %v1044 = vpop.f32.mrb[0].mxu0
        %v1045 = vpop.f32.mrb[0].mxu0
        %1046 = vdwg.mxu0
        %v1047 = vsel %vm680, %v1042, -inf
        %1048 = vmax.xlane.f32.xlu0 %v1047
        %v1049 = vpop.xlane.xlu0 %1048
        %v1050 = vsub.f32 %v1042, %v1049
        %v1051 = vmul.f32 %v1050, 1.442695
        %v1052 = vpow.pop %v1051
        %v1053 = vsel %vm680, %v1052, 0.0
        %1054 = vadd.xlane.f32.xlu0 %v1053
        %v1055 = vpop.xlane.xlu0 %1054
        %v1056 = vrcp.pop %v1055
        %v1057 = vmul.f32 %v1052, %v1056
        %v1058 = vpack.c.bf16 %v1057, %v1057
        %1059 = vrot.lane.b32.xlu0 %v670, 48
        %v1060 = vpop.permute.xlu0 %1059
        %v1062 = vsel %vm680, %v1058, 0
        %v1065 = vsel %vm744, %v1060, 0
        %1067 = vmatprep.subr.bf16.mxu0 0
        %1068 = vmatpush1.bf16.msra.mxu0 %v1065
        %1069 = vmatprep.subr.bf16.mxu0 0
        %1070 = vmatpush1.bf16.msra.mxu0 0
        %1071 = vmatprep.subr.bf16.mxu0 0
        %1072 = vmatpush1.bf16.msra.mxu0 0
        %1073 = vmatprep.subr.bf16.mxu0 0
        %1074 = vmatpush1.bf16.msra.mxu0 0
        %1075 = vmatprep.subr.bf16.mxu0 0
        %1076 = vmatpush1.bf16.msra.mxu0 0
        %1077 = vmatprep.subr.bf16.mxu0 0
        %1078 = vmatpush1.bf16.msra.mxu0 0
        %1079 = vmatprep.subr.bf16.mxu0 0
        %1080 = vmatpush1.bf16.msra.mxu0 0
        %1081 = vmatprep.subr.bf16.mxu0 0
        %1082 = vmatpush1.bf16.msra.mxu0 0
        %1083 = vmatprep.subr.bf16.mxu0 0
        %1084 = vmatpush1.bf16.msra.mxu0 0
        %1085 = vmatprep.subr.bf16.mxu0 0
        %1086 = vmatpush1.bf16.msra.mxu0 0
        %1087 = vmatprep.subr.bf16.mxu0 0
        %1088 = vmatpush1.bf16.msra.mxu0 0
        %1089 = vmatprep.subr.bf16.mxu0 0
        %1090 = vmatpush1.bf16.msra.mxu0 0
        %1091 = vmatprep.subr.bf16.mxu0 0
        %1092 = vmatpush1.bf16.msra.mxu0 0
        %1093 = vmatprep.subr.bf16.mxu0 0
        %1094 = vmatpush1.bf16.msra.mxu0 0
        %1095 = vmatprep.subr.bf16.mxu0 0
        %1096 = vmatpush1.bf16.msra.mxu0 0
        %1097 = vmatprep.subr.bf16.mxu0 0
        %1098 = vmatpush1.bf16.msra.mxu0 0
        %1099 = vmatprep.mubr.bf16.mxu0 0
        %1100 = vmatmul.mubr.bf16.gmra.mrb[0].mxu0 %v1062
        %v1101 = vpop.f32.mrb[0].mxu0
        %v1102 = vadd.f32 0.0, %v1101
        %v1103 = vpop.f32.mrb[0].mxu0
        %v1104 = vpop.f32.mrb[0].mxu0
        %v1105 = vpop.f32.mrb[0].mxu0
        %1106 = vdwg.mxu0
        %v1107 = vpack.c.bf16 %v1102, %v1102
        %s1108 = scalar_lea.vmem %s6, 8
        %v1109 = vld [vmem:[%s1108] sm:$0xf]
        %v1111 = vsel %vm680, %v1107, 0
        %v1114 = vsel %vm744, %v1109, 0
        %1116 = vmatprep.subr.bf16.mxu0 0
        %1117 = vmatpush1.bf16.msra.mxu0 %v1114
        %1118 = vmatprep.subr.bf16.mxu0 0
        %1119 = vmatpush1.bf16.msra.mxu0 0
        %1120 = vmatprep.subr.bf16.mxu0 0
        %1121 = vmatpush1.bf16.msra.mxu0 0
        %1122 = vmatprep.subr.bf16.mxu0 0
        %1123 = vmatpush1.bf16.msra.mxu0 0
        %1124 = vmatprep.subr.bf16.mxu0 0
        %1125 = vmatpush1.bf16.msra.mxu0 0
        %1126 = vmatprep.subr.bf16.mxu0 0
        %1127 = vmatpush1.bf16.msra.mxu0 0
        %1128 = vmatprep.subr.bf16.mxu0 0
        %1129 = vmatpush1.bf16.msra.mxu0 0
        %1130 = vmatprep.subr.bf16.mxu0 0
        %1131 = vmatpush1.bf16.msra.mxu0 0
        %1132 = vmatprep.subr.bf16.mxu0 0
        %1133 = vmatpush1.bf16.msra.mxu0 0
        %1134 = vmatprep.subr.bf16.mxu0 0
        %1135 = vmatpush1.bf16.msra.mxu0 0
        %1136 = vmatprep.subr.bf16.mxu0 0
        %1137 = vmatpush1.bf16.msra.mxu0 0
        %1138 = vmatprep.subr.bf16.mxu0 0
        %1139 = vmatpush1.bf16.msra.mxu0 0
        %1140 = vmatprep.subr.bf16.mxu0 0
        %1141 = vmatpush1.bf16.msra.mxu0 0
        %1142 = vmatprep.subr.bf16.mxu0 0
        %1143 = vmatpush1.bf16.msra.mxu0 0
        %1144 = vmatprep.subr.bf16.mxu0 0
        %1145 = vmatpush1.bf16.msra.mxu0 0
        %1146 = vmatprep.subr.bf16.mxu0 0
        %1147 = vmatpush1.bf16.msra.mxu0 0
        %1148 = vmatprep.mubr.bf16.mxu0 0
        %1149 = vmatmul.mubr.bf16.gmra.mrb[0].mxu0 %v1111
        %v1150 = vpop.f32.mrb[0].mxu0
        %v1151 = vadd.f32 0.0, %v1150
        %v1152 = vpop.f32.mrb[0].mxu0
        %v1153 = vpop.f32.mrb[0].mxu0
        %v1154 = vpop.f32.mrb[0].mxu0
        %1155 = vdwg.mxu0
        %v1156 = vadd.f32 %v996, %v1151
        %1157 = vrot.lane.b32.xlu0 %v670, 104
        %v1158 = vpop.permute.xlu0 %1157
        %1159 = vrot.lane.b32.xlu0 %v670, 72
        %v1160 = vpop.permute.xlu0 %1159
        %v1162 = vsel %vm680, %v1158, 0
        %v1165 = vsel %vm680, %v1160, 0
        %1167 = vmatprep.subr.bf16.mxu0 0
        %1168 = vmatpush1.bf16.xpose.msra.mxu0 %v1165
        %1169 = vmatprep.subr.bf16.mxu0 0
        %1170 = vmatpush1.bf16.xpose.msra.mxu0 0
        %1171 = vmatprep.subr.bf16.mxu0 0
        %1172 = vmatpush1.bf16.xpose.msra.mxu0 0
        %1173 = vmatprep.subr.bf16.mxu0 0
        %1174 = vmatpush1.bf16.xpose.msra.mxu0 0
        %1175 = vmatprep.subr.bf16.mxu0 0
        %1176 = vmatpush1.bf16.xpose.msra.mxu0 0
        %1177 = vmatprep.subr.bf16.mxu0 0
        %1178 = vmatpush1.bf16.xpose.msra.mxu0 0
        %1179 = vmatprep.subr.bf16.mxu0 0
        %1180 = vmatpush1.bf16.xpose.msra.mxu0 0
        %1181 = vmatprep.subr.bf16.mxu0 0
        %1182 = vmatpush1.bf16.xpose.msra.mxu0 0
        %1183 = vmatprep.subr.bf16.mxu0 0
        %1184 = vmatpush1.bf16.xpose.msra.mxu0 0
        %1185 = vmatprep.subr.bf16.mxu0 0
        %1186 = vmatpush1.bf16.xpose.msra.mxu0 0
        %1187 = vmatprep.subr.bf16.mxu0 0
        %1188 = vmatpush1.bf16.xpose.msra.mxu0 0
        %1189 = vmatprep.subr.bf16.mxu0 0
        %1190 = vmatpush1.bf16.xpose.msra.mxu0 0
        %1191 = vmatprep.subr.bf16.mxu0 0
        %1192 = vmatpush1.bf16.xpose.msra.mxu0 0
        %1193 = vmatprep.subr.bf16.mxu0 0
        %1194 = vmatpush1.bf16.xpose.msra.mxu0 0
        %1195 = vmatprep.subr.bf16.mxu0 0
        %1196 = vmatpush1.bf16.xpose.msra.mxu0 0
        %1197 = vmatprep.subr.bf16.mxu0 0
        %1198 = vmatpush1.bf16.xpose.msra.mxu0 0
        %1199 = vmatprep.mubr.bf16.mxu0 0
        %1200 = vmatmul.mubr.bf16.gmra.mrb[0].mxu0 %v1162
        %v1201 = vpop.f32.mrb[0].mxu0
        %v1202 = vadd.f32 %v675, %v1201
        %v1203 = vpop.f32.mrb[0].mxu0
        %v1204 = vpop.f32.mrb[0].mxu0
        %v1205 = vpop.f32.mrb[0].mxu0
        %1206 = vdwg.mxu0
        %v1207 = vsel %vm680, %v1202, -inf
        %1208 = vmax.xlane.f32.xlu0 %v1207
        %v1209 = vpop.xlane.xlu0 %1208
        %v1210 = vsub.f32 %v1202, %v1209
        %v1211 = vmul.f32 %v1210, 1.442695
        %v1212 = vpow.pop %v1211
        %v1213 = vsel %vm680, %v1212, 0.0
        %1214 = vadd.xlane.f32.xlu0 %v1213
        %v1215 = vpop.xlane.xlu0 %1214
        %v1216 = vrcp.pop %v1215
        %v1217 = vmul.f32 %v1212, %v1216
        %v1218 = vpack.c.bf16 %v1217, %v1217
        %1219 = vrot.lane.b32.xlu0 %v670, 40
        %v1220 = vpop.permute.xlu0 %1219
        %v1222 = vsel %vm680, %v1218, 0
        %v1225 = vsel %vm744, %v1220, 0
        %1227 = vmatprep.subr.bf16.mxu0 0
        %1228 = vmatpush1.bf16.msra.mxu0 %v1225
        %1229 = vmatprep.subr.bf16.mxu0 0
        %1230 = vmatpush1.bf16.msra.mxu0 0
        %1231 = vmatprep.subr.bf16.mxu0 0
        %1232 = vmatpush1.bf16.msra.mxu0 0
        %1233 = vmatprep.subr.bf16.mxu0 0
        %1234 = vmatpush1.bf16.msra.mxu0 0
        %1235 = vmatprep.subr.bf16.mxu0 0
        %1236 = vmatpush1.bf16.msra.mxu0 0
        %1237 = vmatprep.subr.bf16.mxu0 0
        %1238 = vmatpush1.bf16.msra.mxu0 0
        %1239 = vmatprep.subr.bf16.mxu0 0
        %1240 = vmatpush1.bf16.msra.mxu0 0
        %1241 = vmatprep.subr.bf16.mxu0 0
        %1242 = vmatpush1.bf16.msra.mxu0 0
        %1243 = vmatprep.subr.bf16.mxu0 0
        %1244 = vmatpush1.bf16.msra.mxu0 0
        %1245 = vmatprep.subr.bf16.mxu0 0
        %1246 = vmatpush1.bf16.msra.mxu0 0
        %1247 = vmatprep.subr.bf16.mxu0 0
        %1248 = vmatpush1.bf16.msra.mxu0 0
        %1249 = vmatprep.subr.bf16.mxu0 0
        %1250 = vmatpush1.bf16.msra.mxu0 0
        %1251 = vmatprep.subr.bf16.mxu0 0
        %1252 = vmatpush1.bf16.msra.mxu0 0
        %1253 = vmatprep.subr.bf16.mxu0 0
        %1254 = vmatpush1.bf16.msra.mxu0 0
        %1255 = vmatprep.subr.bf16.mxu0 0
        %1256 = vmatpush1.bf16.msra.mxu0 0
        %1257 = vmatprep.subr.bf16.mxu0 0
        %1258 = vmatpush1.bf16.msra.mxu0 0
        %1259 = vmatprep.mubr.bf16.mxu0 0
        %1260 = vmatmul.mubr.bf16.gmra.mrb[0].mxu0 %v1222
        %v1261 = vpop.f32.mrb[0].mxu0
        %v1262 = vadd.f32 0.0, %v1261
        %v1263 = vpop.f32.mrb[0].mxu0
        %v1264 = vpop.f32.mrb[0].mxu0
        %v1265 = vpop.f32.mrb[0].mxu0
        %1266 = vdwg.mxu0
        %v1267 = vpack.c.bf16 %v1262, %v1262
        %s1268 = scalar_lea.vmem %s6, 12
        %v1269 = vld [vmem:[%s1268] sm:$0xf]
        %v1271 = vsel %vm680, %v1267, 0
        %v1274 = vsel %vm744, %v1269, 0
        %1276 = vmatprep.subr.bf16.mxu0 0
        %1277 = vmatpush1.bf16.msra.mxu0 %v1274
        %1278 = vmatprep.subr.bf16.mxu0 0
        %1279 = vmatpush1.bf16.msra.mxu0 0
        %1280 = vmatprep.subr.bf16.mxu0 0
        %1281 = vmatpush1.bf16.msra.mxu0 0
        %1282 = vmatprep.subr.bf16.mxu0 0
        %1283 = vmatpush1.bf16.msra.mxu0 0
        %1284 = vmatprep.subr.bf16.mxu0 0
        %1285 = vmatpush1.bf16.msra.mxu0 0
        %1286 = vmatprep.subr.bf16.mxu0 0
        %1287 = vmatpush1.bf16.msra.mxu0 0
        %1288 = vmatprep.subr.bf16.mxu0 0
        %1289 = vmatpush1.bf16.msra.mxu0 0
        %1290 = vmatprep.subr.bf16.mxu0 0
        %1291 = vmatpush1.bf16.msra.mxu0 0
        %1292 = vmatprep.subr.bf16.mxu0 0
        %1293 = vmatpush1.bf16.msra.mxu0 0
        %1294 = vmatprep.subr.bf16.mxu0 0
        %1295 = vmatpush1.bf16.msra.mxu0 0
        %1296 = vmatprep.subr.bf16.mxu0 0
        %1297 = vmatpush1.bf16.msra.mxu0 0
        %1298 = vmatprep.subr.bf16.mxu0 0
        %1299 = vmatpush1.bf16.msra.mxu0 0
        %1300 = vmatprep.subr.bf16.mxu0 0
        %1301 = vmatpush1.bf16.msra.mxu0 0
        %1302 = vmatprep.subr.bf16.mxu0 0
        %1303 = vmatpush1.bf16.msra.mxu0 0
        %1304 = vmatprep.subr.bf16.mxu0 0
        %1305 = vmatpush1.bf16.msra.mxu0 0
        %1306 = vmatprep.subr.bf16.mxu0 0
        %1307 = vmatpush1.bf16.msra.mxu0 0
        %1308 = vmatprep.mubr.bf16.mxu0 0
        %1309 = vmatmul.mubr.bf16.gmra.mrb[0].mxu0 %v1271
        %v1310 = vpop.f32.mrb[0].mxu0
        %v1311 = vadd.f32 0.0, %v1310
        %v1312 = vpop.f32.mrb[0].mxu0
        %v1313 = vpop.f32.mrb[0].mxu0
        %v1314 = vpop.f32.mrb[0].mxu0
        %1315 = vdwg.mxu0
        %v1316 = vadd.f32 %v1156, %v1311
        %v1317 = vld [vmem:[#allocation10] sm:$0x1]
        %v1318 = vld [vmem:[#allocation11] sm:$0x1]
        %v1319 = vsel %vm559, %v1316, 0.0
        %1320 = vadd.xlane.f32.xlu0 %v1319
        %v1321 = vpop.xlane.xlu0 %1320
        %v1322 = vmul.f32 %v1321, %v563
        %v1323 = vsub.f32 %v1316, %v1322
        %v1324 = vmul.f32 %v1323, %v1323
        %v1325 = vsel %vm559, %v1324, 0.0
        %1326 = vadd.xlane.f32.xlu0 %v1325
        %v1327 = vpop.xlane.xlu0 %1326
        %v1328 = vmul.f32 %v1327, 0.032258064
        %v1329 = vrsqrt.pop %v1328
        %v1330 = vmul.f32 %v1328, %v1329
        %vm1331 = vcmp.eq.f32.partialorder %v1328, inf
        %v1332 = vsel %vm1331, %v1328, %v1330
        %vm1333 = vcmp.eq.f32.partialorder %v1328, 0.0
        %v1334 = vand.u32 %v1328, 2147483648
        %v1335 = vsel %vm1333, %v1334, %v1332
        %v1336 = vadd.f32 %v1335, 1e-06
        %v1337 = vrcp.pop %v1336
        %v1338 = vmul.f32 %v1323, %v1337
        %v1340 = vlaneseq
        %v1341 = vshrl.u32 %v1340, 7
        %v1342 = vsub.s32 0, %v1341
        %v1343 = vrot.slane %v1317, %v1342
        %v1345 = vmul.f32 %v1343, %v1338
        %v1347 = vlaneseq
        %v1348 = vshrl.u32 %v1347, 7
        %v1349 = vsub.s32 0, %v1348
        %v1350 = vrot.slane %v1318, %v1349
        %v1352 = vadd.f32 %v1345, %v1350
        %v1353 = vpack.c.bf16 %v1352, %v1352
        %v1354 = vld [vmem:[%s10] sm:$0xf]
        %v1355 = vld [vmem:[%s10 + $0x4] sm:$0xf]
        %v1356 = vld [vmem:[%s10 + $0x8] sm:$0xf]
        %v1357 = vld [vmem:[%s10 + $0xc] sm:$0xf]
        %v1358 = vld [vmem:[%s11] sm:$0x1]
        %v1360 = vlaneseq
        %v1361 = vshrl.u32 %v1360, 7
        %v1362 = vsub.s32 0, %v1361
        %v1363 = vrot.slane %v1358, %v1362
        %v1369 = vunpack.c.l.b16 %v1354
        %v1370 = vunpack.c.l.b16 %v1355
        %v1371 = vunpack.c.l.b16 %v1356
        %v1372 = vunpack.c.l.b16 %v1357
        %v1373 = vpack.c.b16 %v1370, %v1369
        %v1374 = vpack.c.b16 %v1372, %v1371
        %v1378 = vsel %vm559, %v1353, 0
        %1380 = vmatprep.subr.bf16.mxu0 0
        %1381 = vmatpush1.bf16.msra.mxu0 %v1373
        %1382 = vmatprep.subr.bf16.mxu0 0
        %1383 = vmatpush1.bf16.msra.mxu0 %v1374
        %1384 = vmatprep.subr.bf16.mxu0 0
        %1385 = vmatpush1.bf16.msra.mxu0 0
        %1386 = vmatprep.subr.bf16.mxu0 0
        %1387 = vmatpush1.bf16.msra.mxu0 0
        %1388 = vmatprep.subr.bf16.mxu0 0
        %1389 = vmatpush1.bf16.msra.mxu0 0
        %1390 = vmatprep.subr.bf16.mxu0 0
        %1391 = vmatpush1.bf16.msra.mxu0 0
        %1392 = vmatprep.subr.bf16.mxu0 0
        %1393 = vmatpush1.bf16.msra.mxu0 0
        %1394 = vmatprep.subr.bf16.mxu0 0
        %1395 = vmatpush1.bf16.msra.mxu0 0
        %1396 = vmatprep.subr.bf16.mxu0 0
        %1397 = vmatpush1.bf16.msra.mxu0 0
        %1398 = vmatprep.subr.bf16.mxu0 0
        %1399 = vmatpush1.bf16.msra.mxu0 0
        %1400 = vmatprep.subr.bf16.mxu0 0
        %1401 = vmatpush1.bf16.msra.mxu0 0
        %1402 = vmatprep.subr.bf16.mxu0 0
        %1403 = vmatpush1.bf16.msra.mxu0 0
        %1404 = vmatprep.subr.bf16.mxu0 0
        %1405 = vmatpush1.bf16.msra.mxu0 0
        %1406 = vmatprep.subr.bf16.mxu0 0
        %1407 = vmatpush1.bf16.msra.mxu0 0
        %1408 = vmatprep.subr.bf16.mxu0 0
        %1409 = vmatpush1.bf16.msra.mxu0 0
        %1410 = vmatprep.subr.bf16.mxu0 0
        %1411 = vmatpush1.bf16.msra.mxu0 0
        %1412 = vmatprep.mubr.bf16.mxu0 0
        %1413 = vmatmul.mubr.bf16.gmra.mrb[0].mxu0 %v1378
        %v1414 = vpop.f32.mrb[0].mxu0
        %v1415 = vadd.f32 %v1363, %v1414
        %v1416 = vpop.f32.mrb[0].mxu0
        %v1417 = vpop.f32.mrb[0].mxu0
        %v1418 = vpop.f32.mrb[0].mxu0
        %1419 = vdwg.mxu0
        %v1420 = vmax.f32 %v1415, 0.0
        %v1421 = vpack.c.bf16 %v1420, %v1420
        %v1422 = vld [vmem:[%s12] sm:$0xf]
        %v1423 = vld [vmem:[%s12 + $0x4] sm:$0xf]
        %v1424 = vld [vmem:[%s12 + $0x8] sm:$0xf]
        %v1425 = vld [vmem:[%s12 + $0xc] sm:$0xf]
        %v1426 = vld [vmem:[%s12 + $0x10] sm:$0xf]
        %v1427 = vld [vmem:[%s12 + $0x14] sm:$0xf]
        %v1428 = vld [vmem:[%s12 + $0x18] sm:$0xf]
        %v1429 = vld [vmem:[%s12 + $0x1c] sm:$0xf]
        %v1430 = vld [vmem:[%s13] sm:$0x1]
        %v1432 = vlaneseq
        %v1433 = vshrl.u32 %v1432, 7
        %v1434 = vsub.s32 0, %v1433
        %v1435 = vrot.slane %v1430, %v1434
        %v1445 = vunpack.c.l.b16 %v1422
        %v1446 = vunpack.c.l.b16 %v1423
        %v1447 = vunpack.c.l.b16 %v1424
        %v1448 = vunpack.c.l.b16 %v1425
        %v1449 = vunpack.c.l.b16 %v1426
        %v1450 = vunpack.c.l.b16 %v1427
        %v1451 = vunpack.c.l.b16 %v1428
        %v1452 = vunpack.c.l.b16 %v1429
        %v1453 = vpack.c.b16 %v1446, %v1445
        %v1454 = vpack.c.b16 %v1448, %v1447
        %v1455 = vpack.c.b16 %v1450, %v1449
        %v1456 = vpack.c.b16 %v1452, %v1451
        %vm1461 = vcmask 523264
        %v1463 = vsel %vm1461, %v1421, 0
        %1465 = vmatprep.subr.bf16.mxu0 0
        %1466 = vmatpush1.bf16.msra.mxu0 %v1453
        %1467 = vmatprep.subr.bf16.mxu0 0
        %1468 = vmatpush1.bf16.msra.mxu0 %v1454
        %1469 = vmatprep.subr.bf16.mxu0 0
        %1470 = vmatpush1.bf16.msra.mxu0 %v1455
        %1471 = vmatprep.subr.bf16.mxu0 0
        %1472 = vmatpush1.bf16.msra.mxu0 %v1456
        %1473 = vmatprep.subr.bf16.mxu0 0
        %1474 = vmatpush1.bf16.msra.mxu0 0
        %1475 = vmatprep.subr.bf16.mxu0 0
        %1476 = vmatpush1.bf16.msra.mxu0 0
        %1477 = vmatprep.subr.bf16.mxu0 0
        %1478 = vmatpush1.bf16.msra.mxu0 0
        %1479 = vmatprep.subr.bf16.mxu0 0
        %1480 = vmatpush1.bf16.msra.mxu0 0
        %1481 = vmatprep.subr.bf16.mxu0 0
        %1482 = vmatpush1.bf16.msra.mxu0 0
        %1483 = vmatprep.subr.bf16.mxu0 0
        %1484 = vmatpush1.bf16.msra.mxu0 0
        %1485 = vmatprep.subr.bf16.mxu0 0
        %1486 = vmatpush1.bf16.msra.mxu0 0
        %1487 = vmatprep.subr.bf16.mxu0 0
        %1488 = vmatpush1.bf16.msra.mxu0 0
        %1489 = vmatprep.subr.bf16.mxu0 0
        %1490 = vmatpush1.bf16.msra.mxu0 0
        %1491 = vmatprep.subr.bf16.mxu0 0
        %1492 = vmatpush1.bf16.msra.mxu0 0
        %1493 = vmatprep.subr.bf16.mxu0 0
        %1494 = vmatpush1.bf16.msra.mxu0 0
        %1495 = vmatprep.subr.bf16.mxu0 0
        %1496 = vmatpush1.bf16.msra.mxu0 0
        %1497 = vmatprep.mubr.bf16.mxu0 0
        %1498 = vmatmul.mubr.bf16.gmra.mrb[0].mxu0 %v1463
        %v1499 = vpop.f32.mrb[0].mxu0
        %v1500 = vadd.f32 %v1435, %v1499
        %v1501 = vpop.f32.mrb[0].mxu0
        %v1502 = vpop.f32.mrb[0].mxu0
        %v1503 = vpop.f32.mrb[0].mxu0
        %1504 = vdwg.mxu0
        %v1505 = vadd.f32 %v1500, %v1316
        %1506 = vst.msk [vmem:[%s545] sm:$0xff] %vm559, %v1505
        %s1507 = sand.u32 %s344, 1
        %s1508 = scalar_lea.sflag [#allocation4], %s1507
        %s1509 = sand.u32 %s344, 1
        %s1510 = smul.addr %s1509, 8
        %s1511 = scalar_lea.vmem [#allocation13], %s1510
        // Predicated region
        $region101: #{tpu_custom_call.1} parent=75 // pred_check
          %p1512 = pneg %p354
        $region102: #{tpu_custom_call.1} parent=75 // pred_check_branch
          %1514 = sbr.rel (%p1512) target = $region104
        $region103: #{tpu_custom_call.1} parent=75 // pred_region
          %s1516 = ssub.s32 128, 128
          %1517 = vsyncadd %s1508, %s1516
          %s1518 = smul.addr %s32, 128
          %s1519 = scalar_lea.hbm %s14, %s1518
          %s1521 = sshll.u32 %s1511, 4
          %s1522 = int_to_ptr.vmem [resolvable:$true] %s1521
          %1524 = dma.vmem_to_hbm [thread:$0]  %s1522, 128, %s1519, %s1508
        $region104: #{tpu_custom_call.1} parent=75 // pred_fallthru
          _
      $region76: #{tpu_custom_call.1} parent=5 // pred_fallthru
        _
      %p1525 = scmp.le.s32.totalorder 2, %s27
      // Predicated region
      $region105: #{tpu_custom_call.1} parent=5 // pred_check
        %p1526 = pneg %p1525
      $region106: #{tpu_custom_call.1} parent=5 // pred_check_branch
        %1528 = sbr.rel (%p1526) target = $region108
      $region107: #{tpu_custom_call.1} parent=5 // pred_region
        %s1529 = ssub.s32 %s27, 2
        // Predicated region
        $region109: #{tpu_custom_call.1} parent=107 // pred_check
          %p1530 = pneg %p360
        $region110: #{tpu_custom_call.1} parent=107 // pred_check_branch
          %1532 = sbr.rel (%p1530) target = $region112
        $region111: #{tpu_custom_call.1} parent=107 // pred_region
          %s1533 = sand.u32 %s345, 1
          %s1534 = scalar_lea.sflag [#allocation4], %s1533
          %s1535 = sand.u32 %s345, 1
          %s1536 = smul.addr %s1535, 8
          %s1537 = scalar_lea.vmem [#allocation13], %s1536
          %1538 = dma.done %s1534, 128
        $region112: #{tpu_custom_call.1} parent=107 // pred_fallthru
          _
      $region108: #{tpu_custom_call.1} parent=5 // pred_fallthru
        _
    $region6: #{tpu_custom_call.1} parent=1 // loop_footer
      %s31 = sadd.s32 1, %s27
    $region7: #{tpu_custom_call.1} parent=1 // loop_footer_branch
      %26 = sbr.rel target = $region3
    $region8: #{tpu_custom_call.1} parent=1 // loop_exit
      _
    %1539 = vsyncpa [#allocation3], 1
    %s1540 = scalar_lea.sflag [#allocation3], 1
    %1541 = vsyncpa %s1540, 1
    %1542 = vsyncpa [#allocation6], 1
    %1543 = vsyncpa [#allocation9], 1
    %1544 = vsyncpa [#allocation12], 1
    %1545 = vsyncpa [#allocation4], 1
    %s1546 = scalar_lea.sflag [#allocation4], 1
    %1547 = vsyncpa %s1546, 1

// kernel: tpu_custom_call.1
$region0: #{tpu_custom_call.1}
  #allocation0 [shape = 'u32[]', space=smem, size = 0x4, offset = 0x4, fixed_abs, tag = 'smem constant byte address 0x4 - core index']
  #allocation1 [shape = 'u32[144,128]{1,0:T(1,128)}', space=vmem, size = 0x12000, scoped, tag = 'internal scratch']
  %s0 = inlined_call_operand.vmem [shape: f32[2,8,32], index: 0, kind: input, shape index: {}]
  %s1 = inlined_call_operand.vmem [shape: f32[2,1,8], index: 1, kind: input, shape index: {}]
  %s2 = inlined_call_operand.hbm [shape: f32[1,32], index: 2, kind: input, shape index: {}]
  %s3 = inlined_call_operand.hbm [shape: f32[1,32], index: 3, kind: input, shape index: {}]
  %s4 = inlined_call_operand.vmem [shape: bf16[32,96], index: 4, kind: input, shape index: {}]
  %s5 = inlined_call_operand.hbm [shape: f32[1,96], index: 5, kind: input, shape index: {}]
  %s6 = inlined_call_operand.vmem [shape: bf16[4,8,32], index: 6, kind: input, shape index: {}]
  %s7 = inlined_call_operand.hbm [shape: f32[1,32], index: 7, kind: input, shape index: {}]
  %s8 = inlined_call_operand.hbm [shape: f32[1,32], index: 8, kind: input, shape index: {}]
  %s9 = inlined_call_operand.hbm [shape: f32[1,32], index: 9, kind: input, shape index: {}]
  %s10 = inlined_call_operand.vmem [shape: bf16[32,64], index: 10, kind: input, shape index: {}]
  %s11 = inlined_call_operand.vmem [shape: f32[1,64], index: 11, kind: input, shape index: {}]
  %s12 = inlined_call_operand.vmem [shape: bf16[64,32], index: 12, kind: input, shape index: {}]
  %s13 = inlined_call_operand.vmem [shape: f32[1,32], index: 13, kind: input, shape index: {}]
  %s14 = inlined_call_operand.hbm [shape: f32[2,8,32], index: 14, kind: output, shape index: {}]
  %s15 = sld [smem:[#allocation0]]
  $region113: #{tpu_custom_call.1} parent=0
    _
  %s17 = ssub.s32 1, %s15
  %s18 = scalar_select 0, %s17, %s15
  $region1: #{tpu_custom_call.1} parent=0
    #allocation2 [shape = 'u8[512]{0}', space=vmem, size = 0x400, scoped, tag = 'input window, operand 2, single buffered']
    #allocation3 [shape = 's32[2]{0}', space=sflag, size = 0x8, scoped, tag = 'scoped memory for tpu_custom_call.1']
    #allocation4 [shape = 's32[2]{0}', space=sflag, size = 0x8, scoped, tag = 'scoped memory for tpu_custom_call.1']
    #allocation5 [shape = 'u8[512]{0}', space=vmem, size = 0x400, scoped, tag = 'input window, operand 3, single buffered']
    #allocation6 [shape = 's32[1]{0}', space=sflag, size = 0x4, scoped, tag = 'scoped memory for tpu_custom_call.1']
    #allocation7 [shape = 'u8[512]{0}', space=vmem, size = 0x400, scoped, tag = 'input window, operand 5, single buffered']
    #allocation8 [shape = 'u8[512]{0}', space=vmem, size = 0x400, scoped, tag = 'input window, operand 7, single buffered']
    #allocation9 [shape = 's32[1]{0}', space=sflag, size = 0x4, scoped, tag = 'scoped memory for tpu_custom_call.1']
    #allocation10 [shape = 'u8[512]{0}', space=vmem, size = 0x400, scoped, tag = 'input window, operand 8, single buffered']
    #allocation11 [shape = 'u8[512]{0}', space=vmem, size = 0x400, scoped, tag = 'input window, operand 9, single buffered']
    #allocation12 [shape = 's32[1]{0}', space=sflag, size = 0x4, scoped, tag = 'scoped memory for tpu_custom_call.1']
    #allocation13 [shape = 'u8[8192]{0}', space=vmem, size = 0x2000, scoped, tag = 'output window, operand 0']
    %19 = vsyncpa [#allocation3], 0
    %20 = vsyncpa [#allocation6], 0
    %21 = vsyncpa [#allocation9], 0
    %22 = vsyncpa [#allocation12], 0
    %23 = vsyncpa [#allocation4], 0
    %s24 = scalar_lea.sflag [#allocation4], 1
    %25 = vsyncpa %s24, 0
    loop: start=0, step=1, limit=4
    $region2: #{tpu_custom_call.1} parent=1 // loop_pre_header
      _
    $region3: #{tpu_custom_call.1} parent=1 // loop_header
      %s27 = sphi 0, %s31
      %p28 = scmp.ge.s32.totalorder %s27, 4
      %s37 = sphi 0, %s39
      %s40 = sphi 0, %s37
      %s41 = sphi 0, %s40
      %s57 = sphi 0, %s41
      %s63 = sphi 0, %s65
      %s66 = sphi 0, %s63
      %s67 = sphi 0, %s66
      %s83 = sphi 0, %s67
      %s87 = sphi 0, %s87
      %s89 = sphi 0, %s87
      %s90 = sphi 0, %s89
      %s104 = sphi 0, %s90
      %s108 = sphi 0, %s108
      %s110 = sphi 0, %s108
      %s111 = sphi 0, %s110
      %s125 = sphi 0, %s111
      %s129 = sphi 0, %s129
      %s131 = sphi 0, %s129
      %s132 = sphi 0, %s131
      %s146 = sphi 0, %s132
      %s150 = sphi 0, %s150
      %s152 = sphi 0, %s150
      %s153 = sphi 0, %s152
      %s167 = sphi 0, %s153
      %s171 = sphi 0, %s171
      %s173 = sphi 0, %s171
      %s174 = sphi 0, %s173
      %s188 = sphi 0, %s174
      %s192 = sphi 0, %s192
      %s194 = sphi 0, %s192
      %s195 = sphi 0, %s194
      %s209 = sphi 0, %s195
      %s213 = sphi 0, %s213
      %s215 = sphi 0, %s213
      %s216 = sphi 0, %s215
      %s230 = sphi 0, %s216
      %s234 = sphi 0, %s234
      %s236 = sphi 0, %s234
      %s237 = sphi 0, %s236
      %s251 = sphi 0, %s237
      %s255 = sphi 0, %s255
      %s257 = sphi 0, %s255
      %s258 = sphi 0, %s257
      %s272 = sphi 0, %s258
      %s276 = sphi 0, %s276
      %s278 = sphi 0, %s276
      %s279 = sphi 0, %s278
      %s293 = sphi 0, %s279
      %s297 = sphi 0, %s297
      %s299 = sphi 0, %s297
      %s300 = sphi 0, %s299
      %s314 = sphi 0, %s300
      %s318 = sphi 0, %s318
      %s320 = sphi 0, %s318
      %s321 = sphi 0, %s320
      %s335 = sphi 0, %s321
      %s341 = sphi 0, %s343
      %s344 = sphi 0, %s341
      %s345 = sphi 0, %s344
      %s361 = sphi 0, %s345
    $region4: #{tpu_custom_call.1} parent=1 // loop_header_branch
      %30 = sbr.rel (%p28) target = $region8
    $region5: #{tpu_custom_call.1} parent=1 // loop_body
      %s32 = ssub.s32 %s27, 1
      %s33 = ssub.s32 %s27, 2
      %s34 = sadd.s32 %s27, 1
      %s35 = ssub.s32 %s27, %s34
      %p36 = scmp.eq.s32.totalorder %s35, 0
      %s38 = sadd.s32 %s37, 1
      %s39 = scalar_select %p36, %s37, %s38
      %p42 = pneg %p36
      %p43 = scmp.eq.s32.totalorder %s27, 1
      %p44 = por %p42, %p43
      %p45 = scmp.ne.s32.totalorder %s37, %s40
      %p46 = scmp.eq.s32.totalorder %s27, 0
      %p47 = por %p45, %p46
      %p48 = scmp.ne.s32.totalorder %s37, %s40
      %p49 = scmp.eq.s32.totalorder %s32, 1
      %p50 = por %p48, %p49
      %p51 = scmp.ne.s32.totalorder %s40, %s41
      %p52 = scmp.eq.s32.totalorder %s32, 0
      %p53 = por %p51, %p52
      %p54 = scmp.ne.s32.totalorder %s40, %s41
      %p55 = scmp.eq.s32.totalorder %s33, 1
      %p56 = por %p54, %p55
      %p58 = scmp.ne.s32.totalorder %s41, %s57
      %p59 = scmp.eq.s32.totalorder %s33, 0
      %p60 = por %p58, %p59
      %s61 = ssub.s32 %s27, %s34
      %p62 = scmp.eq.s32.totalorder %s61, 0
      %s64 = sadd.s32 %s63, 1
      %s65 = scalar_select %p62, %s63, %s64
      %p68 = pneg %p62
      %p69 = scmp.eq.s32.totalorder %s27, 1
      %p70 = por %p68, %p69
      %p71 = scmp.ne.s32.totalorder %s63, %s66
      %p72 = scmp.eq.s32.totalorder %s27, 0
      %p73 = por %p71, %p72
      %p74 = scmp.ne.s32.totalorder %s63, %s66
      %p75 = scmp.eq.s32.totalorder %s32, 1
      %p76 = por %p74, %p75
      %p77 = scmp.ne.s32.totalorder %s66, %s67
      %p78 = scmp.eq.s32.totalorder %s32, 0
      %p79 = por %p77, %p78
      %p80 = scmp.ne.s32.totalorder %s66, %s67
      %p81 = scmp.eq.s32.totalorder %s33, 1
      %p82 = por %p80, %p81
      %p84 = scmp.ne.s32.totalorder %s67, %s83
      %p85 = scmp.eq.s32.totalorder %s33, 0
      %p86 = por %p84, %p85
      %s88 = sadd.s32 %s87, 1
      %p91 = scmp.eq.s32.totalorder %s27, 1
      %p92 = scmp.ne.s32.totalorder %s87, %s89
      %p93 = scmp.eq.s32.totalorder %s27, 0
      %p94 = por %p92, %p93
      %p95 = scmp.ne.s32.totalorder %s87, %s89
      %p96 = scmp.eq.s32.totalorder %s32, 1
      %p97 = por %p95, %p96
      %p98 = scmp.ne.s32.totalorder %s89, %s90
      %p99 = scmp.eq.s32.totalorder %s32, 0
      %p100 = por %p98, %p99
      %p101 = scmp.ne.s32.totalorder %s89, %s90
      %p102 = scmp.eq.s32.totalorder %s33, 1
      %p103 = por %p101, %p102
      %p105 = scmp.ne.s32.totalorder %s90, %s104
      %p106 = scmp.eq.s32.totalorder %s33, 0
      %p107 = por %p105, %p106
      %s109 = sadd.s32 %s108, 1
      %p112 = scmp.eq.s32.totalorder %s27, 1
      %p113 = scmp.ne.s32.totalorder %s108, %s110
      %p114 = scmp.eq.s32.totalorder %s27, 0
      %p115 = por %p113, %p114
      %p116 = scmp.ne.s32.totalorder %s108, %s110
      %p117 = scmp.eq.s32.totalorder %s32, 1
      %p118 = por %p116, %p117
      %p119 = scmp.ne.s32.totalorder %s110, %s111
      %p120 = scmp.eq.s32.totalorder %s32, 0
      %p121 = por %p119, %p120
      %p122 = scmp.ne.s32.totalorder %s110, %s111
      %p123 = scmp.eq.s32.totalorder %s33, 1
      %p124 = por %p122, %p123
      %p126 = scmp.ne.s32.totalorder %s111, %s125
      %p127 = scmp.eq.s32.totalorder %s33, 0
      %p128 = por %p126, %p127
      %s130 = sadd.s32 %s129, 1
      %p133 = scmp.eq.s32.totalorder %s27, 1
      %p134 = scmp.ne.s32.totalorder %s129, %s131
      %p135 = scmp.eq.s32.totalorder %s27, 0
      %p136 = por %p134, %p135
      %p137 = scmp.ne.s32.totalorder %s129, %s131
      %p138 = scmp.eq.s32.totalorder %s32, 1
      %p139 = por %p137, %p138
      %p140 = scmp.ne.s32.totalorder %s131, %s132
      %p141 = scmp.eq.s32.totalorder %s32, 0
      %p142 = por %p140, %p141
      %p143 = scmp.ne.s32.totalorder %s131, %s132
      %p144 = scmp.eq.s32.totalorder %s33, 1
      %p145 = por %p143, %p144
      %p147 = scmp.ne.s32.totalorder %s132, %s146
      %p148 = scmp.eq.s32.totalorder %s33, 0
      %p149 = por %p147, %p148
      %s151 = sadd.s32 %s150, 1
      %p154 = scmp.eq.s32.totalorder %s27, 1
      %p155 = scmp.ne.s32.totalorder %s150, %s152
      %p156 = scmp.eq.s32.totalorder %s27, 0
      %p157 = por %p155, %p156
      %p158 = scmp.ne.s32.totalorder %s150, %s152
      %p159 = scmp.eq.s32.totalorder %s32, 1
      %p160 = por %p158, %p159
      %p161 = scmp.ne.s32.totalorder %s152, %s153
      %p162 = scmp.eq.s32.totalorder %s32, 0
      %p163 = por %p161, %p162
      %p164 = scmp.ne.s32.totalorder %s152, %s153
      %p165 = scmp.eq.s32.totalorder %s33, 1
      %p166 = por %p164, %p165
      %p168 = scmp.ne.s32.totalorder %s153, %s167
      %p169 = scmp.eq.s32.totalorder %s33, 0
      %p170 = por %p168, %p169
      %s172 = sadd.s32 %s171, 1
      %p175 = scmp.eq.s32.totalorder %s27, 1
      %p176 = scmp.ne.s32.totalorder %s171, %s173
      %p177 = scmp.eq.s32.totalorder %s27, 0
      %p178 = por %p176, %p177
      %p179 = scmp.ne.s32.totalorder %s171, %s173
      %p180 = scmp.eq.s32.totalorder %s32, 1
      %p181 = por %p179, %p180
      %p182 = scmp.ne.s32.totalorder %s173, %s174
      %p183 = scmp.eq.s32.totalorder %s32, 0
      %p184 = por %p182, %p183
      %p185 = scmp.ne.s32.totalorder %s173, %s174
      %p186 = scmp.eq.s32.totalorder %s33, 1
      %p187 = por %p185, %p186
      %p189 = scmp.ne.s32.totalorder %s174, %s188
      %p190 = scmp.eq.s32.totalorder %s33, 0
      %p191 = por %p189, %p190
      %s193 = sadd.s32 %s192, 1
      %p196 = scmp.eq.s32.totalorder %s27, 1
      %p197 = scmp.ne.s32.totalorder %s192, %s194
      %p198 = scmp.eq.s32.totalorder %s27, 0
      %p199 = por %p197, %p198
      %p200 = scmp.ne.s32.totalorder %s192, %s194
      %p201 = scmp.eq.s32.totalorder %s32, 1
      %p202 = por %p200, %p201
      %p203 = scmp.ne.s32.totalorder %s194, %s195
      %p204 = scmp.eq.s32.totalorder %s32, 0
      %p205 = por %p203, %p204
      %p206 = scmp.ne.s32.totalorder %s194, %s195
      %p207 = scmp.eq.s32.totalorder %s33, 1
      %p208 = por %p206, %p207
      %p210 = scmp.ne.s32.totalorder %s195, %s209
      %p211 = scmp.eq.s32.totalorder %s33, 0
      %p212 = por %p210, %p211
      %s214 = sadd.s32 %s213, 1
      %p217 = scmp.eq.s32.totalorder %s27, 1
      %p218 = scmp.ne.s32.totalorder %s213, %s215
      %p219 = scmp.eq.s32.totalorder %s27, 0
      %p220 = por %p218, %p219
      %p221 = scmp.ne.s32.totalorder %s213, %s215
      %p222 = scmp.eq.s32.totalorder %s32, 1
      %p223 = por %p221, %p222
      %p224 = scmp.ne.s32.totalorder %s215, %s216
      %p225 = scmp.eq.s32.totalorder %s32, 0
      %p226 = por %p224, %p225
      %p227 = scmp.ne.s32.totalorder %s215, %s216
      %p228 = scmp.eq.s32.totalorder %s33, 1
      %p229 = por %p227, %p228
      %p231 = scmp.ne.s32.totalorder %s216, %s230
      %p232 = scmp.eq.s32.totalorder %s33, 0
      %p233 = por %p231, %p232
      %s235 = sadd.s32 %s234, 1
      %p238 = scmp.eq.s32.totalorder %s27, 1
      %p239 = scmp.ne.s32.totalorder %s234, %s236
      %p240 = scmp.eq.s32.totalorder %s27, 0
      %p241 = por %p239, %p240
      %p242 = scmp.ne.s32.totalorder %s234, %s236
      %p243 = scmp.eq.s32.totalorder %s32, 1
      %p244 = por %p242, %p243
      %p245 = scmp.ne.s32.totalorder %s236, %s237
      %p246 = scmp.eq.s32.totalorder %s32, 0
      %p247 = por %p245, %p246
      %p248 = scmp.ne.s32.totalorder %s236, %s237
      %p249 = scmp.eq.s32.totalorder %s33, 1
      %p250 = por %p248, %p249
      %p252 = scmp.ne.s32.totalorder %s237, %s251
      %p253 = scmp.eq.s32.totalorder %s33, 0
      %p254 = por %p252, %p253
      %s256 = sadd.s32 %s255, 1
      %p259 = scmp.eq.s32.totalorder %s27, 1
      %p260 = scmp.ne.s32.totalorder %s255, %s257
      %p261 = scmp.eq.s32.totalorder %s27, 0
      %p262 = por %p260, %p261
      %p263 = scmp.ne.s32.totalorder %s255, %s257
      %p264 = scmp.eq.s32.totalorder %s32, 1
      %p265 = por %p263, %p264
      %p266 = scmp.ne.s32.totalorder %s257, %s258
      %p267 = scmp.eq.s32.totalorder %s32, 0
      %p268 = por %p266, %p267
      %p269 = scmp.ne.s32.totalorder %s257, %s258
      %p270 = scmp.eq.s32.totalorder %s33, 1
      %p271 = por %p269, %p270
      %p273 = scmp.ne.s32.totalorder %s258, %s272
      %p274 = scmp.eq.s32.totalorder %s33, 0
      %p275 = por %p273, %p274
      %s277 = sadd.s32 %s276, 1
      %p280 = scmp.eq.s32.totalorder %s27, 1
      %p281 = scmp.ne.s32.totalorder %s276, %s278
      %p282 = scmp.eq.s32.totalorder %s27, 0
      %p283 = por %p281, %p282
      %p284 = scmp.ne.s32.totalorder %s276, %s278
      %p285 = scmp.eq.s32.totalorder %s32, 1
      %p286 = por %p284, %p285
      %p287 = scmp.ne.s32.totalorder %s278, %s279
      %p288 = scmp.eq.s32.totalorder %s32, 0
      %p289 = por %p287, %p288
      %p290 = scmp.ne.s32.totalorder %s278, %s279
      %p291 = scmp.eq.s32.totalorder %s33, 1
      %p292 = por %p290, %p291
      %p294 = scmp.ne.s32.totalorder %s279, %s293
      %p295 = scmp.eq.s32.totalorder %s33, 0
      %p296 = por %p294, %p295
      %s298 = sadd.s32 %s297, 1
      %p301 = scmp.eq.s32.totalorder %s27, 1
      %p302 = scmp.ne.s32.totalorder %s297, %s299
      %p303 = scmp.eq.s32.totalorder %s27, 0
      %p304 = por %p302, %p303
      %p305 = scmp.ne.s32.totalorder %s297, %s299
      %p306 = scmp.eq.s32.totalorder %s32, 1
      %p307 = por %p305, %p306
      %p308 = scmp.ne.s32.totalorder %s299, %s300
      %p309 = scmp.eq.s32.totalorder %s32, 0
      %p310 = por %p308, %p309
      %p311 = scmp.ne.s32.totalorder %s299, %s300
      %p312 = scmp.eq.s32.totalorder %s33, 1
      %p313 = por %p311, %p312
      %p315 = scmp.ne.s32.totalorder %s300, %s314
      %p316 = scmp.eq.s32.totalorder %s33, 0
      %p317 = por %p315, %p316
      %s319 = sadd.s32 %s318, 1
      %p322 = scmp.eq.s32.totalorder %s27, 1
      %p323 = scmp.ne.s32.totalorder %s318, %s320
      %p324 = scmp.eq.s32.totalorder %s27, 0
      %p325 = por %p323, %p324
      %p326 = scmp.ne.s32.totalorder %s318, %s320
      %p327 = scmp.eq.s32.totalorder %s32, 1
      %p328 = por %p326, %p327
      %p329 = scmp.ne.s32.totalorder %s320, %s321
      %p330 = scmp.eq.s32.totalorder %s32, 0
      %p331 = por %p329, %p330
      %p332 = scmp.ne.s32.totalorder %s320, %s321
      %p333 = scmp.eq.s32.totalorder %s33, 1
      %p334 = por %p332, %p333
      %p336 = scmp.ne.s32.totalorder %s321, %s335
      %p337 = scmp.eq.s32.totalorder %s33, 0
      %p338 = por %p336, %p337
      %s339 = ssub.s32 %s27, %s34
      %p340 = scmp.eq.s32.totalorder %s339, 0
      %s342 = sadd.s32 %s341, 1
      %s343 = scalar_select %p340, %s341, %s342
      %p346 = pneg %p340
      %p347 = scmp.eq.s32.totalorder %s27, 1
      %p348 = por %p346, %p347
      %p349 = scmp.ne.s32.totalorder %s341, %s344
      %p350 = scmp.eq.s32.totalorder %s27, 0
      %p351 = por %p349, %p350
      %p352 = scmp.ne.s32.totalorder %s341, %s344
      %p353 = scmp.eq.s32.totalorder %s32, 1
      %p354 = por %p352, %p353
      %p355 = scmp.ne.s32.totalorder %s344, %s345
      %p356 = scmp.eq.s32.totalorder %s32, 0
      %p357 = por %p355, %p356
      %p358 = scmp.ne.s32.totalorder %s344, %s345
      %p359 = scmp.eq.s32.totalorder %s33, 1
      %p360 = por %p358, %p359
      %p362 = scmp.ne.s32.totalorder %s345, %s361
      %p363 = scmp.eq.s32.totalorder %s33, 0
      %p364 = por %p362, %p363
      %p365 = scmp.le.s32.totalorder 1, %s27
      %p366 = scmp.lt.s32.totalorder %s27, 3
      %p367 = pnand %p365, %p366
      %p368 = pneg %p367
      // Predicated region
      $region9: #{tpu_custom_call.1} parent=5 // pred_check
        _
      $region10: #{tpu_custom_call.1} parent=5 // pred_check_branch
        %370 = sbr.rel (%p367) target = $region12
      $region11: #{tpu_custom_call.1} parent=5 // pred_region
        %s371 = ssub.s32 %s27, 1
        // Predicated region
        $region13: #{tpu_custom_call.1} parent=11 // pred_check
          %p372 = pneg %p100
        $region14: #{tpu_custom_call.1} parent=11 // pred_check_branch
          %374 = sbr.rel (%p372) target = $region16
        $region15: #{tpu_custom_call.1} parent=11 // pred_region
          %s376 = ssub.s32 16, 16
          %377 = vsyncadd [#allocation3], %s376
          %s379 = sshll.u32 [#allocation2], 4
          %s380 = int_to_ptr.vmem [resolvable:$true] %s379
          %382 = dma.hbm_to_vmem [thread:$0]  %s2, 16, %s380, [#allocation3]
        $region16: #{tpu_custom_call.1} parent=11 // pred_fallthru
          _
        // Predicated region
        $region17: #{tpu_custom_call.1} parent=11 // pred_check
          %p383 = pneg %p121
        $region18: #{tpu_custom_call.1} parent=11 // pred_check_branch
          %385 = sbr.rel (%p383) target = $region20
        $region19: #{tpu_custom_call.1} parent=11 // pred_region
          %s387 = ssub.s32 16, 16
          %388 = vsyncadd [#allocation6], %s387
          %s390 = sshll.u32 [#allocation5], 4
          %s391 = int_to_ptr.vmem [resolvable:$true] %s390
          %393 = dma.hbm_to_vmem [thread:$0]  %s3, 16, %s391, [#allocation6]
        $region20: #{tpu_custom_call.1} parent=11 // pred_fallthru
          _
        // Predicated region
        $region21: #{tpu_custom_call.1} parent=11 // pred_check
          %p394 = pneg %p142
        $region22: #{tpu_custom_call.1} parent=11 // pred_check_branch
          %396 = sbr.rel (%p394) target = $region24
        $region23: #{tpu_custom_call.1} parent=11 // pred_region
          _
        $region24: #{tpu_custom_call.1} parent=11 // pred_fallthru
          _
        // Predicated region
        $region25: #{tpu_custom_call.1} parent=11 // pred_check
          %p397 = pneg %p163
        $region26: #{tpu_custom_call.1} parent=11 // pred_check_branch
          %399 = sbr.rel (%p397) target = $region28
        $region27: #{tpu_custom_call.1} parent=11 // pred_region
          %s401 = ssub.s32 16, 16
          %402 = vsyncadd [#allocation6], %s401
          %s404 = sshll.u32 [#allocation7], 4
          %s405 = int_to_ptr.vmem [resolvable:$true] %s404
          %407 = dma.hbm_to_vmem [thread:$0]  %s5, 16, %s405, [#allocation6]
        $region28: #{tpu_custom_call.1} parent=11 // pred_fallthru
          _
        // Predicated region
        $region29: #{tpu_custom_call.1} parent=11 // pred_check
          %p408 = pneg %p184
        $region30: #{tpu_custom_call.1} parent=11 // pred_check_branch
          %410 = sbr.rel (%p408) target = $region32
        $region31: #{tpu_custom_call.1} parent=11 // pred_region
          _
        $region32: #{tpu_custom_call.1} parent=11 // pred_fallthru
          _
        // Predicated region
        $region33: #{tpu_custom_call.1} parent=11 // pred_check
          %p411 = pneg %p205
        $region34: #{tpu_custom_call.1} parent=11 // pred_check_branch
          %413 = sbr.rel (%p411) target = $region36
        $region35: #{tpu_custom_call.1} parent=11 // pred_region
          %s415 = ssub.s32 16, 16
          %416 = vsyncadd [#allocation9], %s415
          %s418 = sshll.u32 [#allocation8], 4
          %s419 = int_to_ptr.vmem [resolvable:$true] %s418
          %421 = dma.hbm_to_vmem [thread:$0]  %s7, 16, %s419, [#allocation9]
        $region36: #{tpu_custom_call.1} parent=11 // pred_fallthru
          _
        // Predicated region
        $region37: #{tpu_custom_call.1} parent=11 // pred_check
          %p422 = pneg %p226
        $region38: #{tpu_custom_call.1} parent=11 // pred_check_branch
          %424 = sbr.rel (%p422) target = $region40
        $region39: #{tpu_custom_call.1} parent=11 // pred_region
          %s426 = ssub.s32 16, 16
          %427 = vsyncadd [#allocation9], %s426
          %s429 = sshll.u32 [#allocation10], 4
          %s430 = int_to_ptr.vmem [resolvable:$true] %s429
          %432 = dma.hbm_to_vmem [thread:$0]  %s8, 16, %s430, [#allocation9]
        $region40: #{tpu_custom_call.1} parent=11 // pred_fallthru
          _
        // Predicated region
        $region41: #{tpu_custom_call.1} parent=11 // pred_check
          %p433 = pneg %p247
        $region42: #{tpu_custom_call.1} parent=11 // pred_check_branch
          %435 = sbr.rel (%p433) target = $region44
        $region43: #{tpu_custom_call.1} parent=11 // pred_region
          %s437 = ssub.s32 16, 16
          %438 = vsyncadd [#allocation12], %s437
          %s440 = sshll.u32 [#allocation11], 4
          %s441 = int_to_ptr.vmem [resolvable:$true] %s440
          %443 = dma.hbm_to_vmem [thread:$0]  %s9, 16, %s441, [#allocation12]
        $region44: #{tpu_custom_call.1} parent=11 // pred_fallthru
          _
        // Predicated region
        $region45: #{tpu_custom_call.1} parent=11 // pred_check
          %p444 = pneg %p268
        $region46: #{tpu_custom_call.1} parent=11 // pred_check_branch
          %446 = sbr.rel (%p444) target = $region48
        $region47: #{tpu_custom_call.1} parent=11 // pred_region
          _
        $region48: #{tpu_custom_call.1} parent=11 // pred_fallthru
          _
        // Predicated region
        $region49: #{tpu_custom_call.1} parent=11 // pred_check
          %p447 = pneg %p289
        $region50: #{tpu_custom_call.1} parent=11 // pred_check_branch
          %449 = sbr.rel (%p447) target = $region52
        $region51: #{tpu_custom_call.1} parent=11 // pred_region
          _
        $region52: #{tpu_custom_call.1} parent=11 // pred_fallthru
          _
        // Predicated region
        $region53: #{tpu_custom_call.1} parent=11 // pred_check
          %p450 = pneg %p310
        $region54: #{tpu_custom_call.1} parent=11 // pred_check_branch
          %452 = sbr.rel (%p450) target = $region56
        $region55: #{tpu_custom_call.1} parent=11 // pred_region
          _
        $region56: #{tpu_custom_call.1} parent=11 // pred_fallthru
          _
        // Predicated region
        $region57: #{tpu_custom_call.1} parent=11 // pred_check
          %p453 = pneg %p331
        $region58: #{tpu_custom_call.1} parent=11 // pred_check_branch
          %455 = sbr.rel (%p453) target = $region60
        $region59: #{tpu_custom_call.1} parent=11 // pred_region
          _
        $region60: #{tpu_custom_call.1} parent=11 // pred_fallthru
          _
      $region12: #{tpu_custom_call.1} parent=5 // pred_fallthru
        _
      %p456 = scmp.lt.s32.totalorder %s27, 2
      // Predicated region
      $region61: #{tpu_custom_call.1} parent=5 // pred_check
        %p457 = pneg %p456
      $region62: #{tpu_custom_call.1} parent=5 // pred_check_branch
        %459 = sbr.rel (%p457) target = $region64
      $region63: #{tpu_custom_call.1} parent=5 // pred_region
        // Predicated region
        $region65: #{tpu_custom_call.1} parent=63 // pred_check
          %p460 = pneg %p47
        $region66: #{tpu_custom_call.1} parent=63 // pred_check_branch
          %462 = sbr.rel (%p460) target = $region68
        $region67: #{tpu_custom_call.1} parent=63 // pred_region
          %p463 = scmp.lt.s32.totalorder %s27, 1
          %s464 = scalar_select %p463, %s27, 1
          %s465 = smul.addr %s464, 8
          %s466 = scalar_lea.vmem %s0, %s465
        $region68: #{tpu_custom_call.1} parent=63 // pred_fallthru
          _
        // Predicated region
        $region69: #{tpu_custom_call.1} parent=63 // pred_check
          %p467 = pneg %p73
        $region70: #{tpu_custom_call.1} parent=63 // pred_check_branch
          %469 = sbr.rel (%p467) target = $region72
        $region71: #{tpu_custom_call.1} parent=63 // pred_region
          %p470 = scmp.lt.s32.totalorder %s27, 1
          %s471 = scalar_select %p470, %s27, 1
          %s472 = scalar_lea.vmem %s1, %s471
        $region72: #{tpu_custom_call.1} parent=63 // pred_fallthru
          _
      $region64: #{tpu_custom_call.1} parent=5 // pred_fallthru
        _
      %p473 = scmp.le.s32.totalorder 1, %s27
      %p474 = scmp.lt.s32.totalorder %s27, 3
      %p475 = pnand %p473, %p474
      %p476 = pneg %p475
      // Predicated region
      $region73: #{tpu_custom_call.1} parent=5 // pred_check
        _
      $region74: #{tpu_custom_call.1} parent=5 // pred_check_branch
        %478 = sbr.rel (%p475) target = $region76
      $region75: #{tpu_custom_call.1} parent=5 // pred_region
        %s479 = ssub.s32 %s27, 1
        // Predicated region
        $region77: #{tpu_custom_call.1} parent=75 // pred_check
          %p480 = pneg %p100
        $region78: #{tpu_custom_call.1} parent=75 // pred_check_branch
          %482 = sbr.rel (%p480) target = $region80
        $region79: #{tpu_custom_call.1} parent=75 // pred_region
          %483 = dma.done [#allocation3], 16
        $region80: #{tpu_custom_call.1} parent=75 // pred_fallthru
          _
        // Predicated region
        $region81: #{tpu_custom_call.1} parent=75 // pred_check
          %p484 = pneg %p121
        $region82: #{tpu_custom_call.1} parent=75 // pred_check_branch
          %486 = sbr.rel (%p484) target = $region84
        $region83: #{tpu_custom_call.1} parent=75 // pred_region
          %487 = dma.done [#allocation6], 16
        $region84: #{tpu_custom_call.1} parent=75 // pred_fallthru
          _
        // Predicated region
        $region85: #{tpu_custom_call.1} parent=75 // pred_check
          %p488 = pneg %p163
        $region86: #{tpu_custom_call.1} parent=75 // pred_check_branch
          %490 = sbr.rel (%p488) target = $region88
        $region87: #{tpu_custom_call.1} parent=75 // pred_region
          %491 = dma.done [#allocation6], 16
        $region88: #{tpu_custom_call.1} parent=75 // pred_fallthru
          _
        // Predicated region
        $region89: #{tpu_custom_call.1} parent=75 // pred_check
          %p492 = pneg %p205
        $region90: #{tpu_custom_call.1} parent=75 // pred_check_branch
          %494 = sbr.rel (%p492) target = $region92
        $region91: #{tpu_custom_call.1} parent=75 // pred_region
          %495 = dma.done [#allocation9], 16
        $region92: #{tpu_custom_call.1} parent=75 // pred_fallthru
          _
        // Predicated region
        $region93: #{tpu_custom_call.1} parent=75 // pred_check
          %p496 = pneg %p226
        $region94: #{tpu_custom_call.1} parent=75 // pred_check_branch
          %498 = sbr.rel (%p496) target = $region96
        $region95: #{tpu_custom_call.1} parent=75 // pred_region
          %499 = dma.done [#allocation9], 16
        $region96: #{tpu_custom_call.1} parent=75 // pred_fallthru
          _
        // Predicated region
        $region97: #{tpu_custom_call.1} parent=75 // pred_check
          %p500 = pneg %p247
        $region98: #{tpu_custom_call.1} parent=75 // pred_check_branch
          %502 = sbr.rel (%p500) target = $region100
        $region99: #{tpu_custom_call.1} parent=75 // pred_region
          %503 = dma.done [#allocation12], 16
        $region100: #{tpu_custom_call.1} parent=75 // pred_fallthru
          _
        %p504 = scmp.lt.s32.totalorder %s32, 1
        %s505 = scalar_select %p504, %s32, 1
        %s506 = smul.addr %s505, 8
        %s507 = scalar_lea.vmem %s0, %s506
        %p508 = pneg %p53
        %p509 = pneg %p50
        %p510 = scmp.lt.s32.totalorder %s32, 1
        %s511 = scalar_select %p510, %s32, 1
        %s512 = scalar_lea.vmem %s1, %s511
        %p513 = pneg %p79
        %p514 = pneg %p76
        %p515 = pneg %p100
        %p516 = pneg %p97
        %p517 = pneg %p121
        %p518 = pneg %p118
        %p519 = pneg %p142
        %p520 = pneg %p139
        %p521 = pneg %p163
        %p522 = pneg %p160
        %p523 = pneg %p184
        %p524 = pneg %p181
        %p525 = pneg %p205
        %p526 = pneg %p202
        %p527 = pneg %p226
        %p528 = pneg %p223
        %p529 = pneg %p247
        %p530 = pneg %p244
        %p531 = pneg %p268
        %p532 = pneg %p265
        %p533 = pneg %p289
        %p534 = pneg %p286
        %p535 = pneg %p310
        %p536 = pneg %p307
        %p537 = pneg %p331
        %p538 = pneg %p328
        %p539 = pneg %p357
        %p540 = pneg %p354
        %s541 = sand.u32 %s344, 1
        %s542 = scalar_lea.sflag [#allocation4], %s541
        %s543 = sand.u32 %s344, 1
        %s544 = smul.addr %s543, 8
        %s545 = scalar_lea.vmem [#allocation13], %s544
        %p546 = scmp.lt.s32.totalorder %s32, 1
        %s547 = scalar_select %p546, %s32, 1
        %s548 = smul.addr %s547, 8
        %s549 = scalar_lea.vmem %s0, %s548
        %p550 = scmp.lt.s32.totalorder %s32, 1
        %s551 = scalar_select %p550, %s32, 1
        %s552 = scalar_lea.vmem %s1, %s551
        %v554 = vld [vmem:[%s549] sm:$0xff]
        %v555 = vld [vmem:[%s552] sm:$0x1]
        %v556 = vmul.f32 %v555, -1e+18
        %v557 = vld [vmem:[#allocation2] sm:$0x1]
        %v558 = vld [vmem:[#allocation5] sm:$0x1]
        %vm559 = vcmask 261120
        %v560 = vsel %vm559, %v554, 0.0
        %561 = vadd.xlane.f32.xlu0 %v560
        %v562 = vpop.xlane.xlu0 %561
        %v563 = vrcp.pop 32.0
        %v564 = vmul.f32 %v562, %v563
        %v565 = vsub.f32 %v554, %v564
        %v566 = vmul.f32 %v565, %v565
        %v567 = vsel %vm559, %v566, 0.0
        %568 = vadd.xlane.f32.xlu0 %v567
        %v569 = vpop.xlane.xlu0 %568
        %v570 = vmul.f32 %v569, 0.032258064
        %v571 = vrsqrt.pop %v570
        %v572 = vmul.f32 %v570, %v571
        %vm573 = vcmp.eq.f32.partialorder %v570, inf
        %v574 = vsel %vm573, %v570, %v572
        %vm575 = vcmp.eq.f32.partialorder %v570, 0.0
        %v576 = vand.u32 %v570, 2147483648
        %v577 = vsel %vm575, %v576, %v574
        %v578 = vadd.f32 %v577, 1e-06
        %v579 = vrcp.pop %v578
        %v580 = vmul.f32 %v565, %v579
        %v582 = vlaneseq
        %v583 = vshrl.u32 %v582, 7
        %v584 = vsub.s32 0, %v583
        %v585 = vrot.slane %v557, %v584
        %v587 = vmul.f32 %v585, %v580
        %v589 = vlaneseq
        %v590 = vshrl.u32 %v589, 7
        %v591 = vsub.s32 0, %v590
        %v592 = vrot.slane %v558, %v591
        %v594 = vadd.f32 %v587, %v592
        %v595 = vpack.c.bf16 %v594, %v594
        %v596 = vld [vmem:[%s4] sm:$0xf]
        %v597 = vld [vmem:[%s4 + $0x4] sm:$0xf]
        %v598 = vld [vmem:[%s4 + $0x8] sm:$0xf]
        %v599 = vld [vmem:[%s4 + $0xc] sm:$0xf]
        %v600 = vld [vmem:[#allocation7] sm:$0x1]
        %v602 = vlaneseq
        %v603 = vshrl.u32 %v602, 7
        %v604 = vsub.s32 0, %v603
        %v605 = vrot.slane %v600, %v604
        %v611 = vunpack.c.l.b16 %v596
        %v612 = vunpack.c.l.b16 %v597
        %v613 = vunpack.c.l.b16 %v598
        %v614 = vunpack.c.l.b16 %v599
        %v615 = vpack.c.b16 %v612, %v611
        %v616 = vpack.c.b16 %v614, %v613
        %v620 = vsel %vm559, %v595, 0
        %622 = vmatprep.subr.bf16.mxu0 0
        %623 = vmatpush1.bf16.msra.mxu0 %v615
        %624 = vmatprep.subr.bf16.mxu0 0
        %625 = vmatpush1.bf16.msra.mxu0 %v616
        %626 = vmatprep.subr.bf16.mxu0 0
        %627 = vmatpush1.bf16.msra.mxu0 0
        %628 = vmatprep.subr.bf16.mxu0 0
        %629 = vmatpush1.bf16.msra.mxu0 0
        %630 = vmatprep.subr.bf16.mxu0 0
        %631 = vmatpush1.bf16.msra.mxu0 0
        %632 = vmatprep.subr.bf16.mxu0 0
        %633 = vmatpush1.bf16.msra.mxu0 0
        %634 = vmatprep.subr.bf16.mxu0 0
        %635 = vmatpush1.bf16.msra.mxu0 0
        %636 = vmatprep.subr.bf16.mxu0 0
        %637 = vmatpush1.bf16.msra.mxu0 0
        %638 = vmatprep.subr.bf16.mxu0 0
        %639 = vmatpush1.bf16.msra.mxu0 0
        %640 = vmatprep.subr.bf16.mxu0 0
        %641 = vmatpush1.bf16.msra.mxu0 0
        %642 = vmatprep.subr.bf16.mxu0 0
        %643 = vmatpush1.bf16.msra.mxu0 0
        %644 = vmatprep.subr.bf16.mxu0 0
        %645 = vmatpush1.bf16.msra.mxu0 0
        %646 = vmatprep.subr.bf16.mxu0 0
        %647 = vmatpush1.bf16.msra.mxu0 0
        %648 = vmatprep.subr.bf16.mxu0 0
        %649 = vmatpush1.bf16.msra.mxu0 0
        %650 = vmatprep.subr.bf16.mxu0 0
        %651 = vmatpush1.bf16.msra.mxu0 0
        %652 = vmatprep.subr.bf16.mxu0 0
        %653 = vmatpush1.bf16.msra.mxu0 0
        %654 = vmatprep.mubr.bf16.mxu0 0
        %655 = vmatmul.mubr.bf16.gmra.mrb[0].mxu0 %v620
        %v656 = vpop.f32.mrb[0].mxu0
        %v657 = vadd.f32 %v605, %v656
        %v658 = vpop.f32.mrb[0].mxu0
        %v659 = vpop.f32.mrb[0].mxu0
        %v660 = vpop.f32.mrb[0].mxu0
        %661 = vdwg.mxu0
        %v662 = vld [vmem:[#allocation8] sm:$0x1]
        %v664 = vlaneseq
        %v665 = vshrl.u32 %v664, 7
        %v666 = vsub.s32 0, %v665
        %v667 = vrot.slane %v662, %v666
        %v669 = vadd.f32 %v554, %v667
        %v670 = vpack.c.bf16 %v657, %v657
        %v672 = vlaneseq
        %v673 = vshrl.u32 %v672, 7
        %v674 = vsub.s32 0, %v673
        %v675 = vrot.slane %v556, %v674
        %678 = vrot.lane.b32.xlu0 %v670, 96
        %v679 = vpop.permute.xlu0 %678
        %vm680 = vcmask 64512
        %v682 = vsel %vm680, %v670, 0
        %v685 = vsel %vm680, %v679, 0
        %687 = vmatprep.subr.bf16.mxu0 0
        %688 = vmatpush1.bf16.xpose.msra.mxu0 %v685
        %689 = vmatprep.subr.bf16.mxu0 0
        %690 = vmatpush1.bf16.xpose.msra.mxu0 0
        %691 = vmatprep.subr.bf16.mxu0 0
        %692 = vmatpush1.bf16.xpose.msra.mxu0 0
        %693 = vmatprep.subr.bf16.mxu0 0
        %694 = vmatpush1.bf16.xpose.msra.mxu0 0
        %695 = vmatprep.subr.bf16.mxu0 0
        %696 = vmatpush1.bf16.xpose.msra.mxu0 0
        %697 = vmatprep.subr.bf16.mxu0 0
        %698 = vmatpush1.bf16.xpose.msra.mxu0 0
        %699 = vmatprep.subr.bf16.mxu0 0
        %700 = vmatpush1.bf16.xpose.msra.mxu0 0
        %701 = vmatprep.subr.bf16.mxu0 0
        %702 = vmatpush1.bf16.xpose.msra.mxu0 0
        %703 = vmatprep.subr.bf16.mxu0 0
        %704 = vmatpush1.bf16.xpose.msra.mxu0 0
        %705 = vmatprep.subr.bf16.mxu0 0
        %706 = vmatpush1.bf16.xpose.msra.mxu0 0
        %707 = vmatprep.subr.bf16.mxu0 0
        %708 = vmatpush1.bf16.xpose.msra.mxu0 0
        %709 = vmatprep.subr.bf16.mxu0 0
        %710 = vmatpush1.bf16.xpose.msra.mxu0 0
        %711 = vmatprep.subr.bf16.mxu0 0
        %712 = vmatpush1.bf16.xpose.msra.mxu0 0
        %713 = vmatprep.subr.bf16.mxu0 0
        %714 = vmatpush1.bf16.xpose.msra.mxu0 0
        %715 = vmatprep.subr.bf16.mxu0 0
        %716 = vmatpush1.bf16.xpose.msra.mxu0 0
        %717 = vmatprep.subr.bf16.mxu0 0
        %718 = vmatpush1.bf16.xpose.msra.mxu0 0
        %719 = vmatprep.mubr.bf16.mxu0 0
        %720 = vmatmul.mubr.bf16.gmra.mrb[0].mxu0 %v682
        %v721 = vpop.f32.mrb[0].mxu0
        %v722 = vadd.f32 %v675, %v721
        %v723 = vpop.f32.mrb[0].mxu0
        %v724 = vpop.f32.mrb[0].mxu0
        %v725 = vpop.f32.mrb[0].mxu0
        %726 = vdwg.mxu0
        %v727 = vsel %vm680, %v722, -inf
        %728 = vmax.xlane.f32.xlu0 %v727
        %v729 = vpop.xlane.xlu0 %728
        %v730 = vsub.f32 %v722, %v729
        %v731 = vmul.f32 %v730, 1.442695
        %v732 = vpow.pop %v731
        %v733 = vsel %vm680, %v732, 0.0
        %734 = vadd.xlane.f32.xlu0 %v733
        %v735 = vpop.xlane.xlu0 %734
        %v736 = vrcp.pop %v735
        %v737 = vmul.f32 %v732, %v736
        %v738 = vpack.c.bf16 %v737, %v737
        %739 = vrot.lane.b32.xlu0 %v670, 64
        %v740 = vpop.permute.xlu0 %739
        %v742 = vsel %vm680, %v738, 0
        %vm744 = vcmask 1043456
        %v746 = vsel %vm744, %v740, 0
        %748 = vmatprep.subr.bf16.mxu0 0
        %749 = vmatpush1.bf16.msra.mxu0 %v746
        %750 = vmatprep.subr.bf16.mxu0 0
        %751 = vmatpush1.bf16.msra.mxu0 0
        %752 = vmatprep.subr.bf16.mxu0 0
        %753 = vmatpush1.bf16.msra.mxu0 0
        %754 = vmatprep.subr.bf16.mxu0 0
        %755 = vmatpush1.bf16.msra.mxu0 0
        %756 = vmatprep.subr.bf16.mxu0 0
        %757 = vmatpush1.bf16.msra.mxu0 0
        %758 = vmatprep.subr.bf16.mxu0 0
        %759 = vmatpush1.bf16.msra.mxu0 0
        %760 = vmatprep.subr.bf16.mxu0 0
        %761 = vmatpush1.bf16.msra.mxu0 0
        %762 = vmatprep.subr.bf16.mxu0 0
        %763 = vmatpush1.bf16.msra.mxu0 0
        %764 = vmatprep.subr.bf16.mxu0 0
        %765 = vmatpush1.bf16.msra.mxu0 0
        %766 = vmatprep.subr.bf16.mxu0 0
        %767 = vmatpush1.bf16.msra.mxu0 0
        %768 = vmatprep.subr.bf16.mxu0 0
        %769 = vmatpush1.bf16.msra.mxu0 0
        %770 = vmatprep.subr.bf16.mxu0 0
        %771 = vmatpush1.bf16.msra.mxu0 0
        %772 = vmatprep.subr.bf16.mxu0 0
        %773 = vmatpush1.bf16.msra.mxu0 0
        %774 = vmatprep.subr.bf16.mxu0 0
        %775 = vmatpush1.bf16.msra.mxu0 0
        %776 = vmatprep.subr.bf16.mxu0 0
        %777 = vmatpush1.bf16.msra.mxu0 0
        %778 = vmatprep.subr.bf16.mxu0 0
        %779 = vmatpush1.bf16.msra.mxu0 0
        %780 = vmatprep.mubr.bf16.mxu0 0
        %781 = vmatmul.mubr.bf16.gmra.mrb[0].mxu0 %v742
        %v782 = vpop.f32.mrb[0].mxu0
        %v783 = vadd.f32 0.0, %v782
        %v784 = vpop.f32.mrb[0].mxu0
        %v785 = vpop.f32.mrb[0].mxu0
        %v786 = vpop.f32.mrb[0].mxu0
        %787 = vdwg.mxu0
        %v788 = vpack.c.bf16 %v783, %v783
        %v789 = vld [vmem:[%s6] sm:$0xf]
        %v791 = vsel %vm680, %v788, 0
        %v794 = vsel %vm744, %v789, 0
        %796 = vmatprep.subr.bf16.mxu0 0
        %797 = vmatpush1.bf16.msra.mxu0 %v794
        %798 = vmatprep.subr.bf16.mxu0 0
        %799 = vmatpush1.bf16.msra.mxu0 0
        %800 = vmatprep.subr.bf16.mxu0 0
        %801 = vmatpush1.bf16.msra.mxu0 0
        %802 = vmatprep.subr.bf16.mxu0 0
        %803 = vmatpush1.bf16.msra.mxu0 0
        %804 = vmatprep.subr.bf16.mxu0 0
        %805 = vmatpush1.bf16.msra.mxu0 0
        %806 = vmatprep.subr.bf16.mxu0 0
        %807 = vmatpush1.bf16.msra.mxu0 0
        %808 = vmatprep.subr.bf16.mxu0 0
        %809 = vmatpush1.bf16.msra.mxu0 0
        %810 = vmatprep.subr.bf16.mxu0 0
        %811 = vmatpush1.bf16.msra.mxu0 0
        %812 = vmatprep.subr.bf16.mxu0 0
        %813 = vmatpush1.bf16.msra.mxu0 0
        %814 = vmatprep.subr.bf16.mxu0 0
        %815 = vmatpush1.bf16.msra.mxu0 0
        %816 = vmatprep.subr.bf16.mxu0 0
        %817 = vmatpush1.bf16.msra.mxu0 0
        %818 = vmatprep.subr.bf16.mxu0 0
        %819 = vmatpush1.bf16.msra.mxu0 0
        %820 = vmatprep.subr.bf16.mxu0 0
        %821 = vmatpush1.bf16.msra.mxu0 0
        %822 = vmatprep.subr.bf16.mxu0 0
        %823 = vmatpush1.bf16.msra.mxu0 0
        %824 = vmatprep.subr.bf16.mxu0 0
        %825 = vmatpush1.bf16.msra.mxu0 0
        %826 = vmatprep.subr.bf16.mxu0 0
        %827 = vmatpush1.bf16.msra.mxu0 0
        %828 = vmatprep.mubr.bf16.mxu0 0
        %829 = vmatmul.mubr.bf16.gmra.mrb[0].mxu0 %v791
        %v830 = vpop.f32.mrb[0].mxu0
        %v831 = vadd.f32 0.0, %v830
        %v832 = vpop.f32.mrb[0].mxu0
        %v833 = vpop.f32.mrb[0].mxu0
        %v834 = vpop.f32.mrb[0].mxu0
        %835 = vdwg.mxu0
        %v836 = vadd.f32 %v669, %v831
        %837 = vrot.lane.b32.xlu0 %v670, 120
        %v838 = vpop.permute.xlu0 %837
        %839 = vrot.lane.b32.xlu0 %v670, 88
        %v840 = vpop.permute.xlu0 %839
        %v842 = vsel %vm680, %v838, 0
        %v845 = vsel %vm680, %v840, 0
        %847 = vmatprep.subr.bf16.mxu0 0
        %848 = vmatpush1.bf16.xpose.msra.mxu0 %v845
        %849 = vmatprep.subr.bf16.mxu0 0
        %850 = vmatpush1.bf16.xpose.msra.mxu0 0
        %851 = vmatprep.subr.bf16.mxu0 0
        %852 = vmatpush1.bf16.xpose.msra.mxu0 0
        %853 = vmatprep.subr.bf16.mxu0 0
        %854 = vmatpush1.bf16.xpose.msra.mxu0 0
        %855 = vmatprep.subr.bf16.mxu0 0
        %856 = vmatpush1.bf16.xpose.msra.mxu0 0
        %857 = vmatprep.subr.bf16.mxu0 0
        %858 = vmatpush1.bf16.xpose.msra.mxu0 0
        %859 = vmatprep.subr.bf16.mxu0 0
        %860 = vmatpush1.bf16.xpose.msra.mxu0 0
        %861 = vmatprep.subr.bf16.mxu0 0
        %862 = vmatpush1.bf16.xpose.msra.mxu0 0
        %863 = vmatprep.subr.bf16.mxu0 0
        %864 = vmatpush1.bf16.xpose.msra.mxu0 0
        %865 = vmatprep.subr.bf16.mxu0 0
        %866 = vmatpush1.bf16.xpose.msra.mxu0 0
        %867 = vmatprep.subr.bf16.mxu0 0
        %868 = vmatpush1.bf16.xpose.msra.mxu0 0
        %869 = vmatprep.subr.bf16.mxu0 0
        %870 = vmatpush1.bf16.xpose.msra.mxu0 0
        %871 = vmatprep.subr.bf16.mxu0 0
        %872 = vmatpush1.bf16.xpose.msra.mxu0 0
        %873 = vmatprep.subr.bf16.mxu0 0
        %874 = vmatpush1.bf16.xpose.msra.mxu0 0
        %875 = vmatprep.subr.bf16.mxu0 0
        %876 = vmatpush1.bf16.xpose.msra.mxu0 0
        %877 = vmatprep.subr.bf16.mxu0 0
        %878 = vmatpush1.bf16.xpose.msra.mxu0 0
        %879 = vmatprep.mubr.bf16.mxu0 0
        %880 = vmatmul.mubr.bf16.gmra.mrb[0].mxu0 %v842
        %v881 = vpop.f32.mrb[0].mxu0
        %v882 = vadd.f32 %v675, %v881
        %v883 = vpop.f32.mrb[0].mxu0
        %v884 = vpop.f32.mrb[0].mxu0
        %v885 = vpop.f32.mrb[0].mxu0
        %886 = vdwg.mxu0
        %v887 = vsel %vm680, %v882, -inf
        %888 = vmax.xlane.f32.xlu0 %v887
        %v889 = vpop.xlane.xlu0 %888
        %v890 = vsub.f32 %v882, %v889
        %v891 = vmul.f32 %v890, 1.442695
        %v892 = vpow.pop %v891
        %v893 = vsel %vm680, %v892, 0.0
        %894 = vadd.xlane.f32.xlu0 %v893
        %v895 = vpop.xlane.xlu0 %894
        %v896 = vrcp.pop %v895
        %v897 = vmul.f32 %v892, %v896
        %v898 = vpack.c.bf16 %v897, %v897
        %899 = vrot.lane.b32.xlu0 %v670, 56
        %v900 = vpop.permute.xlu0 %899
        %v902 = vsel %vm680, %v898, 0
        %v905 = vsel %vm744, %v900, 0
        %907 = vmatprep.subr.bf16.mxu0 0
        %908 = vmatpush1.bf16.msra.mxu0 %v905
        %909 = vmatprep.subr.bf16.mxu0 0
        %910 = vmatpush1.bf16.msra.mxu0 0
        %911 = vmatprep.subr.bf16.mxu0 0
        %912 = vmatpush1.bf16.msra.mxu0 0
        %913 = vmatprep.subr.bf16.mxu0 0
        %914 = vmatpush1.bf16.msra.mxu0 0
        %915 = vmatprep.subr.bf16.mxu0 0
        %916 = vmatpush1.bf16.msra.mxu0 0
        %917 = vmatprep.subr.bf16.mxu0 0
        %918 = vmatpush1.bf16.msra.mxu0 0
        %919 = vmatprep.subr.bf16.mxu0 0
        %920 = vmatpush1.bf16.msra.mxu0 0
        %921 = vmatprep.subr.bf16.mxu0 0
        %922 = vmatpush1.bf16.msra.mxu0 0
        %923 = vmatprep.subr.bf16.mxu0 0
        %924 = vmatpush1.bf16.msra.mxu0 0
        %925 = vmatprep.subr.bf16.mxu0 0
        %926 = vmatpush1.bf16.msra.mxu0 0
        %927 = vmatprep.subr.bf16.mxu0 0
        %928 = vmatpush1.bf16.msra.mxu0 0
        %929 = vmatprep.subr.bf16.mxu0 0
        %930 = vmatpush1.bf16.msra.mxu0 0
        %931 = vmatprep.subr.bf16.mxu0 0
        %932 = vmatpush1.bf16.msra.mxu0 0
        %933 = vmatprep.subr.bf16.mxu0 0
        %934 = vmatpush1.bf16.msra.mxu0 0
        %935 = vmatprep.subr.bf16.mxu0 0
        %936 = vmatpush1.bf16.msra.mxu0 0
        %937 = vmatprep.subr.bf16.mxu0 0
        %938 = vmatpush1.bf16.msra.mxu0 0
        %939 = vmatprep.mubr.bf16.mxu0 0
        %940 = vmatmul.mubr.bf16.gmra.mrb[0].mxu0 %v902
        %v941 = vpop.f32.mrb[0].mxu0
        %v942 = vadd.f32 0.0, %v941
        %v943 = vpop.f32.mrb[0].mxu0
        %v944 = vpop.f32.mrb[0].mxu0
        %v945 = vpop.f32.mrb[0].mxu0
        %946 = vdwg.mxu0
        %v947 = vpack.c.bf16 %v942, %v942
        %s948 = scalar_lea.vmem %s6, 4
        %v949 = vld [vmem:[%s948] sm:$0xf]
        %v951 = vsel %vm680, %v947, 0
        %v954 = vsel %vm744, %v949, 0
        %956 = vmatprep.subr.bf16.mxu0 0
        %957 = vmatpush1.bf16.msra.mxu0 %v954
        %958 = vmatprep.subr.bf16.mxu0 0
        %959 = vmatpush1.bf16.msra.mxu0 0
        %960 = vmatprep.subr.bf16.mxu0 0
        %961 = vmatpush1.bf16.msra.mxu0 0
        %962 = vmatprep.subr.bf16.mxu0 0
        %963 = vmatpush1.bf16.msra.mxu0 0
        %964 = vmatprep.subr.bf16.mxu0 0
        %965 = vmatpush1.bf16.msra.mxu0 0
        %966 = vmatprep.subr.bf16.mxu0 0
        %967 = vmatpush1.bf16.msra.mxu0 0
        %968 = vmatprep.subr.bf16.mxu0 0
        %969 = vmatpush1.bf16.msra.mxu0 0
        %970 = vmatprep.subr.bf16.mxu0 0
        %971 = vmatpush1.bf16.msra.mxu0 0
        %972 = vmatprep.subr.bf16.mxu0 0
        %973 = vmatpush1.bf16.msra.mxu0 0
        %974 = vmatprep.subr.bf16.mxu0 0
        %975 = vmatpush1.bf16.msra.mxu0 0
        %976 = vmatprep.subr.bf16.mxu0 0
        %977 = vmatpush1.bf16.msra.mxu0 0
        %978 = vmatprep.subr.bf16.mxu0 0
        %979 = vmatpush1.bf16.msra.mxu0 0
        %980 = vmatprep.subr.bf16.mxu0 0
        %981 = vmatpush1.bf16.msra.mxu0 0
        %982 = vmatprep.subr.bf16.mxu0 0
        %983 = vmatpush1.bf16.msra.mxu0 0
        %984 = vmatprep.subr.bf16.mxu0 0
        %985 = vmatpush1.bf16.msra.mxu0 0
        %986 = vmatprep.subr.bf16.mxu0 0
        %987 = vmatpush1.bf16.msra.mxu0 0
        %988 = vmatprep.mubr.bf16.mxu0 0
        %989 = vmatmul.mubr.bf16.gmra.mrb[0].mxu0 %v951
        %v990 = vpop.f32.mrb[0].mxu0
        %v991 = vadd.f32 0.0, %v990
        %v992 = vpop.f32.mrb[0].mxu0
        %v993 = vpop.f32.mrb[0].mxu0
        %v994 = vpop.f32.mrb[0].mxu0
        %995 = vdwg.mxu0
        %v996 = vadd.f32 %v836, %v991
        %997 = vrot.lane.b32.xlu0 %v670, 112
        %v998 = vpop.permute.xlu0 %997
        %999 = vrot.lane.b32.xlu0 %v670, 80
        %v1000 = vpop.permute.xlu0 %999
        %v1002 = vsel %vm680, %v998, 0
        %v1005 = vsel %vm680, %v1000, 0
        %1007 = vmatprep.subr.bf16.mxu0 0
        %1008 = vmatpush1.bf16.xpose.msra.mxu0 %v1005
        %1009 = vmatprep.subr.bf16.mxu0 0
        %1010 = vmatpush1.bf16.xpose.msra.mxu0 0
        %1011 = vmatprep.subr.bf16.mxu0 0
        %1012 = vmatpush1.bf16.xpose.msra.mxu0 0
        %1013 = vmatprep.subr.bf16.mxu0 0
        %1014 = vmatpush1.bf16.xpose.msra.mxu0 0
        %1015 = vmatprep.subr.bf16.mxu0 0
        %1016 = vmatpush1.bf16.xpose.msra.mxu0 0
        %1017 = vmatprep.subr.bf16.mxu0 0
        %1018 = vmatpush1.bf16.xpose.msra.mxu0 0
        %1019 = vmatprep.subr.bf16.mxu0 0
        %1020 = vmatpush1.bf16.xpose.msra.mxu0 0
        %1021 = vmatprep.subr.bf16.mxu0 0
        %1022 = vmatpush1.bf16.xpose.msra.mxu0 0
        %1023 = vmatprep.subr.bf16.mxu0 0
        %1024 = vmatpush1.bf16.xpose.msra.mxu0 0
        %1025 = vmatprep.subr.bf16.mxu0 0
        %1026 = vmatpush1.bf16.xpose.msra.mxu0 0
        %1027 = vmatprep.subr.bf16.mxu0 0
        %1028 = vmatpush1.bf16.xpose.msra.mxu0 0
        %1029 = vmatprep.subr.bf16.mxu0 0
        %1030 = vmatpush1.bf16.xpose.msra.mxu0 0
        %1031 = vmatprep.subr.bf16.mxu0 0
        %1032 = vmatpush1.bf16.xpose.msra.mxu0 0
        %1033 = vmatprep.subr.bf16.mxu0 0
        %1034 = vmatpush1.bf16.xpose.msra.mxu0 0
        %1035 = vmatprep.subr.bf16.mxu0 0
        %1036 = vmatpush1.bf16.xpose.msra.mxu0 0
        %1037 = vmatprep.subr.bf16.mxu0 0
        %1038 = vmatpush1.bf16.xpose.msra.mxu0 0
        %1039 = vmatprep.mubr.bf16.mxu0 0
        %1040 = vmatmul.mubr.bf16.gmra.mrb[0].mxu0 %v1002
        %v1041 = vpop.f32.mrb[0].mxu0
        %v1042 = vadd.f32 %v675, %v1041
        %v1043 = vpop.f32.mrb[0].mxu0
        %v1044 = vpop.f32.mrb[0].mxu0
        %v1045 = vpop.f32.mrb[0].mxu0
        %1046 = vdwg.mxu0
        %v1047 = vsel %vm680, %v1042, -inf
        %1048 = vmax.xlane.f32.xlu0 %v1047
        %v1049 = vpop.xlane.xlu0 %1048
        %v1050 = vsub.f32 %v1042, %v1049
        %v1051 = vmul.f32 %v1050, 1.442695
        %v1052 = vpow.pop %v1051
        %v1053 = vsel %vm680, %v1052, 0.0
        %1054 = vadd.xlane.f32.xlu0 %v1053
        %v1055 = vpop.xlane.xlu0 %1054
        %v1056 = vrcp.pop %v1055
        %v1057 = vmul.f32 %v1052, %v1056
        %v1058 = vpack.c.bf16 %v1057, %v1057
        %1059 = vrot.lane.b32.xlu0 %v670, 48
        %v1060 = vpop.permute.xlu0 %1059
        %v1062 = vsel %vm680, %v1058, 0
        %v1065 = vsel %vm744, %v1060, 0
        %1067 = vmatprep.subr.bf16.mxu0 0
        %1068 = vmatpush1.bf16.msra.mxu0 %v1065
        %1069 = vmatprep.subr.bf16.mxu0 0
        %1070 = vmatpush1.bf16.msra.mxu0 0
        %1071 = vmatprep.subr.bf16.mxu0 0
        %1072 = vmatpush1.bf16.msra.mxu0 0
        %1073 = vmatprep.subr.bf16.mxu0 0
        %1074 = vmatpush1.bf16.msra.mxu0 0
        %1075 = vmatprep.subr.bf16.mxu0 0
        %1076 = vmatpush1.bf16.msra.mxu0 0
        %1077 = vmatprep.subr.bf16.mxu0 0
        %1078 = vmatpush1.bf16.msra.mxu0 0
        %1079 = vmatprep.subr.bf16.mxu0 0
        %1080 = vmatpush1.bf16.msra.mxu0 0
        %1081 = vmatprep.subr.bf16.mxu0 0
        %1082 = vmatpush1.bf16.msra.mxu0 0
        %1083 = vmatprep.subr.bf16.mxu0 0
        %1084 = vmatpush1.bf16.msra.mxu0 0
        %1085 = vmatprep.subr.bf16.mxu0 0
        %1086 = vmatpush1.bf16.msra.mxu0 0
        %1087 = vmatprep.subr.bf16.mxu0 0
        %1088 = vmatpush1.bf16.msra.mxu0 0
        %1089 = vmatprep.subr.bf16.mxu0 0
        %1090 = vmatpush1.bf16.msra.mxu0 0
        %1091 = vmatprep.subr.bf16.mxu0 0
        %1092 = vmatpush1.bf16.msra.mxu0 0
        %1093 = vmatprep.subr.bf16.mxu0 0
        %1094 = vmatpush1.bf16.msra.mxu0 0
        %1095 = vmatprep.subr.bf16.mxu0 0
        %1096 = vmatpush1.bf16.msra.mxu0 0
        %1097 = vmatprep.subr.bf16.mxu0 0
        %1098 = vmatpush1.bf16.msra.mxu0 0
        %1099 = vmatprep.mubr.bf16.mxu0 0
        %1100 = vmatmul.mubr.bf16.gmra.mrb[0].mxu0 %v1062
        %v1101 = vpop.f32.mrb[0].mxu0
        %v1102 = vadd.f32 0.0, %v1101
        %v1103 = vpop.f32.mrb[0].mxu0
        %v1104 = vpop.f32.mrb[0].mxu0
        %v1105 = vpop.f32.mrb[0].mxu0
        %1106 = vdwg.mxu0
        %v1107 = vpack.c.bf16 %v1102, %v1102
        %s1108 = scalar_lea.vmem %s6, 8
        %v1109 = vld [vmem:[%s1108] sm:$0xf]
        %v1111 = vsel %vm680, %v1107, 0
        %v1114 = vsel %vm744, %v1109, 0
        %1116 = vmatprep.subr.bf16.mxu0 0
        %1117 = vmatpush1.bf16.msra.mxu0 %v1114
        %1118 = vmatprep.subr.bf16.mxu0 0
        %1119 = vmatpush1.bf16.msra.mxu0 0
        %1120 = vmatprep.subr.bf16.mxu0 0
        %1121 = vmatpush1.bf16.msra.mxu0 0
        %1122 = vmatprep.subr.bf16.mxu0 0
        %1123 = vmatpush1.bf16.msra.mxu0 0
        %1124 = vmatprep.subr.bf16.mxu0 0
        %1125 = vmatpush1.bf16.msra.mxu0 0
        %1126 = vmatprep.subr.bf16.mxu0 0
        %1127 = vmatpush1.bf16.msra.mxu0 0
        %1128 = vmatprep.subr.bf16.mxu0 0
        %1129 = vmatpush1.bf16.msra.mxu0 0
        %1130 = vmatprep.subr.bf16.mxu0 0
        %1131 = vmatpush1.bf16.msra.mxu0 0
        %1132 = vmatprep.subr.bf16.mxu0 0
        %1133 = vmatpush1.bf16.msra.mxu0 0
        %1134 = vmatprep.subr.bf16.mxu0 0
        %1135 = vmatpush1.bf16.msra.mxu0 0
        %1136 = vmatprep.subr.bf16.mxu0 0
        %1137 = vmatpush1.bf16.msra.mxu0 0
        %1138 = vmatprep.subr.bf16.mxu0 0
        %1139 = vmatpush1.bf16.msra.mxu0 0
        %1140 = vmatprep.subr.bf16.mxu0 0
        %1141 = vmatpush1.bf16.msra.mxu0 0
        %1142 = vmatprep.subr.bf16.mxu0 0
        %1143 = vmatpush1.bf16.msra.mxu0 0
        %1144 = vmatprep.subr.bf16.mxu0 0
        %1145 = vmatpush1.bf16.msra.mxu0 0
        %1146 = vmatprep.subr.bf16.mxu0 0
        %1147 = vmatpush1.bf16.msra.mxu0 0
        %1148 = vmatprep.mubr.bf16.mxu0 0
        %1149 = vmatmul.mubr.bf16.gmra.mrb[0].mxu0 %v1111
        %v1150 = vpop.f32.mrb[0].mxu0
        %v1151 = vadd.f32 0.0, %v1150
        %v1152 = vpop.f32.mrb[0].mxu0
        %v1153 = vpop.f32.mrb[0].mxu0
        %v1154 = vpop.f32.mrb[0].mxu0
        %1155 = vdwg.mxu0
        %v1156 = vadd.f32 %v996, %v1151
        %1157 = vrot.lane.b32.xlu0 %v670, 104
        %v1158 = vpop.permute.xlu0 %1157
        %1159 = vrot.lane.b32.xlu0 %v670, 72
        %v1160 = vpop.permute.xlu0 %1159
        %v1162 = vsel %vm680, %v1158, 0
        %v1165 = vsel %vm680, %v1160, 0
        %1167 = vmatprep.subr.bf16.mxu0 0
        %1168 = vmatpush1.bf16.xpose.msra.mxu0 %v1165
        %1169 = vmatprep.subr.bf16.mxu0 0
        %1170 = vmatpush1.bf16.xpose.msra.mxu0 0
        %1171 = vmatprep.subr.bf16.mxu0 0
        %1172 = vmatpush1.bf16.xpose.msra.mxu0 0
        %1173 = vmatprep.subr.bf16.mxu0 0
        %1174 = vmatpush1.bf16.xpose.msra.mxu0 0
        %1175 = vmatprep.subr.bf16.mxu0 0
        %1176 = vmatpush1.bf16.xpose.msra.mxu0 0
        %1177 = vmatprep.subr.bf16.mxu0 0
        %1178 = vmatpush1.bf16.xpose.msra.mxu0 0
        %1179 = vmatprep.subr.bf16.mxu0 0
        %1180 = vmatpush1.bf16.xpose.msra.mxu0 0
        %1181 = vmatprep.subr.bf16.mxu0 0
        %1182 = vmatpush1.bf16.xpose.msra.mxu0 0
        %1183 = vmatprep.subr.bf16.mxu0 0
        %1184 = vmatpush1.bf16.xpose.msra.mxu0 0
        %1185 = vmatprep.subr.bf16.mxu0 0
        %1186 = vmatpush1.bf16.xpose.msra.mxu0 0
        %1187 = vmatprep.subr.bf16.mxu0 0
        %1188 = vmatpush1.bf16.xpose.msra.mxu0 0
        %1189 = vmatprep.subr.bf16.mxu0 0
        %1190 = vmatpush1.bf16.xpose.msra.mxu0 0
        %1191 = vmatprep.subr.bf16.mxu0 0
        %1192 = vmatpush1.bf16.xpose.msra.mxu0 0
        %1193 = vmatprep.subr.bf16.mxu0 0
        %1194 = vmatpush1.bf16.xpose.msra.mxu0 0
        %1195 = vmatprep.subr.bf16.mxu0 0
        %1196 = vmatpush1.bf16.xpose.msra.mxu0 0
        %1197 = vmatprep.subr.bf16.mxu0 0
        %1198 = vmatpush1.bf16.xpose.msra.mxu0 0
        %1199 = vmatprep.mubr.bf16.mxu0 0
        %1200 = vmatmul.mubr.bf16.gmra.mrb[0].mxu0 %v1162
        %v1201 = vpop.f32.mrb[0].mxu0
        %v1202 = vadd.f32 %v675, %v1201
        %v1203 = vpop.f32.mrb[0].mxu0
        %v1204 = vpop.f32.mrb[0].mxu0
        %v1205 = vpop.f32.mrb[0].mxu0
        %1206 = vdwg.mxu0
        %v1207 = vsel %vm680, %v1202, -inf
        %1208 = vmax.xlane.f32.xlu0 %v1207
        %v1209 = vpop.xlane.xlu0 %1208
        %v1210 = vsub.f32 %v1202, %v1209
        %v1211 = vmul.f32 %v1210, 1.442695
        %v1212 = vpow.pop %v1211
        %v1213 = vsel %vm680, %v1212, 0.0
        %1214 = vadd.xlane.f32.xlu0 %v1213
        %v1215 = vpop.xlane.xlu0 %1214
        %v1216 = vrcp.pop %v1215
        %v1217 = vmul.f32 %v1212, %v1216
        %v1218 = vpack.c.bf16 %v1217, %v1217
        %1219 = vrot.lane.b32.xlu0 %v670, 40
        %v1220 = vpop.permute.xlu0 %1219
        %v1222 = vsel %vm680, %v1218, 0
        %v1225 = vsel %vm744, %v1220, 0
        %1227 = vmatprep.subr.bf16.mxu0 0
        %1228 = vmatpush1.bf16.msra.mxu0 %v1225
        %1229 = vmatprep.subr.bf16.mxu0 0
        %1230 = vmatpush1.bf16.msra.mxu0 0
        %1231 = vmatprep.subr.bf16.mxu0 0
        %1232 = vmatpush1.bf16.msra.mxu0 0
        %1233 = vmatprep.subr.bf16.mxu0 0
        %1234 = vmatpush1.bf16.msra.mxu0 0
        %1235 = vmatprep.subr.bf16.mxu0 0
        %1236 = vmatpush1.bf16.msra.mxu0 0
        %1237 = vmatprep.subr.bf16.mxu0 0
        %1238 = vmatpush1.bf16.msra.mxu0 0
        %1239 = vmatprep.subr.bf16.mxu0 0
        %1240 = vmatpush1.bf16.msra.mxu0 0
        %1241 = vmatprep.subr.bf16.mxu0 0
        %1242 = vmatpush1.bf16.msra.mxu0 0
        %1243 = vmatprep.subr.bf16.mxu0 0
        %1244 = vmatpush1.bf16.msra.mxu0 0
        %1245 = vmatprep.subr.bf16.mxu0 0
        %1246 = vmatpush1.bf16.msra.mxu0 0
        %1247 = vmatprep.subr.bf16.mxu0 0
        %1248 = vmatpush1.bf16.msra.mxu0 0
        %1249 = vmatprep.subr.bf16.mxu0 0
        %1250 = vmatpush1.bf16.msra.mxu0 0
        %1251 = vmatprep.subr.bf16.mxu0 0
        %1252 = vmatpush1.bf16.msra.mxu0 0
        %1253 = vmatprep.subr.bf16.mxu0 0
        %1254 = vmatpush1.bf16.msra.mxu0 0
        %1255 = vmatprep.subr.bf16.mxu0 0
        %1256 = vmatpush1.bf16.msra.mxu0 0
        %1257 = vmatprep.subr.bf16.mxu0 0
        %1258 = vmatpush1.bf16.msra.mxu0 0
        %1259 = vmatprep.mubr.bf16.mxu0 0
        %1260 = vmatmul.mubr.bf16.gmra.mrb[0].mxu0 %v1222
        %v1261 = vpop.f32.mrb[0].mxu0
        %v1262 = vadd.f32 0.0, %v1261
        %v1263 = vpop.f32.mrb[0].mxu0
        %v1264 = vpop.f32.mrb[0].mxu0
        %v1265 = vpop.f32.mrb[0].mxu0
        %1266 = vdwg.mxu0
        %v1267 = vpack.c.bf16 %v1262, %v1262
        %s1268 = scalar_lea.vmem %s6, 12
        %v1269 = vld [vmem:[%s1268] sm:$0xf]
        %v1271 = vsel %vm680, %v1267, 0
        %v1274 = vsel %vm744, %v1269, 0
        %1276 = vmatprep.subr.bf16.mxu0 0
        %1277 = vmatpush1.bf16.msra.mxu0 %v1274
        %1278 = vmatprep.subr.bf16.mxu0 0
        %1279 = vmatpush1.bf16.msra.mxu0 0
        %1280 = vmatprep.subr.bf16.mxu0 0
        %1281 = vmatpush1.bf16.msra.mxu0 0
        %1282 = vmatprep.subr.bf16.mxu0 0
        %1283 = vmatpush1.bf16.msra.mxu0 0
        %1284 = vmatprep.subr.bf16.mxu0 0
        %1285 = vmatpush1.bf16.msra.mxu0 0
        %1286 = vmatprep.subr.bf16.mxu0 0
        %1287 = vmatpush1.bf16.msra.mxu0 0
        %1288 = vmatprep.subr.bf16.mxu0 0
        %1289 = vmatpush1.bf16.msra.mxu0 0
        %1290 = vmatprep.subr.bf16.mxu0 0
        %1291 = vmatpush1.bf16.msra.mxu0 0
        %1292 = vmatprep.subr.bf16.mxu0 0
        %1293 = vmatpush1.bf16.msra.mxu0 0
        %1294 = vmatprep.subr.bf16.mxu0 0
        %1295 = vmatpush1.bf16.msra.mxu0 0
        %1296 = vmatprep.subr.bf16.mxu0 0
        %1297 = vmatpush1.bf16.msra.mxu0 0
        %1298 = vmatprep.subr.bf16.mxu0 0
        %1299 = vmatpush1.bf16.msra.mxu0 0
        %1300 = vmatprep.subr.bf16.mxu0 0
        %1301 = vmatpush1.bf16.msra.mxu0 0
        %1302 = vmatprep.subr.bf16.mxu0 0
        %1303 = vmatpush1.bf16.msra.mxu0 0
        %1304 = vmatprep.subr.bf16.mxu0 0
        %1305 = vmatpush1.bf16.msra.mxu0 0
        %1306 = vmatprep.subr.bf16.mxu0 0
        %1307 = vmatpush1.bf16.msra.mxu0 0
        %1308 = vmatprep.mubr.bf16.mxu0 0
        %1309 = vmatmul.mubr.bf16.gmra.mrb[0].mxu0 %v1271
        %v1310 = vpop.f32.mrb[0].mxu0
        %v1311 = vadd.f32 0.0, %v1310
        %v1312 = vpop.f32.mrb[0].mxu0
        %v1313 = vpop.f32.mrb[0].mxu0
        %v1314 = vpop.f32.mrb[0].mxu0
        %1315 = vdwg.mxu0
        %v1316 = vadd.f32 %v1156, %v1311
        %v1317 = vld [vmem:[#allocation10] sm:$0x1]
        %v1318 = vld [vmem:[#allocation11] sm:$0x1]
        %v1319 = vsel %vm559, %v1316, 0.0
        %1320 = vadd.xlane.f32.xlu0 %v1319
        %v1321 = vpop.xlane.xlu0 %1320
        %v1322 = vmul.f32 %v1321, %v563
        %v1323 = vsub.f32 %v1316, %v1322
        %v1324 = vmul.f32 %v1323, %v1323
        %v1325 = vsel %vm559, %v1324, 0.0
        %1326 = vadd.xlane.f32.xlu0 %v1325
        %v1327 = vpop.xlane.xlu0 %1326
        %v1328 = vmul.f32 %v1327, 0.032258064
        %v1329 = vrsqrt.pop %v1328
        %v1330 = vmul.f32 %v1328, %v1329
        %vm1331 = vcmp.eq.f32.partialorder %v1328, inf
        %v1332 = vsel %vm1331, %v1328, %v1330
        %vm1333 = vcmp.eq.f32.partialorder %v1328, 0.0
        %v1334 = vand.u32 %v1328, 2147483648
        %v1335 = vsel %vm1333, %v1334, %v1332
        %v1336 = vadd.f32 %v1335, 1e-06
        %v1337 = vrcp.pop %v1336
        %v1338 = vmul.f32 %v1323, %v1337
        %v1340 = vlaneseq
        %v1341 = vshrl.u32 %v1340, 7
        %v1342 = vsub.s32 0, %v1341
        %v1343 = vrot.slane %v1317, %v1342
        %v1345 = vmul.f32 %v1343, %v1338
        %v1347 = vlaneseq
        %v1348 = vshrl.u32 %v1347, 7
        %v1349 = vsub.s32 0, %v1348
        %v1350 = vrot.slane %v1318, %v1349
        %v1352 = vadd.f32 %v1345, %v1350
        %v1353 = vpack.c.bf16 %v1352, %v1352
        %v1354 = vld [vmem:[%s10] sm:$0xf]
        %v1355 = vld [vmem:[%s10 + $0x4] sm:$0xf]
        %v1356 = vld [vmem:[%s10 + $0x8] sm:$0xf]
        %v1357 = vld [vmem:[%s10 + $0xc] sm:$0xf]
        %v1358 = vld [vmem:[%s11] sm:$0x1]
        %v1360 = vlaneseq
        %v1361 = vshrl.u32 %v1360, 7
        %v1362 = vsub.s32 0, %v1361
        %v1363 = vrot.slane %v1358, %v1362
        %v1369 = vunpack.c.l.b16 %v1354
        %v1370 = vunpack.c.l.b16 %v1355
        %v1371 = vunpack.c.l.b16 %v1356
        %v1372 = vunpack.c.l.b16 %v1357
        %v1373 = vpack.c.b16 %v1370, %v1369
        %v1374 = vpack.c.b16 %v1372, %v1371
        %v1378 = vsel %vm559, %v1353, 0
        %1380 = vmatprep.subr.bf16.mxu0 0
        %1381 = vmatpush1.bf16.msra.mxu0 %v1373
        %1382 = vmatprep.subr.bf16.mxu0 0
        %1383 = vmatpush1.bf16.msra.mxu0 %v1374
        %1384 = vmatprep.subr.bf16.mxu0 0
        %1385 = vmatpush1.bf16.msra.mxu0 0
        %1386 = vmatprep.subr.bf16.mxu0 0
        %1387 = vmatpush1.bf16.msra.mxu0 0
        %1388 = vmatprep.subr.bf16.mxu0 0
        %1389 = vmatpush1.bf16.msra.mxu0 0
        %1390 = vmatprep.subr.bf16.mxu0 0
        %1391 = vmatpush1.bf16.msra.mxu0 0
        %1392 = vmatprep.subr.bf16.mxu0 0
        %1393 = vmatpush1.bf16.msra.mxu0 0
        %1394 = vmatprep.subr.bf16.mxu0 0
        %1395 = vmatpush1.bf16.msra.mxu0 0
        %1396 = vmatprep.subr.bf16.mxu0 0
        %1397 = vmatpush1.bf16.msra.mxu0 0
        %1398 = vmatprep.subr.bf16.mxu0 0
        %1399 = vmatpush1.bf16.msra.mxu0 0
        %1400 = vmatprep.subr.bf16.mxu0 0
        %1401 = vmatpush1.bf16.msra.mxu0 0
        %1402 = vmatprep.subr.bf16.mxu0 0
        %1403 = vmatpush1.bf16.msra.mxu0 0
        %1404 = vmatprep.subr.bf16.mxu0 0
        %1405 = vmatpush1.bf16.msra.mxu0 0
        %1406 = vmatprep.subr.bf16.mxu0 0
        %1407 = vmatpush1.bf16.msra.mxu0 0
        %1408 = vmatprep.subr.bf16.mxu0 0
        %1409 = vmatpush1.bf16.msra.mxu0 0
        %1410 = vmatprep.subr.bf16.mxu0 0
        %1411 = vmatpush1.bf16.msra.mxu0 0
        %1412 = vmatprep.mubr.bf16.mxu0 0
        %1413 = vmatmul.mubr.bf16.gmra.mrb[0].mxu0 %v1378
        %v1414 = vpop.f32.mrb[0].mxu0
        %v1415 = vadd.f32 %v1363, %v1414
        %v1416 = vpop.f32.mrb[0].mxu0
        %v1417 = vpop.f32.mrb[0].mxu0
        %v1418 = vpop.f32.mrb[0].mxu0
        %1419 = vdwg.mxu0
        %v1420 = vmax.f32 %v1415, 0.0
        %v1421 = vpack.c.bf16 %v1420, %v1420
        %v1422 = vld [vmem:[%s12] sm:$0xf]
        %v1423 = vld [vmem:[%s12 + $0x4] sm:$0xf]
        %v1424 = vld [vmem:[%s12 + $0x8] sm:$0xf]
        %v1425 = vld [vmem:[%s12 + $0xc] sm:$0xf]
        %v1426 = vld [vmem:[%s12 + $0x10] sm:$0xf]
        %v1427 = vld [vmem:[%s12 + $0x14] sm:$0xf]
        %v1428 = vld [vmem:[%s12 + $0x18] sm:$0xf]
        %v1429 = vld [vmem:[%s12 + $0x1c] sm:$0xf]
        %v1430 = vld [vmem:[%s13] sm:$0x1]
        %v1432 = vlaneseq
        %v1433 = vshrl.u32 %v1432, 7
        %v1434 = vsub.s32 0, %v1433
        %v1435 = vrot.slane %v1430, %v1434
        %v1445 = vunpack.c.l.b16 %v1422
        %v1446 = vunpack.c.l.b16 %v1423
        %v1447 = vunpack.c.l.b16 %v1424
        %v1448 = vunpack.c.l.b16 %v1425
        %v1449 = vunpack.c.l.b16 %v1426
        %v1450 = vunpack.c.l.b16 %v1427
        %v1451 = vunpack.c.l.b16 %v1428
        %v1452 = vunpack.c.l.b16 %v1429
        %v1453 = vpack.c.b16 %v1446, %v1445
        %v1454 = vpack.c.b16 %v1448, %v1447
        %v1455 = vpack.c.b16 %v1450, %v1449
        %v1456 = vpack.c.b16 %v1452, %v1451
        %vm1461 = vcmask 523264
        %v1463 = vsel %vm1461, %v1421, 0
        %1465 = vmatprep.subr.bf16.mxu0 0
        %1466 = vmatpush1.bf16.msra.mxu0 %v1453
        %1467 = vmatprep.subr.bf16.mxu0 0
        %1468 = vmatpush1.bf16.msra.mxu0 %v1454
        %1469 = vmatprep.subr.bf16.mxu0 0
        %1470 = vmatpush1.bf16.msra.mxu0 %v1455
        %1471 = vmatprep.subr.bf16.mxu0 0
        %1472 = vmatpush1.bf16.msra.mxu0 %v1456
        %1473 = vmatprep.subr.bf16.mxu0 0
        %1474 = vmatpush1.bf16.msra.mxu0 0
        %1475 = vmatprep.subr.bf16.mxu0 0
        %1476 = vmatpush1.bf16.msra.mxu0 0
        %1477 = vmatprep.subr.bf16.mxu0 0
        %1478 = vmatpush1.bf16.msra.mxu0 0
        %1479 = vmatprep.subr.bf16.mxu0 0
        %1480 = vmatpush1.bf16.msra.mxu0 0
        %1481 = vmatprep.subr.bf16.mxu0 0
        %1482 = vmatpush1.bf16.msra.mxu0 0
        %1483 = vmatprep.subr.bf16.mxu0 0
        %1484 = vmatpush1.bf16.msra.mxu0 0
        %1485 = vmatprep.subr.bf16.mxu0 0
        %1486 = vmatpush1.bf16.msra.mxu0 0
        %1487 = vmatprep.subr.bf16.mxu0 0
        %1488 = vmatpush1.bf16.msra.mxu0 0
        %1489 = vmatprep.subr.bf16.mxu0 0
        %1490 = vmatpush1.bf16.msra.mxu0 0
        %1491 = vmatprep.subr.bf16.mxu0 0
        %1492 = vmatpush1.bf16.msra.mxu0 0
        %1493 = vmatprep.subr.bf16.mxu0 0
        %1494 = vmatpush1.bf16.msra.mxu0 0
        %1495 = vmatprep.subr.bf16.mxu0 0
        %1496 = vmatpush1.bf16.msra.mxu0 0
        %1497 = vmatprep.mubr.bf16.mxu0 0
        %1498 = vmatmul.mubr.bf16.gmra.mrb[0].mxu0 %v1463
        %v1499 = vpop.f32.mrb[0].mxu0
        %v1500 = vadd.f32 %v1435, %v1499
        %v1501 = vpop.f32.mrb[0].mxu0
        %v1502 = vpop.f32.mrb[0].mxu0
        %v1503 = vpop.f32.mrb[0].mxu0
        %1504 = vdwg.mxu0
        %v1505 = vadd.f32 %v1500, %v1316
        %1506 = vst.msk [vmem:[%s545] sm:$0xff] %vm559, %v1505
        %s1507 = sand.u32 %s344, 1
        %s1508 = scalar_lea.sflag [#allocation4], %s1507
        %s1509 = sand.u32 %s344, 1
        %s1510 = smul.addr %s1509, 8
        %s1511 = scalar_lea.vmem [#allocation13], %s1510
        // Predicated region
        $region101: #{tpu_custom_call.1} parent=75 // pred_check
          %p1512 = pneg %p354
        $region102: #{tpu_custom_call.1} parent=75 // pred_check_branch
          %1514 = sbr.rel (%p1512) target = $region104
        $region103: #{tpu_custom_call.1} parent=75 // pred_region
          %s1516 = ssub.s32 128, 128
          %1517 = vsyncadd %s1508, %s1516
          %s1518 = smul.addr %s32, 128
          %s1519 = scalar_lea.hbm %s14, %s1518
          %s1521 = sshll.u32 %s1511, 4
          %s1522 = int_to_ptr.vmem [resolvable:$true] %s1521
          %1524 = dma.vmem_to_hbm [thread:$0]  %s1522, 128, %s1519, %s1508
        $region104: #{tpu_custom_call.1} parent=75 // pred_fallthru
          _
      $region76: #{tpu_custom_call.1} parent=5 // pred_fallthru
        _
      %p1525 = scmp.le.s32.totalorder 2, %s27
      // Predicated region
      $region105: #{tpu_custom_call.1} parent=5 // pred_check
        %p1526 = pneg %p1525
      $region106: #{tpu_custom_call.1} parent=5 // pred_check_branch
        %1528 = sbr.rel (%p1526) target = $region108
      $region107: #{tpu_custom_call.1} parent=5 // pred_region
        %s1529 = ssub.s32 %s27, 2
        // Predicated region
        $region109: #{tpu_custom_call.1} parent=107 // pred_check
          %p1530 = pneg %p360
        $region110: #{tpu_custom_call.1} parent=107 // pred_check_branch
          %1532 = sbr.rel (%p1530) target = $region112
        $region111: #{tpu_custom_call.1} parent=107 // pred_region
          %s1533 = sand.u32 %s345, 1
          %s1534 = scalar_lea.sflag [#allocation4], %s1533
          %s1535 = sand.u32 %s345, 1
          %s1536 = smul.addr %s1535, 8
          %s1537 = scalar_lea.vmem [#allocation13], %s1536
          %1538 = dma.done %s1534, 128
        $region112: #{tpu_custom_call.1} parent=107 // pred_fallthru
          _
      $region108: #{tpu_custom_call.1} parent=5 // pred_fallthru
        _
    $region6: #{tpu_custom_call.1} parent=1 // loop_footer
      %s31 = sadd.s32 1, %s27
    $region7: #{tpu_custom_call.1} parent=1 // loop_footer_branch
      %26 = sbr.rel target = $region3
    $region8: #{tpu_custom_call.1} parent=1 // loop_exit
      _
    %1539 = vsyncpa [#allocation3], 1
    %s1540 = scalar_lea.sflag [#allocation3], 1
    %1541 = vsyncpa %s1540, 1
    %1542 = vsyncpa [#allocation6], 1
    %1543 = vsyncpa [#allocation9], 1
    %1544 = vsyncpa [#allocation12], 1
    %1545 = vsyncpa [#allocation4], 1
    %s1546 = scalar_lea.sflag [#allocation4], 1
    %1547 = vsyncpa %s1546, 1

</llo_original>
